<compile_context>
chip_gen: v6e
topology: v6e:2x2x1
jax: 0.10.0
libtpu: 0.0.40
codegen_flags: <defaults>
</compile_context>

<pallas_src>
import functools

import jax
import jax.numpy as jnp
from jax import lax
from jax.experimental import pallas as pl
from jax.experimental.pallas import tpu as pltpu


# --------------------------------------------------------------------------
# pltpu.roll direction probe (cached).  Rolls are done on 2-D (rows*W, C2)
# views along the sublane axis; wrapped positions are either masked or never
# selected by the column-parity select, so only the direction matters.
# --------------------------------------------------------------------------
_COL_SHIFT_MODE = None


def _col_shift_mode():
    """One-time hardware probe of pltpu.roll's rotation direction."""
    global _COL_SHIFT_MODE
    if _COL_SHIFT_MODE is None:
        try:
            with jax.ensure_compile_time_eval():
                def _probe(x_ref, o_ref):
                    o_ref[...] = pltpu.roll(x_ref[...], 1, axis=0)

                xs = lax.broadcasted_iota(jnp.int32, (8, 128), 0)
                ys = pl.pallas_call(
                    _probe,
                    out_shape=jax.ShapeDtypeStruct((8, 128), jnp.int32))(xs)
                # jnp.roll convention: out[r] = in[r-1]  ->  out[1, 0] == 0
                _COL_SHIFT_MODE = "roll_np" if int(ys[1, 0]) == 0 else "roll_rev"
        except Exception:
            _COL_SHIFT_MODE = "concat"      # safe fallback, no pltpu.roll
    return _COL_SHIFT_MODE


def _shift_flat(v, delta, mode):
    """t[r, c, :] = v at flattened row-major position (r*W + c + delta).

    Wrapped positions carry junk; every caller either masks them or never
    selects them (column-parity select)."""
    R, W, Cd = v.shape
    n = R * W
    flat = v.reshape(n, Cd)
    if mode == "concat":
        out = jnp.concatenate([flat[delta:], flat[:delta]], axis=0)
    else:
        shift = (-delta) % n if mode == "roll_np" else delta % n
        out = pltpu.roll(flat, shift, axis=0)      # XLU sublane rotate
    return out.reshape(R, W, Cd)


# --------------------------------------------------------------------------
# Fused kernel: project_in -> (DWT * ww -> IWT) -> 3x3 depthwise -> gate ->
# project_out, one row tile per grid step, halo recomputed from x row pairs.
# --------------------------------------------------------------------------
def _wffn_fused_kernel(x_ref, xt_ref, xb_ref, w_in_ref, b_in_ref, ww_ref,
                       w_dw_ref, b_dw_ref, w_out_ref, b_out_ref, o_ref,
                       *, col_shift_mode):
    # x_ref  : (1, TH, W, C)  bf16 main tile (NHWC)
    # xt_ref : (1, 2,  W, C)  bf16 row pair just above the tile (clamped)
    # xb_ref : (1, 2,  W, C)  bf16 row pair just below the tile (clamped)
    # w_in   : (C, C2) bf16 ; b_in : (1, C2) f32 ; ww : (4, C2) f32 (x0.25)
    # w_dw   : (3, 3, C2) f32 ; b_dw : (1, C2) f32
    # w_out  : (hidden, C) bf16 ; b_out : (1, C) f32
    # o_ref  : (1, TH, W, C)
    _, TH, W, C = x_ref.shape
    C2 = w_in_ref.shape[1]
    hidden = w_out_ref.shape[0]
    THe = TH + 4                       # tile rows + one x row pair per side
    RP = THe // 2                      # wavelet row pairs in the window
    i = pl.program_id(1)
    nt = pl.num_programs(1)

    # ---- extended input window: [top pair | tile | bottom pair] ------------
    x_ext = jnp.concatenate([xt_ref[0], x_ref[0], xb_ref[0]], axis=0)  # (THe,W,C)

    # ---- project_in (1x1 conv) on the MXU: bf16 in, f32 accumulate ---------
    y = jnp.dot(x_ext.reshape(THe * W, C), w_in_ref[...],
                preferred_element_type=jnp.float32) + b_in_ref[...]
    y = y.reshape(THe, W, C2).reshape(RP, 2, W, C2)

    # ---- fused DWT -> per-band channel scale -> IWT ------------------------
    ye, yo = y[:, 0], y[:, 1]              # even / odd rows of each 2x2 block
    rs, rd = ye + yo, ye - yo              # row-pair sum / difference

    col = lax.broadcasted_iota(jnp.int32, (1, W, 1), 1)
    col_even = (col % 2) == 0

    def col_partner(v):                    # other column of each column pair
        nxt = _shift_flat(v, +1, col_shift_mode)   # value from column c+1
        prv = _shift_flat(v, -1, col_shift_mode)   # value from column c-1
        return jnp.where(col_even, nxt, prv)

    rs_p, rd_p = col_partner(rs), col_partner(rd)
    cs_rs, cd_rs = rs + rs_p, rs_p - rs
    cs_rd, cd_rd = rd + rd_p, rd_p - rd

    ww = ww_ref[...]                       # (4, C2), 0.25 already folded in
    common = cs_rs * ww[0:1] - cd_rs * ww[1:2]
    rowterm = cs_rd * ww[2:3] - cd_rd * ww[3:4]
    h_e = common + rowterm                 # even output rows
    h_o = common - rowterm                 # odd output rows
    h_ext = jnp.concatenate([h_e[:, None], h_o[:, None]], axis=1).reshape(THe, W, C2)

    # ---- 3x3 depthwise conv over tile rows + 1 recomputed halo row/side ----
    top_row = jnp.where(i > 0, h_ext[1], 0.0)            # global row i*TH - 1
    bot_row = jnp.where(i < nt - 1, h_ext[TH + 2], 0.0)   # global row (i+1)*TH
    hc = jnp.concatenate([top_row[None], h_ext[2:TH + 2], bot_row[None]],
                         axis=0)                          # (TH+2, W, C2)

    h_lft = jnp.where(col > 0, _shift_flat(hc, -1, col_shift_mode), 0.0)      # h[:, c-1]
    h_rgt = jnp.where(col < W - 1, _shift_flat(hc, +1, col_shift_mode), 0.0)  # h[:, c+1]

    w_dw = w_dw_ref[...]                   # (3, 3, C2)

    def row_taps(src, dj):                 # balanced partial sum of 3 row taps
        t0 = src[0:TH] * w_dw[0:1, dj, :]
        t1 = src[1:TH + 1] * w_dw[1:2, dj, :]
        t2 = src[2:TH + 2] * w_dw[2:3, dj, :]
        return (t0 + t1) + t2

    conv = ((row_taps(h_lft, 0) + row_taps(hc, 1))
            + (row_taps(h_rgt, 2) + b_dw_ref[...]))       # (TH, W, C2) f32

    # ---- GELU gate + project_out (1x1 conv) --------------------------------
    gated = jax.nn.gelu(conv[:, :, :hidden], approximate=True) * conv[:, :, hidden:]
    out = jnp.dot(gated.reshape(TH * W, hidden).astype(jnp.bfloat16),
                  w_out_ref[...], preferred_element_type=jnp.float32)
    out = out + b_out_ref[...]
    o_ref[0] = out.reshape(TH, W, o_ref.shape[3]).astype(o_ref.dtype)


# --------------------------------------------------------------------------
# Generation-aware tiling / VMEM budget
# --------------------------------------------------------------------------
def _vmem_limit_bytes():
    """~3/4 of physical VMEM, capped at 96 MiB (v5e/v6e: 128 MiB, v7x: 64 MiB)."""
    try:
        cap = int(pltpu.get_tpu_info().vmem_capacity_bytes)
    except Exception:
        cap = 64 * 1024 * 1024
    return min(cap * 3 // 4, 96 * 1024 * 1024)


def _pick_row_tile(H, W, C2, B, vmem_limit):
    """Largest even divisor of H whose C2-wide f32 working tensors fit a
    per-tensor budget (~1/16 of the VMEM limit, leaving headroom for ~8 live
    temporaries plus double-buffered I/O blocks), keeping >= 2 grid cells so
    both of v7x's TensorCores get work."""
    per_tensor = max(vmem_limit // 16, 1 << 20)
    cands = [t for t in range(2, H + 1, 2) if H % t == 0]
    assert cands, "H must be even"
    fitting = [t for t in cands if (t + 4) * W * C2 * 4 <= per_tensor] or [cands[0]]
    best = max(fitting)
    if B * (H // best) >= 2:
        return best
    multi = [t for t in fitting if H // t >= 2]
    return max(multi) if multi else best


# --------------------------------------------------------------------------
# WFFN forward wrapper
# --------------------------------------------------------------------------
def wffn_forward(x_nchw, params, *, row_tile=None):
    """WFFN forward.  x_nchw: (B, dim, H, W) -> (B, dim, H, W)."""
    w_in, b_in, ww, w_dw, b_dw, w_out, b_out = params
    B, C, H, W = x_nchw.shape
    C2 = w_in.shape[1]
    hidden = C2 // 2
    assert H % 2 == 0 and W % 2 == 0, "spatial dims must be even for DWT/IWT"

    vmem_limit = _vmem_limit_bytes()
    TH = _pick_row_tile(H, W, C2, B, vmem_limit) if row_tile is None else row_tile
    assert H % TH == 0 and TH % 2 == 0
    n_tiles = H // TH
    th2 = TH // 2
    n_half = H // 2

    mode = _col_shift_mode()

    # NHWC + bf16 input (the project_in matmul is bf16 anyway -> halves x read).
    x = jnp.transpose(x_nchw, (0, 2, 3, 1)).astype(jnp.bfloat16)
    w_in_b = w_in.astype(jnp.bfloat16)
    w_out_b = w_out.astype(jnp.bfloat16)
    ww_s = (ww * 0.25).astype(jnp.float32)     # fold both DWT/IWT 0.5 factors

    kernel = functools.partial(_wffn_fused_kernel, col_shift_mode=mode)
    out_nhwc = pl.pallas_call(
        kernel,
        out_shape=jax.ShapeDtypeStruct((B, H, W, C), x_nchw.dtype),
        grid=(B, n_tiles),
        in_specs=[
            pl.BlockSpec((1, TH, W, C), lambda b, i: (b, i, 0, 0)),
            # x row pair just above / below the tile (clamped at the image
            # edges; the recomputed halo row is zero-masked inside the kernel).
            pl.BlockSpec((1, 2, W, C),
                         lambda b, i: (b, jnp.maximum(i * th2 - 1, 0), 0, 0)),
            pl.BlockSpec((1, 2, W, C),
                         lambda b, i: (b, jnp.minimum((i + 1) * th2, n_half - 1), 0, 0)),
            pl.BlockSpec((C, C2), lambda b, i: (0, 0)),
            pl.BlockSpec((1, C2), lambda b, i: (0, 0)),
            pl.BlockSpec((4, C2), lambda b, i: (0, 0)),
            pl.BlockSpec((3, 3, C2), lambda b, i: (0, 0, 0)),
            pl.BlockSpec((1, C2), lambda b, i: (0, 0)),
            pl.BlockSpec((hidden, C), lambda b, i: (0, 0)),
            pl.BlockSpec((1, C), lambda b, i: (0, 0)),
        ],
        out_specs=pl.BlockSpec((1, TH, W, C), lambda b, i: (b, i, 0, 0)),
        compiler_params=pltpu.CompilerParams(
            dimension_semantics=("parallel", "parallel"),
            vmem_limit_bytes=vmem_limit),
    )(x, x, x, w_in_b, b_in, ww_s, w_dw, b_dw, w_out_b, b_out)

    return jnp.transpose(out_nhwc, (0, 3, 1, 2))           # back to NCHW


# --------------------------------------------------------------------------
# Pure-JAX reference mirroring the kernel numerics (bf16 MXU inputs with f32
# accumulate, f32 elementwise, tanh GELU) but following the original PyTorch
# dwt_init / iwt_init / depthwise-conv formulation.
# --------------------------------------------------------------------------
def wffn_reference(x_nchw, params):
    w_in, b_in, ww, w_dw, b_dw, w_out, b_out = params
    B, C, H, W = x_nchw.shape
    C2 = w_in.shape[1]
    hidden = C2 // 2
    x = jnp.transpose(x_nchw, (0, 2, 3, 1))
    y = jnp.dot(x.reshape(-1, C).astype(jnp.bfloat16), w_in.astype(jnp.bfloat16),
                preferred_element_type=jnp.float32).reshape(B, H, W, C2) + b_in[0]
    # DWT
    x01 = y[:, 0::2, :, :] / 2
    x02 = y[:, 1::2, :, :] / 2
    x1 = x01[:, :, 0::2, :]
    x2 = x02[:, :, 0::2, :]
    x3 = x01[:, :, 1::2, :]
    x4 = x02[:, :, 1::2, :]
    ll = (x1 + x2 + x3 + x4) * ww[0]
    hl = (-x1 - x2 + x3 + x4) * ww[1]
    lh = (-x1 + x2 - x3 + x4) * ww[2]
    hh = (x1 - x2 - x3 + x4) * ww[3]
    # IWT
    y1, y2_, y3_, y4_ = ll / 2, hl / 2, lh / 2, hh / 2
    h = jnp.zeros((B, H, W, C2), jnp.float32)
    h = h.at[:, 0::2, 0::2, :].set(y1 - y2_ - y3_ + y4_)
    h = h.at[:, 1::2, 0::2, :].set(y1 - y2_ + y3_ - y4_)
    h = h.at[:, 0::2, 1::2, :].set(y1 + y2_ - y3_ - y4_)
    h = h.at[:, 1::2, 1::2, :].set(y1 + y2_ + y3_ + y4_)
    # depthwise 3x3 + GELU gate
    hp = jnp.pad(h, ((0, 0), (1, 1), (1, 1), (0, 0)))
    acc = jnp.zeros_like(h) + b_dw[0]
    for di in range(3):
        for dj in range(3):
            acc = acc + hp[:, di:di + H, dj:dj + W, :] * w_dw[di, dj]
    g = jax.nn.gelu(acc[..., :hidden], approximate=True) * acc[..., hidden:]
    out = jnp.dot(g.reshape(-1, hidden).astype(jnp.bfloat16), w_out.astype(jnp.bfloat16),
                  preferred_element_type=jnp.float32).reshape(B, H, W, C) + b_out[0]
    return jnp.transpose(out, (0, 3, 1, 2))


if __name__ == "__main__":
    key = jax.random.PRNGKey(0)
    B, dim, H, W = 2, 4, 16, 16
    ffn_expansion_factor = 2.0
    hidden = int(dim * ffn_expansion_factor)      # 8
    hidden2 = hidden * 2                          # 16

    ks = jax.random.split(key, 8)
    x = jax.random.normal(ks[0], (B, dim, H, W), jnp.float32)

    # Parameters (deterministic synthetic init; shapes follow the PyTorch module,
    # converted to the kernel's NHWC-friendly layouts).
    w_in = jax.random.normal(ks[1], (dim, hidden2), jnp.float32) * 0.1    # Conv2d(dim, 2h, 1)
    b_in = jax.random.normal(ks[2], (1, hidden2), jnp.float32) * 0.05
    ww = 1.0 + 0.1 * jax.random.normal(ks[3], (4, hidden2), jnp.float32)  # (2h*4,1,1) -> (4, 2h)
    w_dw = jax.random.normal(ks[4], (3, 3, hidden2), jnp.float32) * 0.1   # depthwise (2h,1,3,3)
    b_dw = jax.random.normal(ks[5], (1, hidden2), jnp.float32) * 0.05
    w_out = jax.random.normal(ks[6], (hidden, dim), jnp.float32) * 0.1    # Conv2d(h, dim, 1)
    b_out = jax.random.normal(ks[7], (1, dim), jnp.float32) * 0.05

    params = (w_in, b_in, ww, w_dw, b_dw, w_out, b_out)

    _col_shift_mode()                              # warm the roll-direction probe
    ref = wffn_reference(x, params)

    # Default (generation-aware) tiling.
    out = jax.block_until_ready(jax.jit(wffn_forward)(x, params))
    assert out.shape == (B, dim, H, W), out.shape
    assert jnp.allclose(out, ref, atol=1e-3, rtol=1e-2), float(
        jnp.max(jnp.abs(out - ref)))

    # Force 2 row tiles so the interior halo-recompute path is exercised too.
    out2 = jax.block_until_ready(
        jax.jit(functools.partial(wffn_forward, row_tile=8))(x, params))
    assert jnp.allclose(out2, ref, atol=1e-3, rtol=1e-2), float(
        jnp.max(jnp.abs(out2 - ref)))

    print("KERNEL_OK")
</pallas_src>

<mosaic_0001>
module attributes {stable_mosaic.version = 11 : i64} {
  func.func @_probe(%arg0: memref<8x128xi32, #tpu.memory_space<vmem>>, %arg1: memref<8x128xi32, #tpu.memory_space<vmem>>) attributes {dimension_semantics = [], scalar_prefetch = 0 : i64, scratch_operands = 0 : i64, tpu.core_type = #tpu.core_type<tc>} {
    %c0 = arith.constant 0 : index
    %c0_0 = arith.constant 0 : index
    %0 = vector.load %arg0[%c0, %c0_0] : memref<8x128xi32, #tpu.memory_space<vmem>>, vector<8x128xi32>
    %c1_i32 = arith.constant 1 : i32
    %1 = tpu.dynamic_rotate %0 by %c1_i32 dim 0 : vector<8x128xi32>, i32 -> vector<8x128xi32>
    %c0_1 = arith.constant 0 : index
    %c0_2 = arith.constant 0 : index
    %2 = vector.load %arg1[%c0_1, %c0_2] : memref<8x128xi32, #tpu.memory_space<vmem>>, vector<8x128xi32>
    tpu.vector_store %arg1[%c0_1, %c0_2], %1 {strides = array<i32>} : memref<8x128xi32, #tpu.memory_space<vmem>>, vector<8x128xi32>,
    return
  }
}

module attributes {stable_mosaic.version = 11 : i64} {
  func.func @_wffn_fused_kernel(%arg0: i32, %arg1: i32, %arg2: memref<1x16x16x4xbf16, #tpu.memory_space<vmem>>, %arg3: memref<1x2x16x4xbf16, #tpu.memory_space<vmem>>, %arg4: memref<1x2x16x4xbf16, #tpu.memory_space<vmem>>, %arg5: memref<4x16xbf16, #tpu.memory_space<vmem>>, %arg6: memref<1x16xf32, #tpu.memory_space<vmem>>, %arg7: memref<4x16xf32, #tpu.memory_space<vmem>>, %arg8: memref<3x3x16xf32, #tpu.memory_space<vmem>>, %arg9: memref<1x16xf32, #tpu.memory_space<vmem>>, %arg10: memref<8x4xbf16, #tpu.memory_space<vmem>>, %arg11: memref<1x4xf32, #tpu.memory_space<vmem>>, %arg12: memref<1x16x16x4xf32, #tpu.memory_space<vmem>>) attributes {dimension_semantics = [#tpu.dimension_semantics<parallel>, #tpu.dimension_semantics<parallel>], iteration_bounds = array<i64: 2, 1>, scalar_prefetch = 0 : i64, scratch_operands = 0 : i64, tpu.core_type = #tpu.core_type<tc>, window_params = [{transform_indices = @transform_0, window_bounds = array<i64: 1, 16, 16, 4>}, {transform_indices = @transform_1, window_bounds = array<i64: 1, 2, 16, 4>}, {transform_indices = @transform_2, window_bounds = array<i64: 1, 2, 16, 4>}, {pipeline_mode = #tpu.pipeline_mode<synchronous>, transform_indices = @transform_3, window_bounds = array<i64: 4, 16>}, {pipeline_mode = #tpu.pipeline_mode<synchronous>, transform_indices = @transform_4, window_bounds = array<i64: 1, 16>}, {pipeline_mode = #tpu.pipeline_mode<synchronous>, transform_indices = @transform_5, window_bounds = array<i64: 4, 16>}, {pipeline_mode = #tpu.pipeline_mode<synchronous>, transform_indices = @transform_6, window_bounds = array<i64: 3, 3, 16>}, {pipeline_mode = #tpu.pipeline_mode<synchronous>, transform_indices = @transform_7, window_bounds = array<i64: 1, 16>}, {pipeline_mode = #tpu.pipeline_mode<synchronous>, transform_indices = @transform_8, window_bounds = array<i64: 8, 4>}, {pipeline_mode = #tpu.pipeline_mode<synchronous>, transform_indices = @transform_9, window_bounds = array<i64: 1, 4>}, {transform_indices = @transform_10, window_bounds = array<i64: 1, 16, 16, 4>}]} {
    %c0 = arith.constant 0 : index
    %c0_0 = arith.constant 0 : index
    %c0_1 = arith.constant 0 : index
    %c0_2 = arith.constant 0 : index
    %0 = vector.load %arg3[%c0, %c0_0, %c0_1, %c0_2] : memref<1x2x16x4xbf16, #tpu.memory_space<vmem>>, vector<1x2x16x4xbf16>
    %1 = vector.shape_cast %0 : vector<1x2x16x4xbf16> to vector<2x16x4xbf16>
    %c0_3 = arith.constant 0 : index
    %c0_4 = arith.constant 0 : index
    %c0_5 = arith.constant 0 : index
    %c0_6 = arith.constant 0 : index
    %2 = vector.load %arg2[%c0_3, %c0_4, %c0_5, %c0_6] : memref<1x16x16x4xbf16, #tpu.memory_space<vmem>>, vector<1x16x16x4xbf16>
    %3 = vector.shape_cast %2 : vector<1x16x16x4xbf16> to vector<16x16x4xbf16>
    %c0_7 = arith.constant 0 : index
    %c0_8 = arith.constant 0 : index
    %c0_9 = arith.constant 0 : index
    %c0_10 = arith.constant 0 : index
    %4 = vector.load %arg4[%c0_7, %c0_8, %c0_9, %c0_10] : memref<1x2x16x4xbf16, #tpu.memory_space<vmem>>, vector<1x2x16x4xbf16>
    %5 = vector.shape_cast %4 : vector<1x2x16x4xbf16> to vector<2x16x4xbf16>
    %6 = tpu.concatenate %1, %3, %5 in 0 : vector<2x16x4xbf16>, vector<16x16x4xbf16>, vector<2x16x4xbf16> -> vector<20x16x4xbf16>
    %7 = vector.shape_cast %6 : vector<20x16x4xbf16> to vector<320x4xbf16>
    %c0_11 = arith.constant 0 : index
    %c0_12 = arith.constant 0 : index
    %8 = vector.load %arg5[%c0_11, %c0_12] : memref<4x16xbf16, #tpu.memory_space<vmem>>, vector<4x16xbf16>
    %cst = arith.constant dense<0.000000e+00> : vector<320x16xf32>
    %9 = tpu.matmul %7, %8, %cst {dimension_numbers = #tpu.dot_dimension_numbers<[1], [0], [0], [1], [0, 0, 1, 1], [], []>} : vector<320x4xbf16>, vector<4x16xbf16>, vector<320x16xf32> -> vector<320x16xf32>
    %c0_13 = arith.constant 0 : index
    %c0_14 = arith.constant 0 : index
    %10 = vector.load %arg6[%c0_13, %c0_14] : memref<1x16xf32, #tpu.memory_space<vmem>>, vector<1x16xf32>
    %11 = vector.broadcast %10 : vector<1x16xf32> to vector<320x16xf32>
    %12 = arith.addf %9, %11 : vector<320x16xf32>
    %13 = vector.shape_cast %12 : vector<320x16xf32> to vector<20x16x16xf32>
    %14 = vector.shape_cast %13 : vector<20x16x16xf32> to vector<10x2x16x16xf32>
    %15 = vector.extract_strided_slice %14 {offsets = [0, 0, 0, 0], sizes = [10, 1, 16, 16], strides = [1, 1, 1, 1]} : vector<10x2x16x16xf32> to vector<10x1x16x16xf32>
    %16 = vector.shape_cast %15 : vector<10x1x16x16xf32> to vector<10x16x16xf32>
    %17 = vector.extract_strided_slice %14 {offsets = [0, 1, 0, 0], sizes = [10, 1, 16, 16], strides = [1, 1, 1, 1]} : vector<10x2x16x16xf32> to vector<10x1x16x16xf32>
    %18 = vector.shape_cast %17 : vector<10x1x16x16xf32> to vector<10x16x16xf32>
    %19 = arith.addf %16, %18 : vector<10x16x16xf32>
    %20 = arith.subf %16, %18 : vector<10x16x16xf32>
    %21 = tpu.iota {dimensions = array<i32: 1>} : vector<1x16x1xi32>
    %c2_i32 = arith.constant 2 : i32
    %c0_i32 = arith.constant 0 : i32
    %22 = arith.cmpi eq, %c2_i32, %c0_i32 : i32
    %c1_i32 = arith.constant 1 : i32
    %23 = arith.select %22, %c1_i32, %c2_i32 : i32
    %24 = vector.broadcast %23 : i32 to vector<1x16x1xi32>
    %25 = arith.remsi %21, %24 : vector<1x16x1xi32>
    %c0_i32_15 = arith.constant 0 : i32
    %26 = vector.broadcast %c0_i32_15 : i32 to vector<1x16x1xi32>
    %27 = arith.cmpi ne, %25, %26 : vector<1x16x1xi32>
    %c0_i32_16 = arith.constant 0 : i32
    %28 = vector.broadcast %c0_i32_16 : i32 to vector<1x16x1xi32>
    %29 = arith.cmpi slt, %25, %28 : vector<1x16x1xi32>
    %c0_i32_17 = arith.constant 0 : i32
    %30 = arith.cmpi slt, %23, %c0_i32_17 : i32
    %31 = vector.broadcast %30 : i1 to vector<1x16x1xi1>
    %32 = vector.broadcast %31 : vector<1x16x1xi1> to vector<1x16x1xi1>
    %33 = arith.xori %29, %32 : vector<1x16x1xi1>
    %34 = arith.andi %33, %27 : vector<1x16x1xi1>
    %35 = vector.broadcast %23 : i32 to vector<1x16x1xi32>
    %36 = arith.addi %25, %35 : vector<1x16x1xi32>
    %37 = arith.select %34, %36, %25 : vector<1x16x1xi1>, vector<1x16x1xi32>
    %c0_i32_18 = arith.constant 0 : i32
    %38 = vector.broadcast %c0_i32_18 : i32 to vector<1x16x1xi32>
    %39 = arith.cmpi eq, %37, %38 : vector<1x16x1xi32>
    %40 = vector.shape_cast %19 : vector<10x16x16xf32> to vector<160x16xf32>
    %41 = vector.extract_strided_slice %40 {offsets = [1, 0], sizes = [159, 16], strides = [1, 1]} : vector<160x16xf32> to vector<159x16xf32>
    %42 = vector.extract_strided_slice %40 {offsets = [0, 0], sizes = [1, 16], strides = [1, 1]} : vector<160x16xf32> to vector<1x16xf32>
    %43 = tpu.concatenate %41, %42 in 0 : vector<159x16xf32>, vector<1x16xf32> -> vector<160x16xf32>
    %44 = vector.shape_cast %43 : vector<160x16xf32> to vector<10x16x16xf32>
    %45 = vector.shape_cast %19 : vector<10x16x16xf32> to vector<160x16xf32>
    %46 = vector.extract_strided_slice %45 {offsets = [159, 0], sizes = [1, 16], strides = [1, 1]} : vector<160x16xf32> to vector<1x16xf32>
    %47 = vector.extract_strided_slice %45 {offsets = [0, 0], sizes = [159, 16], strides = [1, 1]} : vector<160x16xf32> to vector<159x16xf32>
    %48 = tpu.concatenate %46, %47 in 0 : vector<1x16xf32>, vector<159x16xf32> -> vector<160x16xf32>
    %49 = vector.shape_cast %48 : vector<160x16xf32> to vector<10x16x16xf32>
    %50 = vector.shape_cast %39 : vector<1x16x1xi1> to vector<1x16x1xi1>
    %51 = vector.broadcast %50 : vector<1x16x1xi1> to vector<10x16x16xi1>
    %52 = arith.select %51, %44, %49 : vector<10x16x16xi1>, vector<10x16x16xf32>
    %53 = vector.shape_cast %20 : vector<10x16x16xf32> to vector<160x16xf32>
    %54 = vector.extract_strided_slice %53 {offsets = [1, 0], sizes = [159, 16], strides = [1, 1]} : vector<160x16xf32> to vector<159x16xf32>
    %55 = vector.extract_strided_slice %53 {offsets = [0, 0], sizes = [1, 16], strides = [1, 1]} : vector<160x16xf32> to vector<1x16xf32>
    %56 = tpu.concatenate %54, %55 in 0 : vector<159x16xf32>, vector<1x16xf32> -> vector<160x16xf32>
    %57 = vector.shape_cast %56 : vector<160x16xf32> to vector<10x16x16xf32>
    %58 = vector.shape_cast %20 : vector<10x16x16xf32> to vector<160x16xf32>
    %59 = vector.extract_strided_slice %58 {offsets = [159, 0], sizes = [1, 16], strides = [1, 1]} : vector<160x16xf32> to vector<1x16xf32>
    %60 = vector.extract_strided_slice %58 {offsets = [0, 0], sizes = [159, 16], strides = [1, 1]} : vector<160x16xf32> to vector<159x16xf32>
    %61 = tpu.concatenate %59, %60 in 0 : vector<1x16xf32>, vector<159x16xf32> -> vector<160x16xf32>
    %62 = vector.shape_cast %61 : vector<160x16xf32> to vector<10x16x16xf32>
    %63 = vector.shape_cast %39 : vector<1x16x1xi1> to vector<1x16x1xi1>
    %64 = vector.broadcast %63 : vector<1x16x1xi1> to vector<10x16x16xi1>
    %65 = arith.select %64, %57, %62 : vector<10x16x16xi1>, vector<10x16x16xf32>
    %66 = arith.addf %19, %52 : vector<10x16x16xf32>
    %67 = arith.subf %52, %19 : vector<10x16x16xf32>
    %68 = arith.addf %20, %65 : vector<10x16x16xf32>
    %69 = arith.subf %65, %20 : vector<10x16x16xf32>
    %c0_19 = arith.constant 0 : index
    %c0_20 = arith.constant 0 : index
    %70 = vector.load %arg7[%c0_19, %c0_20] : memref<4x16xf32, #tpu.memory_space<vmem>>, vector<4x16xf32>
    %71 = vector.extract_strided_slice %70 {offsets = [0, 0], sizes = [1, 16], strides = [1, 1]} : vector<4x16xf32> to vector<1x16xf32>
    %72 = vector.shape_cast %71 : vector<1x16xf32> to vector<1x1x16xf32>
    %73 = vector.broadcast %72 : vector<1x1x16xf32> to vector<10x16x16xf32>
    %74 = arith.mulf %66, %73 : vector<10x16x16xf32>
    %75 = vector.extract_strided_slice %70 {offsets = [1, 0], sizes = [1, 16], strides = [1, 1]} : vector<4x16xf32> to vector<1x16xf32>
    %76 = vector.shape_cast %75 : vector<1x16xf32> to vector<1x1x16xf32>
    %77 = vector.broadcast %76 : vector<1x1x16xf32> to vector<10x16x16xf32>
    %78 = arith.mulf %67, %77 : vector<10x16x16xf32>
    %79 = arith.subf %74, %78 : vector<10x16x16xf32>
    %80 = vector.extract_strided_slice %70 {offsets = [2, 0], sizes = [1, 16], strides = [1, 1]} : vector<4x16xf32> to vector<1x16xf32>
    %81 = vector.shape_cast %80 : vector<1x16xf32> to vector<1x1x16xf32>
    %82 = vector.broadcast %81 : vector<1x1x16xf32> to vector<10x16x16xf32>
    %83 = arith.mulf %68, %82 : vector<10x16x16xf32>
    %84 = vector.extract_strided_slice %70 {offsets = [3, 0], sizes = [1, 16], strides = [1, 1]} : vector<4x16xf32> to vector<1x16xf32>
    %85 = vector.shape_cast %84 : vector<1x16xf32> to vector<1x1x16xf32>
    %86 = vector.broadcast %85 : vector<1x1x16xf32> to vector<10x16x16xf32>
    %87 = arith.mulf %69, %86 : vector<10x16x16xf32>
    %88 = arith.subf %83, %87 : vector<10x16x16xf32>
    %89 = arith.addf %79, %88 : vector<10x16x16xf32>
    %90 = arith.subf %79, %88 : vector<10x16x16xf32>
    %91 = vector.shape_cast %89 : vector<10x16x16xf32> to vector<10x1x16x16xf32>
    %92 = vector.shape_cast %90 : vector<10x16x16xf32> to vector<10x1x16x16xf32>
    %93 = tpu.concatenate %91, %92 in 1 : vector<10x1x16x16xf32>, vector<10x1x16x16xf32> -> vector<10x2x16x16xf32>
    %94 = vector.shape_cast %93 : vector<10x2x16x16xf32> to vector<20x16x16xf32>
    %c0_i32_21 = arith.constant 0 : i32
    %95 = arith.cmpi sgt, %arg1, %c0_i32_21 : i32
    %96 = vector.extract_strided_slice %94 {offsets = [1, 0, 0], sizes = [1, 16, 16], strides = [1, 1, 1]} : vector<20x16x16xf32> to vector<1x16x16xf32>
    %97 = vector.shape_cast %96 : vector<1x16x16xf32> to vector<16x16xf32>
    %cst_22 = arith.constant 0.000000e+00 : f32
    %98 = vector.broadcast %cst_22 : f32 to vector<16x16xf32>
    %99 = arith.select %95, %97, %98 : vector<16x16xf32>
    %c0_i32_23 = arith.constant 0 : i32
    %100 = arith.cmpi slt, %arg1, %c0_i32_23 : i32
    %101 = vector.extract_strided_slice %94 {offsets = [18, 0, 0], sizes = [1, 16, 16], strides = [1, 1, 1]} : vector<20x16x16xf32> to vector<1x16x16xf32>
    %102 = vector.shape_cast %101 : vector<1x16x16xf32> to vector<16x16xf32>
    %cst_24 = arith.constant 0.000000e+00 : f32
    %103 = vector.broadcast %cst_24 : f32 to vector<16x16xf32>
    %104 = arith.select %100, %102, %103 : vector<16x16xf32>
    %105 = vector.shape_cast %99 : vector<16x16xf32> to vector<1x16x16xf32>
    %106 = vector.extract_strided_slice %94 {offsets = [2, 0, 0], sizes = [16, 16, 16], strides = [1, 1, 1]} : vector<20x16x16xf32> to vector<16x16x16xf32>
    %107 = vector.shape_cast %104 : vector<16x16xf32> to vector<1x16x16xf32>
    %108 = tpu.concatenate %105, %106, %107 in 0 : vector<1x16x16xf32>, vector<16x16x16xf32>, vector<1x16x16xf32> -> vector<18x16x16xf32>
    %c0_i32_25 = arith.constant 0 : i32
    %109 = vector.broadcast %c0_i32_25 : i32 to vector<1x16x1xi32>
    %110 = arith.cmpi sgt, %21, %109 : vector<1x16x1xi32>
    %111 = vector.shape_cast %108 : vector<18x16x16xf32> to vector<288x16xf32>
    %112 = vector.extract_strided_slice %111 {offsets = [287, 0], sizes = [1, 16], strides = [1, 1]} : vector<288x16xf32> to vector<1x16xf32>
    %113 = vector.extract_strided_slice %111 {offsets = [0, 0], sizes = [287, 16], strides = [1, 1]} : vector<288x16xf32> to vector<287x16xf32>
    %114 = tpu.concatenate %112, %113 in 0 : vector<1x16xf32>, vector<287x16xf32> -> vector<288x16xf32>
    %115 = vector.shape_cast %114 : vector<288x16xf32> to vector<18x16x16xf32>
    %cst_26 = arith.constant 0.000000e+00 : f32
    %116 = vector.shape_cast %110 : vector<1x16x1xi1> to vector<1x16x1xi1>
    %117 = vector.broadcast %116 : vector<1x16x1xi1> to vector<18x16x16xi1>
    %118 = vector.broadcast %cst_26 : f32 to vector<18x16x16xf32>
    %119 = arith.select %117, %115, %118 : vector<18x16x16xi1>, vector<18x16x16xf32>
    %c15_i32 = arith.constant 15 : i32
    %120 = vector.broadcast %c15_i32 : i32 to vector<1x16x1xi32>
    %121 = arith.cmpi slt, %21, %120 : vector<1x16x1xi32>
    %122 = vector.shape_cast %108 : vector<18x16x16xf32> to vector<288x16xf32>
    %123 = vector.extract_strided_slice %122 {offsets = [1, 0], sizes = [287, 16], strides = [1, 1]} : vector<288x16xf32> to vector<287x16xf32>
    %124 = vector.extract_strided_slice %122 {offsets = [0, 0], sizes = [1, 16], strides = [1, 1]} : vector<288x16xf32> to vector<1x16xf32>
    %125 = tpu.concatenate %123, %124 in 0 : vector<287x16xf32>, vector<1x16xf32> -> vector<288x16xf32>
    %126 = vector.shape_cast %125 : vector<288x16xf32> to vector<18x16x16xf32>
    %cst_27 = arith.constant 0.000000e+00 : f32
    %127 = vector.shape_cast %121 : vector<1x16x1xi1> to vector<1x16x1xi1>
    %128 = vector.broadcast %127 : vector<1x16x1xi1> to vector<18x16x16xi1>
    %129 = vector.broadcast %cst_27 : f32 to vector<18x16x16xf32>
    %130 = arith.select %128, %126, %129 : vector<18x16x16xi1>, vector<18x16x16xf32>
    %c0_28 = arith.constant 0 : index
    %c0_29 = arith.constant 0 : index
    %c0_30 = arith.constant 0 : index
    %131 = vector.load %arg8[%c0_28, %c0_29, %c0_30] : memref<3x3x16xf32, #tpu.memory_space<vmem>>, vector<3x3x16xf32>
    %132 = vector.extract_strided_slice %119 {offsets = [0, 0, 0], sizes = [16, 16, 16], strides = [1, 1, 1]} : vector<18x16x16xf32> to vector<16x16x16xf32>
    %133 = vector.extract_strided_slice %131 {offsets = [0, 0, 0], sizes = [1, 1, 16], strides = [1, 1, 1]} : vector<3x3x16xf32> to vector<1x1x16xf32>
    %134 = vector.shape_cast %133 : vector<1x1x16xf32> to vector<1x16xf32>
    %135 = vector.shape_cast %134 : vector<1x16xf32> to vector<1x1x16xf32>
    %136 = vector.broadcast %135 : vector<1x1x16xf32> to vector<16x16x16xf32>
    %137 = arith.mulf %132, %136 : vector<16x16x16xf32>
    %138 = vector.extract_strided_slice %119 {offsets = [1, 0, 0], sizes = [16, 16, 16], strides = [1, 1, 1]} : vector<18x16x16xf32> to vector<16x16x16xf32>
    %139 = vector.extract_strided_slice %131 {offsets = [1, 0, 0], sizes = [1, 1, 16], strides = [1, 1, 1]} : vector<3x3x16xf32> to vector<1x1x16xf32>
    %140 = vector.shape_cast %139 : vector<1x1x16xf32> to vector<1x16xf32>
    %141 = vector.shape_cast %140 : vector<1x16xf32> to vector<1x1x16xf32>
    %142 = vector.broadcast %141 : vector<1x1x16xf32> to vector<16x16x16xf32>
    %143 = arith.mulf %138, %142 : vector<16x16x16xf32>
    %144 = vector.extract_strided_slice %119 {offsets = [2, 0, 0], sizes = [16, 16, 16], strides = [1, 1, 1]} : vector<18x16x16xf32> to vector<16x16x16xf32>
    %145 = vector.extract_strided_slice %131 {offsets = [2, 0, 0], sizes = [1, 1, 16], strides = [1, 1, 1]} : vector<3x3x16xf32> to vector<1x1x16xf32>
    %146 = vector.shape_cast %145 : vector<1x1x16xf32> to vector<1x16xf32>
    %147 = vector.shape_cast %146 : vector<1x16xf32> to vector<1x1x16xf32>
    %148 = vector.broadcast %147 : vector<1x1x16xf32> to vector<16x16x16xf32>
    %149 = arith.mulf %144, %148 : vector<16x16x16xf32>
    %150 = arith.addf %137, %143 : vector<16x16x16xf32>
    %151 = arith.addf %150, %149 : vector<16x16x16xf32>
    %152 = vector.extract_strided_slice %108 {offsets = [0, 0, 0], sizes = [16, 16, 16], strides = [1, 1, 1]} : vector<18x16x16xf32> to vector<16x16x16xf32>
    %153 = vector.extract_strided_slice %131 {offsets = [0, 1, 0], sizes = [1, 1, 16], strides = [1, 1, 1]} : vector<3x3x16xf32> to vector<1x1x16xf32>
    %154 = vector.shape_cast %153 : vector<1x1x16xf32> to vector<1x16xf32>
    %155 = vector.shape_cast %154 : vector<1x16xf32> to vector<1x1x16xf32>
    %156 = vector.broadcast %155 : vector<1x1x16xf32> to vector<16x16x16xf32>
    %157 = arith.mulf %152, %156 : vector<16x16x16xf32>
    %158 = vector.extract_strided_slice %108 {offsets = [1, 0, 0], sizes = [16, 16, 16], strides = [1, 1, 1]} : vector<18x16x16xf32> to vector<16x16x16xf32>
    %159 = vector.extract_strided_slice %131 {offsets = [1, 1, 0], sizes = [1, 1, 16], strides = [1, 1, 1]} : vector<3x3x16xf32> to vector<1x1x16xf32>
    %160 = vector.shape_cast %159 : vector<1x1x16xf32> to vector<1x16xf32>
    %161 = vector.shape_cast %160 : vector<1x16xf32> to vector<1x1x16xf32>
    %162 = vector.broadcast %161 : vector<1x1x16xf32> to vector<16x16x16xf32>
    %163 = arith.mulf %158, %162 : vector<16x16x16xf32>
    %164 = vector.extract_strided_slice %108 {offsets = [2, 0, 0], sizes = [16, 16, 16], strides = [1, 1, 1]} : vector<18x16x16xf32> to vector<16x16x16xf32>
    %165 = vector.extract_strided_slice %131 {offsets = [2, 1, 0], sizes = [1, 1, 16], strides = [1, 1, 1]} : vector<3x3x16xf32> to vector<1x1x16xf32>
    %166 = vector.shape_cast %165 : vector<1x1x16xf32> to vector<1x16xf32>
    %167 = vector.shape_cast %166 : vector<1x16xf32> to vector<1x1x16xf32>
    %168 = vector.broadcast %167 : vector<1x1x16xf32> to vector<16x16x16xf32>
    %169 = arith.mulf %164, %168 : vector<16x16x16xf32>
    %170 = arith.addf %157, %163 : vector<16x16x16xf32>
    %171 = arith.addf %170, %169 : vector<16x16x16xf32>
    %172 = arith.addf %151, %171 : vector<16x16x16xf32>
    %173 = vector.extract_strided_slice %130 {offsets = [0, 0, 0], sizes = [16, 16, 16], strides = [1, 1, 1]} : vector<18x16x16xf32> to vector<16x16x16xf32>
    %174 = vector.extract_strided_slice %131 {offsets = [0, 2, 0], sizes = [1, 1, 16], strides = [1, 1, 1]} : vector<3x3x16xf32> to vector<1x1x16xf32>
    %175 = vector.shape_cast %174 : vector<1x1x16xf32> to vector<1x16xf32>
    %176 = vector.shape_cast %175 : vector<1x16xf32> to vector<1x1x16xf32>
    %177 = vector.broadcast %176 : vector<1x1x16xf32> to vector<16x16x16xf32>
    %178 = arith.mulf %173, %177 : vector<16x16x16xf32>
    %179 = vector.extract_strided_slice %130 {offsets = [1, 0, 0], sizes = [16, 16, 16], strides = [1, 1, 1]} : vector<18x16x16xf32> to vector<16x16x16xf32>
    %180 = vector.extract_strided_slice %131 {offsets = [1, 2, 0], sizes = [1, 1, 16], strides = [1, 1, 1]} : vector<3x3x16xf32> to vector<1x1x16xf32>
    %181 = vector.shape_cast %180 : vector<1x1x16xf32> to vector<1x16xf32>
    %182 = vector.shape_cast %181 : vector<1x16xf32> to vector<1x1x16xf32>
    %183 = vector.broadcast %182 : vector<1x1x16xf32> to vector<16x16x16xf32>
    %184 = arith.mulf %179, %183 : vector<16x16x16xf32>
    %185 = vector.extract_strided_slice %130 {offsets = [2, 0, 0], sizes = [16, 16, 16], strides = [1, 1, 1]} : vector<18x16x16xf32> to vector<16x16x16xf32>
    %186 = vector.extract_strided_slice %131 {offsets = [2, 2, 0], sizes = [1, 1, 16], strides = [1, 1, 1]} : vector<3x3x16xf32> to vector<1x1x16xf32>
    %187 = vector.shape_cast %186 : vector<1x1x16xf32> to vector<1x16xf32>
    %188 = vector.shape_cast %187 : vector<1x16xf32> to vector<1x1x16xf32>
    %189 = vector.broadcast %188 : vector<1x1x16xf32> to vector<16x16x16xf32>
    %190 = arith.mulf %185, %189 : vector<16x16x16xf32>
    %191 = arith.addf %178, %184 : vector<16x16x16xf32>
    %192 = arith.addf %191, %190 : vector<16x16x16xf32>
    %c0_31 = arith.constant 0 : index
    %c0_32 = arith.constant 0 : index
    %193 = vector.load %arg9[%c0_31, %c0_32] : memref<1x16xf32, #tpu.memory_space<vmem>>, vector<1x16xf32>
    %194 = vector.shape_cast %193 : vector<1x16xf32> to vector<1x1x16xf32>
    %195 = vector.broadcast %194 : vector<1x1x16xf32> to vector<16x16x16xf32>
    %196 = arith.addf %192, %195 : vector<16x16x16xf32>
    %197 = arith.addf %172, %196 : vector<16x16x16xf32>
    %198 = vector.extract_strided_slice %197 {offsets = [0, 0, 0], sizes = [16, 16, 8], strides = [1, 1, 1]} : vector<16x16x16xf32> to vector<16x16x8xf32>
    %199 = arith.mulf %198, %198 : vector<16x16x8xf32>
    %200 = arith.mulf %198, %199 : vector<16x16x8xf32>
    %cst_33 = arith.constant 4.471500e-02 : f32
    %201 = vector.broadcast %cst_33 : f32 to vector<16x16x8xf32>
    %202 = arith.mulf %201, %200 : vector<16x16x8xf32>
    %203 = arith.addf %198, %202 : vector<16x16x8xf32>
    %cst_34 = arith.constant 0.797884583 : f32
    %204 = vector.broadcast %cst_34 : f32 to vector<16x16x8xf32>
    %205 = arith.mulf %204, %203 : vector<16x16x8xf32>
    %206 = math.tanh %205 : vector<16x16x8xf32>
    %cst_35 = arith.constant 1.000000e+00 : f32
    %207 = vector.broadcast %cst_35 : f32 to vector<16x16x8xf32>
    %208 = arith.addf %207, %206 : vector<16x16x8xf32>
    %cst_36 = arith.constant 5.000000e-01 : f32
    %209 = vector.broadcast %cst_36 : f32 to vector<16x16x8xf32>
    %210 = arith.mulf %209, %208 : vector<16x16x8xf32>
    %211 = arith.mulf %198, %210 : vector<16x16x8xf32>
    %212 = vector.extract_strided_slice %197 {offsets = [0, 0, 8], sizes = [16, 16, 8], strides = [1, 1, 1]} : vector<16x16x16xf32> to vector<16x16x8xf32>
    %213 = arith.mulf %211, %212 : vector<16x16x8xf32>
    %214 = vector.shape_cast %213 : vector<16x16x8xf32> to vector<256x8xf32>
    %215 = arith.truncf %214 : vector<256x8xf32> to vector<256x8xbf16>
    %c0_37 = arith.constant 0 : index
    %c0_38 = arith.constant 0 : index
    %216 = vector.load %arg10[%c0_37, %c0_38] : memref<8x4xbf16, #tpu.memory_space<vmem>>, vector<8x4xbf16>
    %cst_39 = arith.constant dense<0.000000e+00> : vector<256x4xf32>
    %217 = tpu.matmul %215, %216, %cst_39 {dimension_numbers = #tpu.dot_dimension_numbers<[1], [0], [0], [1], [0, 0, 1, 1], [], []>} : vector<256x8xbf16>, vector<8x4xbf16>, vector<256x4xf32> -> vector<256x4xf32>
    %c0_40 = arith.constant 0 : index
    %c0_41 = arith.constant 0 : index
    %218 = vector.load %arg11[%c0_40, %c0_41] : memref<1x4xf32, #tpu.memory_space<vmem>>, vector<1x4xf32>
    %219 = vector.broadcast %218 : vector<1x4xf32> to vector<256x4xf32>
    %220 = arith.addf %217, %219 : vector<256x4xf32>
    %221 = vector.shape_cast %220 : vector<256x4xf32> to vector<16x16x4xf32>
    %c0_42 = arith.constant 0 : index
    %c0_43 = arith.constant 0 : index
    %c0_44 = arith.constant 0 : index
    %c0_45 = arith.constant 0 : index
    %222 = vector.load %arg12[%c0_42, %c0_43, %c0_44, %c0_45] : memref<1x16x16x4xf32, #tpu.memory_space<vmem>>, vector<1x16x16x4xf32>
    %223 = vector.shape_cast %222 : vector<1x16x16x4xf32> to vector<16x16x4xf32>
    %224 = vector.shape_cast %221 : vector<16x16x4xf32> to vector<1x16x16x4xf32>
    tpu.vector_store %arg12[%c0_42, %c0_43, %c0_44, %c0_45], %224 {strides = array<i32>} : memref<1x16x16x4xf32, #tpu.memory_space<vmem>>, vector<1x16x16x4xf32>,
    return
  }
  func.func @transform_0(%arg0: i32, %arg1: i32) -> (i32, i32, i32, i32) {
    %c0_i32 = arith.constant 0 : i32
    %c0_i32_0 = arith.constant 0 : i32
    %c0_i32_1 = arith.constant 0 : i32
    return %arg0, %arg1, %c0_i32, %c0_i32_0 : i32, i32, i32, i32
  }
  func.func @transform_1(%arg0: i32, %arg1: i32) -> (i32, i32, i32, i32) {
    %c8_i32 = arith.constant 8 : i32
    %0 = arith.muli %arg1, %c8_i32 : i32
    %c1_i32 = arith.constant 1 : i32
    %1 = arith.subi %0, %c1_i32 : i32
    %c0_i32 = arith.constant 0 : i32
    %2 = arith.maxsi %1, %c0_i32 : i32
    %c0_i32_0 = arith.constant 0 : i32
    %c0_i32_1 = arith.constant 0 : i32
    %c0_i32_2 = arith.constant 0 : i32
    return %arg0, %2, %c0_i32_0, %c0_i32_1 : i32, i32, i32, i32
  }
  func.func @transform_2(%arg0: i32, %arg1: i32) -> (i32, i32, i32, i32) {
    %c1_i32 = arith.constant 1 : i32
    %0 = arith.addi %arg1, %c1_i32 : i32
    %c8_i32 = arith.constant 8 : i32
    %1 = arith.muli %0, %c8_i32 : i32
    %c7_i32 = arith.constant 7 : i32
    %2 = arith.minsi %1, %c7_i32 : i32
    %c0_i32 = arith.constant 0 : i32
    %c0_i32_0 = arith.constant 0 : i32
    %c0_i32_1 = arith.constant 0 : i32
    return %arg0, %2, %c0_i32, %c0_i32_0 : i32, i32, i32, i32
  }
  func.func @transform_3(%arg0: i32, %arg1: i32) -> (i32, i32) {
    %c0_i32 = arith.constant 0 : i32
    %c0_i32_0 = arith.constant 0 : i32
    %c0_i32_1 = arith.constant 0 : i32
    return %c0_i32, %c0_i32_0 : i32, i32
  }
  func.func @transform_4(%arg0: i32, %arg1: i32) -> (i32, i32) {
    %c0_i32 = arith.constant 0 : i32
    %c0_i32_0 = arith.constant 0 : i32
    %c0_i32_1 = arith.constant 0 : i32
    return %c0_i32, %c0_i32_0 : i32, i32
  }
  func.func @transform_5(%arg0: i32, %arg1: i32) -> (i32, i32) {
    %c0_i32 = arith.constant 0 : i32
    %c0_i32_0 = arith.constant 0 : i32
    %c0_i32_1 = arith.constant 0 : i32
    return %c0_i32, %c0_i32_0 : i32, i32
  }
  func.func @transform_6(%arg0: i32, %arg1: i32) -> (i32, i32, i32) {
    %c0_i32 = arith.constant 0 : i32
    %c0_i32_0 = arith.constant 0 : i32
    %c0_i32_1 = arith.constant 0 : i32
    %c0_i32_2 = arith.constant 0 : i32
    return %c0_i32, %c0_i32_0, %c0_i32_1 : i32, i32, i32
  }
  func.func @transform_7(%arg0: i32, %arg1: i32) -> (i32, i32) {
    %c0_i32 = arith.constant 0 : i32
    %c0_i32_0 = arith.constant 0 : i32
    %c0_i32_1 = arith.constant 0 : i32
    return %c0_i32, %c0_i32_0 : i32, i32
  }
  func.func @transform_8(%arg0: i32, %arg1: i32) -> (i32, i32) {
    %c0_i32 = arith.constant 0 : i32
    %c0_i32_0 = arith.constant 0 : i32
    %c0_i32_1 = arith.constant 0 : i32
    return %c0_i32, %c0_i32_0 : i32, i32
  }
  func.func @transform_9(%arg0: i32, %arg1: i32) -> (i32, i32) {
    %c0_i32 = arith.constant 0 : i32
    %c0_i32_0 = arith.constant 0 : i32
    %c0_i32_1 = arith.constant 0 : i32
    return %c0_i32, %c0_i32_0 : i32, i32
  }
  func.func @transform_10(%arg0: i32, %arg1: i32) -> (i32, i32, i32, i32) {
    %c0_i32 = arith.constant 0 : i32
    %c0_i32_0 = arith.constant 0 : i32
    %c0_i32_1 = arith.constant 0 : i32
    return %arg0, %arg1, %c0_i32, %c0_i32_0 : i32, i32, i32, i32
  }
}

</mosaic_0001>

<llo_original>
// kernel: tpu_custom_call.1
$region0: #{tpu_custom_call.1}
  #allocation0 [shape = 'u32[]', space=smem, size = 0x4, offset = 0x4, fixed_abs, tag = 'smem constant byte address 0x4 - core index']
  #allocation1 [shape = 'u32[144,128]{1,0:T(1,128)}', space=vmem, size = 0x12000, scoped, tag = 'internal scratch']
  %s0 = inlined_call_operand.hbm [shape: s32[8,128], index: 0, kind: input, shape index: {}]
  %s1 = inlined_call_operand.hbm [shape: s32[8,128], index: 1, kind: output, shape index: {}]
  %s2 = sld [smem:[#allocation0]]
  $region18: #{tpu_custom_call.1} parent=0
    _
  %s4 = ssub.s32 1, %s2
  %s5 = scalar_select 0, %s4, %s2
  $region1: #{tpu_custom_call.1} parent=0
    #allocation2 [shape = 'u8[4096]{0}', space=vmem, size = 0x1000, scoped, tag = 'input window, operand 0, single buffered']
    #allocation3 [shape = 's32[1]{0}', space=sflag, size = 0x4, scoped, tag = 'scoped memory for tpu_custom_call.1']
    #allocation4 [shape = 's32[1]{0}', space=sflag, size = 0x4, scoped, tag = 'scoped memory for tpu_custom_call.1']
    #allocation5 [shape = 'u8[4096]{0}', space=vmem, size = 0x1000, scoped, tag = 'output window, operand 0, single buffered']
    %6 = vsyncpa [#allocation3], 0
    %7 = vsyncpa [#allocation4], 0
    // Predicated region
    $region2: #{tpu_custom_call.1} parent=1 // pred_check
      _
    $region3: #{tpu_custom_call.1} parent=1 // pred_check_branch
      %9 = sbr.rel (0) target = $region5
    $region4: #{tpu_custom_call.1} parent=1 // pred_region
      %s11 = ssub.s32 128, 128
      %12 = vsyncadd [#allocation3], %s11
      %s14 = sshll.u32 [#allocation2], 4
      %s15 = int_to_ptr.vmem [resolvable:$true] %s14
      %17 = dma.hbm_to_vmem [thread:$0]  %s0, 128, %s15, [#allocation3]
    $region5: #{tpu_custom_call.1} parent=1 // pred_fallthru
      _
    // Predicated region
    $region6: #{tpu_custom_call.1} parent=1 // pred_check
      _
    $region7: #{tpu_custom_call.1} parent=1 // pred_check_branch
      %19 = sbr.rel (0) target = $region9
    $region8: #{tpu_custom_call.1} parent=1 // pred_region
      %20 = dma.done [#allocation3], 128
    $region9: #{tpu_custom_call.1} parent=1 // pred_fallthru
      _
    %v21 = vld [vmem:[#allocation2] sm:$0xff]
    %v22 = vrot.slane %v21, 7
    %23 = vst [vmem:[#allocation5] sm:$0xff] %v22
    // Predicated region
    $region10: #{tpu_custom_call.1} parent=1 // pred_check
      _
    $region11: #{tpu_custom_call.1} parent=1 // pred_check_branch
      %25 = sbr.rel (0) target = $region13
    $region12: #{tpu_custom_call.1} parent=1 // pred_region
      %s27 = ssub.s32 128, 128
      %28 = vsyncadd [#allocation4], %s27
      %s30 = sshll.u32 [#allocation5], 4
      %s31 = int_to_ptr.vmem [resolvable:$true] %s30
      %33 = dma.vmem_to_hbm [thread:$0]  %s31, 128, %s1, [#allocation4]
    $region13: #{tpu_custom_call.1} parent=1 // pred_fallthru
      _
    // Predicated region
    $region14: #{tpu_custom_call.1} parent=1 // pred_check
      _
    $region15: #{tpu_custom_call.1} parent=1 // pred_check_branch
      %35 = sbr.rel (0) target = $region17
    $region16: #{tpu_custom_call.1} parent=1 // pred_region
      %36 = dma.done [#allocation4], 128
    $region17: #{tpu_custom_call.1} parent=1 // pred_fallthru
      _
    %37 = vsyncpa [#allocation3], 1
    %38 = vsyncpa [#allocation4], 1

// kernel: wffn_forward.1
$region0: #{wffn_forward.1}
  #allocation0 [shape = 'u32[]', space=smem, size = 0x4, offset = 0x4, fixed_abs, tag = 'smem constant byte address 0x4 - core index']
  #allocation1 [shape = 'u32[144,128]{1,0:T(1,128)}', space=vmem, size = 0x12000, scoped, tag = 'internal scratch']
  %s0 = inlined_call_operand.vmem [shape: bf16[2,16,16,4], index: 0, kind: input, shape index: {}, may-alias: {0,1,2}]
  %s1 = inlined_call_operand.vmem [shape: bf16[2,16,16,4], index: 1, kind: input, shape index: {}, may-alias: {0,1,2}]
  %s2 = inlined_call_operand.vmem [shape: bf16[2,16,16,4], index: 2, kind: input, shape index: {}, may-alias: {0,1,2}]
  %s3 = inlined_call_operand.vmem [shape: bf16[4,16], index: 3, kind: input, shape index: {}]
  %s4 = inlined_call_operand.vmem [shape: f32[1,16], index: 4, kind: input, shape index: {}]
  %s5 = inlined_call_operand.vmem [shape: f32[4,16], index: 5, kind: input, shape index: {}]
  %s6 = inlined_call_operand.vmem [shape: f32[3,3,16], index: 6, kind: input, shape index: {}]
  %s7 = inlined_call_operand.vmem [shape: f32[1,16], index: 7, kind: input, shape index: {}]
  %s8 = inlined_call_operand.vmem [shape: bf16[8,4], index: 8, kind: input, shape index: {}]
  %s9 = inlined_call_operand.vmem [shape: f32[1,4], index: 9, kind: input, shape index: {}]
  %s10 = inlined_call_operand.vmem [shape: f32[2,16,16,4], index: 10, kind: output, shape index: {}]
  %s11 = sld [smem:[#allocation0]]
  $region73: #{wffn_forward.1} parent=0
    _
  %s13 = ssub.s32 1, %s11
  %s14 = scalar_select 0, %s13, %s11
  loop: start=0, step=1, limit=4
  $region2: #{wffn_forward.1} parent=0 // loop_pre_header
    _
  $region3: #{wffn_forward.1} parent=0 // loop_header
    %s16 = sphi 0, %s20
    %p17 = scmp.ge.s32.totalorder %s16, 4
    %s23 = sphi 0, %s35
    %s24 = sphi 0, %s31
    %s25 = sphi 0, %s23
    %s26 = sphi 0, %s24
    %s27 = sphi 0, %s25
    %s28 = sphi 0, %s26
    %s40 = sphi 0, %s42
    %s43 = sphi 0, %s40
    %s44 = sphi 0, %s43
    %s60 = sphi 0, %s44
    %s76 = sphi 0, %s78
    %s79 = sphi 0, %s76
    %s80 = sphi 0, %s79
    %s96 = sphi 0, %s80
    %s112 = sphi 0, %s114
    %s115 = sphi 0, %s112
    %s116 = sphi 0, %s115
    %s132 = sphi 0, %s116
    %s136 = sphi 0, %s136
    %s138 = sphi 0, %s136
    %s139 = sphi 0, %s138
    %s153 = sphi 0, %s139
    %s157 = sphi 0, %s157
    %s159 = sphi 0, %s157
    %s160 = sphi 0, %s159
    %s174 = sphi 0, %s160
    %s178 = sphi 0, %s178
    %s180 = sphi 0, %s178
    %s181 = sphi 0, %s180
    %s195 = sphi 0, %s181
    %s199 = sphi 0, %s199
    %s201 = sphi 0, %s199
    %s202 = sphi 0, %s201
    %s216 = sphi 0, %s202
    %s220 = sphi 0, %s220
    %s222 = sphi 0, %s220
    %s223 = sphi 0, %s222
    %s237 = sphi 0, %s223
    %s241 = sphi 0, %s241
    %s243 = sphi 0, %s241
    %s244 = sphi 0, %s243
    %s258 = sphi 0, %s244
    %s262 = sphi 0, %s262
    %s264 = sphi 0, %s262
    %s265 = sphi 0, %s264
    %s279 = sphi 0, %s265
    %s287 = sphi 0, %s289
    %s290 = sphi 0, %s287
    %s291 = sphi 0, %s290
    %s307 = sphi 0, %s291
  $region4: #{wffn_forward.1} parent=0 // loop_header_branch
    %19 = sbr.rel (%p17) target = $region8
  $region5: #{wffn_forward.1} parent=0 // loop_body
    %s21 = ssub.s32 %s16, 1
    %s22 = ssub.s32 %s16, 2
    %s29 = sadd.s32 1, %s24
    %p30 = scmp.ge.s32.totalorder %s29, 1
    %s31 = scalar_select %p30, 0, %s29
    %s32 = sadd.s32 1, %s23
    %s33 = scalar_select %p30, %s32, %s23
    %p34 = scmp.ge.s32.totalorder %s33, 2
    %s35 = scalar_select %p34, 0, %s33
    %s36 = ssub.s32 %s23, %s35
    %s37 = ssub.s32 %s24, %s31
    %s38 = sor.u32 %s36, %s37
    %p39 = scmp.eq.s32.totalorder %s38, 0
    %s41 = sadd.s32 %s40, 1
    %s42 = scalar_select %p39, %s40, %s41
    %p45 = pneg %p39
    %p46 = scmp.eq.s32.totalorder %s16, 1
    %p47 = por %p45, %p46
    %p48 = scmp.ne.s32.totalorder %s40, %s43
    %p49 = scmp.eq.s32.totalorder %s16, 0
    %p50 = por %p48, %p49
    %p51 = scmp.ne.s32.totalorder %s40, %s43
    %p52 = scmp.eq.s32.totalorder %s21, 1
    %p53 = por %p51, %p52
    %p54 = scmp.ne.s32.totalorder %s43, %s44
    %p55 = scmp.eq.s32.totalorder %s21, 0
    %p56 = por %p54, %p55
    %p57 = scmp.ne.s32.totalorder %s43, %s44
    %p58 = scmp.eq.s32.totalorder %s22, 1
    %p59 = por %p57, %p58
    %p61 = scmp.ne.s32.totalorder %s44, %s60
    %p62 = scmp.eq.s32.totalorder %s22, 0
    %p63 = por %p61, %p62
    %s64 = smul.u32 %s24, 8
    %s65 = ssub.s32 %s64, 1
    %p66 = scmp.gt.s32.totalorder %s65, 0
    %s67 = scalar_select %p66, %s65, 0
    %s68 = smul.u32 %s31, 8
    %s69 = ssub.s32 %s68, 1
    %p70 = scmp.gt.s32.totalorder %s69, 0
    %s71 = scalar_select %p70, %s69, 0
    %s72 = ssub.s32 %s23, %s35
    %s73 = ssub.s32 %s67, %s71
    %s74 = sor.u32 %s72, %s73
    %p75 = scmp.eq.s32.totalorder %s74, 0
    %s77 = sadd.s32 %s76, 1
    %s78 = scalar_select %p75, %s76, %s77
    %p81 = pneg %p75
    %p82 = scmp.eq.s32.totalorder %s16, 1
    %p83 = por %p81, %p82
    %p84 = scmp.ne.s32.totalorder %s76, %s79
    %p85 = scmp.eq.s32.totalorder %s16, 0
    %p86 = por %p84, %p85
    %p87 = scmp.ne.s32.totalorder %s76, %s79
    %p88 = scmp.eq.s32.totalorder %s21, 1
    %p89 = por %p87, %p88
    %p90 = scmp.ne.s32.totalorder %s79, %s80
    %p91 = scmp.eq.s32.totalorder %s21, 0
    %p92 = por %p90, %p91
    %p93 = scmp.ne.s32.totalorder %s79, %s80
    %p94 = scmp.eq.s32.totalorder %s22, 1
    %p95 = por %p93, %p94
    %p97 = scmp.ne.s32.totalorder %s80, %s96
    %p98 = scmp.eq.s32.totalorder %s22, 0
    %p99 = por %p97, %p98
    %s100 = sadd.s32 %s24, 1
    %s101 = smul.u32 %s100, 8
    %p102 = scmp.lt.s32.totalorder %s101, 7
    %s103 = scalar_select %p102, %s101, 7
    %s104 = sadd.s32 %s31, 1
    %s105 = smul.u32 %s104, 8
    %p106 = scmp.lt.s32.totalorder %s105, 7
    %s107 = scalar_select %p106, %s105, 7
    %s108 = ssub.s32 %s23, %s35
    %s109 = ssub.s32 %s103, %s107
    %s110 = sor.u32 %s108, %s109
    %p111 = scmp.eq.s32.totalorder %s110, 0
    %s113 = sadd.s32 %s112, 1
    %s114 = scalar_select %p111, %s112, %s113
    %p117 = pneg %p111
    %p118 = scmp.eq.s32.totalorder %s16, 1
    %p119 = por %p117, %p118
    %p120 = scmp.ne.s32.totalorder %s112, %s115
    %p121 = scmp.eq.s32.totalorder %s16, 0
    %p122 = por %p120, %p121
    %p123 = scmp.ne.s32.totalorder %s112, %s115
    %p124 = scmp.eq.s32.totalorder %s21, 1
    %p125 = por %p123, %p124
    %p126 = scmp.ne.s32.totalorder %s115, %s116
    %p127 = scmp.eq.s32.totalorder %s21, 0
    %p128 = por %p126, %p127
    %p129 = scmp.ne.s32.totalorder %s115, %s116
    %p130 = scmp.eq.s32.totalorder %s22, 1
    %p131 = por %p129, %p130
    %p133 = scmp.ne.s32.totalorder %s116, %s132
    %p134 = scmp.eq.s32.totalorder %s22, 0
    %p135 = por %p133, %p134
    %s137 = sadd.s32 %s136, 1
    %p140 = scmp.eq.s32.totalorder %s16, 1
    %p141 = scmp.ne.s32.totalorder %s136, %s138
    %p142 = scmp.eq.s32.totalorder %s16, 0
    %p143 = por %p141, %p142
    %p144 = scmp.ne.s32.totalorder %s136, %s138
    %p145 = scmp.eq.s32.totalorder %s21, 1
    %p146 = por %p144, %p145
    %p147 = scmp.ne.s32.totalorder %s138, %s139
    %p148 = scmp.eq.s32.totalorder %s21, 0
    %p149 = por %p147, %p148
    %p150 = scmp.ne.s32.totalorder %s138, %s139
    %p151 = scmp.eq.s32.totalorder %s22, 1
    %p152 = por %p150, %p151
    %p154 = scmp.ne.s32.totalorder %s139, %s153
    %p155 = scmp.eq.s32.totalorder %s22, 0
    %p156 = por %p154, %p155
    %s158 = sadd.s32 %s157, 1
    %p161 = scmp.eq.s32.totalorder %s16, 1
    %p162 = scmp.ne.s32.totalorder %s157, %s159
    %p163 = scmp.eq.s32.totalorder %s16, 0
    %p164 = por %p162, %p163
    %p165 = scmp.ne.s32.totalorder %s157, %s159
    %p166 = scmp.eq.s32.totalorder %s21, 1
    %p167 = por %p165, %p166
    %p168 = scmp.ne.s32.totalorder %s159, %s160
    %p169 = scmp.eq.s32.totalorder %s21, 0
    %p170 = por %p168, %p169
    %p171 = scmp.ne.s32.totalorder %s159, %s160
    %p172 = scmp.eq.s32.totalorder %s22, 1
    %p173 = por %p171, %p172
    %p175 = scmp.ne.s32.totalorder %s160, %s174
    %p176 = scmp.eq.s32.totalorder %s22, 0
    %p177 = por %p175, %p176
    %s179 = sadd.s32 %s178, 1
    %p182 = scmp.eq.s32.totalorder %s16, 1
    %p183 = scmp.ne.s32.totalorder %s178, %s180
    %p184 = scmp.eq.s32.totalorder %s16, 0
    %p185 = por %p183, %p184
    %p186 = scmp.ne.s32.totalorder %s178, %s180
    %p187 = scmp.eq.s32.totalorder %s21, 1
    %p188 = por %p186, %p187
    %p189 = scmp.ne.s32.totalorder %s180, %s181
    %p190 = scmp.eq.s32.totalorder %s21, 0
    %p191 = por %p189, %p190
    %p192 = scmp.ne.s32.totalorder %s180, %s181
    %p193 = scmp.eq.s32.totalorder %s22, 1
    %p194 = por %p192, %p193
    %p196 = scmp.ne.s32.totalorder %s181, %s195
    %p197 = scmp.eq.s32.totalorder %s22, 0
    %p198 = por %p196, %p197
    %s200 = sadd.s32 %s199, 1
    %p203 = scmp.eq.s32.totalorder %s16, 1
    %p204 = scmp.ne.s32.totalorder %s199, %s201
    %p205 = scmp.eq.s32.totalorder %s16, 0
    %p206 = por %p204, %p205
    %p207 = scmp.ne.s32.totalorder %s199, %s201
    %p208 = scmp.eq.s32.totalorder %s21, 1
    %p209 = por %p207, %p208
    %p210 = scmp.ne.s32.totalorder %s201, %s202
    %p211 = scmp.eq.s32.totalorder %s21, 0
    %p212 = por %p210, %p211
    %p213 = scmp.ne.s32.totalorder %s201, %s202
    %p214 = scmp.eq.s32.totalorder %s22, 1
    %p215 = por %p213, %p214
    %p217 = scmp.ne.s32.totalorder %s202, %s216
    %p218 = scmp.eq.s32.totalorder %s22, 0
    %p219 = por %p217, %p218
    %s221 = sadd.s32 %s220, 1
    %p224 = scmp.eq.s32.totalorder %s16, 1
    %p225 = scmp.ne.s32.totalorder %s220, %s222
    %p226 = scmp.eq.s32.totalorder %s16, 0
    %p227 = por %p225, %p226
    %p228 = scmp.ne.s32.totalorder %s220, %s222
    %p229 = scmp.eq.s32.totalorder %s21, 1
    %p230 = por %p228, %p229
    %p231 = scmp.ne.s32.totalorder %s222, %s223
    %p232 = scmp.eq.s32.totalorder %s21, 0
    %p233 = por %p231, %p232
    %p234 = scmp.ne.s32.totalorder %s222, %s223
    %p235 = scmp.eq.s32.totalorder %s22, 1
    %p236 = por %p234, %p235
    %p238 = scmp.ne.s32.totalorder %s223, %s237
    %p239 = scmp.eq.s32.totalorder %s22, 0
    %p240 = por %p238, %p239
    %s242 = sadd.s32 %s241, 1
    %p245 = scmp.eq.s32.totalorder %s16, 1
    %p246 = scmp.ne.s32.totalorder %s241, %s243
    %p247 = scmp.eq.s32.totalorder %s16, 0
    %p248 = por %p246, %p247
    %p249 = scmp.ne.s32.totalorder %s241, %s243
    %p250 = scmp.eq.s32.totalorder %s21, 1
    %p251 = por %p249, %p250
    %p252 = scmp.ne.s32.totalorder %s243, %s244
    %p253 = scmp.eq.s32.totalorder %s21, 0
    %p254 = por %p252, %p253
    %p255 = scmp.ne.s32.totalorder %s243, %s244
    %p256 = scmp.eq.s32.totalorder %s22, 1
    %p257 = por %p255, %p256
    %p259 = scmp.ne.s32.totalorder %s244, %s258
    %p260 = scmp.eq.s32.totalorder %s22, 0
    %p261 = por %p259, %p260
    %s263 = sadd.s32 %s262, 1
    %p266 = scmp.eq.s32.totalorder %s16, 1
    %p267 = scmp.ne.s32.totalorder %s262, %s264
    %p268 = scmp.eq.s32.totalorder %s16, 0
    %p269 = por %p267, %p268
    %p270 = scmp.ne.s32.totalorder %s262, %s264
    %p271 = scmp.eq.s32.totalorder %s21, 1
    %p272 = por %p270, %p271
    %p273 = scmp.ne.s32.totalorder %s264, %s265
    %p274 = scmp.eq.s32.totalorder %s21, 0
    %p275 = por %p273, %p274
    %p276 = scmp.ne.s32.totalorder %s264, %s265
    %p277 = scmp.eq.s32.totalorder %s22, 1
    %p278 = por %p276, %p277
    %p280 = scmp.ne.s32.totalorder %s265, %s279
    %p281 = scmp.eq.s32.totalorder %s22, 0
    %p282 = por %p280, %p281
    %s283 = ssub.s32 %s23, %s35
    %s284 = ssub.s32 %s24, %s31
    %s285 = sor.u32 %s283, %s284
    %p286 = scmp.eq.s32.totalorder %s285, 0
    %s288 = sadd.s32 %s287, 1
    %s289 = scalar_select %p286, %s287, %s288
    %p292 = pneg %p286
    %p293 = scmp.eq.s32.totalorder %s16, 1
    %p294 = por %p292, %p293
    %p295 = scmp.ne.s32.totalorder %s287, %s290
    %p296 = scmp.eq.s32.totalorder %s16, 0
    %p297 = por %p295, %p296
    %p298 = scmp.ne.s32.totalorder %s287, %s290
    %p299 = scmp.eq.s32.totalorder %s21, 1
    %p300 = por %p298, %p299
    %p301 = scmp.ne.s32.totalorder %s290, %s291
    %p302 = scmp.eq.s32.totalorder %s21, 0
    %p303 = por %p301, %p302
    %p304 = scmp.ne.s32.totalorder %s290, %s291
    %p305 = scmp.eq.s32.totalorder %s22, 1
    %p306 = por %p304, %p305
    %p308 = scmp.ne.s32.totalorder %s291, %s307
    %p309 = scmp.eq.s32.totalorder %s22, 0
    %p310 = por %p308, %p309
    %p311 = scmp.le.s32.totalorder 1, %s16
    %p312 = scmp.lt.s32.totalorder %s16, 3
    %p313 = pnand %p311, %p312
    %p314 = pneg %p313
    // Predicated region
    $region9: #{wffn_forward.1} parent=5 // pred_check
      _
    $region10: #{wffn_forward.1} parent=5 // pred_check_branch
      %316 = sbr.rel (%p313) target = $region12
    $region11: #{wffn_forward.1} parent=5 // pred_region
      %s317 = ssub.s32 %s16, 1
      // Predicated region
      $region13: #{wffn_forward.1} parent=11 // pred_check
        %p318 = pneg %p149
      $region14: #{wffn_forward.1} parent=11 // pred_check_branch
        %320 = sbr.rel (%p318) target = $region16
      $region15: #{wffn_forward.1} parent=11 // pred_region
        _
      $region16: #{wffn_forward.1} parent=11 // pred_fallthru
        _
      // Predicated region
      $region17: #{wffn_forward.1} parent=11 // pred_check
        %p321 = pneg %p170
      $region18: #{wffn_forward.1} parent=11 // pred_check_branch
        %323 = sbr.rel (%p321) target = $region20
      $region19: #{wffn_forward.1} parent=11 // pred_region
        _
      $region20: #{wffn_forward.1} parent=11 // pred_fallthru
        _
      // Predicated region
      $region21: #{wffn_forward.1} parent=11 // pred_check
        %p324 = pneg %p191
      $region22: #{wffn_forward.1} parent=11 // pred_check_branch
        %326 = sbr.rel (%p324) target = $region24
      $region23: #{wffn_forward.1} parent=11 // pred_region
        _
      $region24: #{wffn_forward.1} parent=11 // pred_fallthru
        _
      // Predicated region
      $region25: #{wffn_forward.1} parent=11 // pred_check
        %p327 = pneg %p212
      $region26: #{wffn_forward.1} parent=11 // pred_check_branch
        %329 = sbr.rel (%p327) target = $region28
      $region27: #{wffn_forward.1} parent=11 // pred_region
        _
      $region28: #{wffn_forward.1} parent=11 // pred_fallthru
        _
      // Predicated region
      $region29: #{wffn_forward.1} parent=11 // pred_check
        %p330 = pneg %p233
      $region30: #{wffn_forward.1} parent=11 // pred_check_branch
        %332 = sbr.rel (%p330) target = $region32
      $region31: #{wffn_forward.1} parent=11 // pred_region
        _
      $region32: #{wffn_forward.1} parent=11 // pred_fallthru
        _
      // Predicated region
      $region33: #{wffn_forward.1} parent=11 // pred_check
        %p333 = pneg %p254
      $region34: #{wffn_forward.1} parent=11 // pred_check_branch
        %335 = sbr.rel (%p333) target = $region36
      $region35: #{wffn_forward.1} parent=11 // pred_region
        _
      $region36: #{wffn_forward.1} parent=11 // pred_fallthru
        _
      // Predicated region
      $region37: #{wffn_forward.1} parent=11 // pred_check
        %p336 = pneg %p275
      $region38: #{wffn_forward.1} parent=11 // pred_check_branch
        %338 = sbr.rel (%p336) target = $region40
      $region39: #{wffn_forward.1} parent=11 // pred_region
        _
      $region40: #{wffn_forward.1} parent=11 // pred_fallthru
        _
    $region12: #{wffn_forward.1} parent=5 // pred_fallthru
      _
    %p339 = scmp.lt.s32.totalorder %s16, 2
    // Predicated region
    $region41: #{wffn_forward.1} parent=5 // pred_check
      %p340 = pneg %p339
    $region42: #{wffn_forward.1} parent=5 // pred_check_branch
      %342 = sbr.rel (%p340) target = $region44
    $region43: #{wffn_forward.1} parent=5 // pred_region
      // Predicated region
      $region45: #{wffn_forward.1} parent=43 // pred_check
        %p343 = pneg %p50
      $region46: #{wffn_forward.1} parent=43 // pred_check_branch
        %345 = sbr.rel (%p343) target = $region48
      $region47: #{wffn_forward.1} parent=43 // pred_region
        %s346 = smul.u32 16, %s24
        %p347 = scmp.lt.s32.totalorder %s23, 1
        %s348 = scalar_select %p347, %s23, 1
        %p349 = scmp.lt.s32.totalorder %s346, 15
        %s350 = scalar_select %p349, %s346, 15
        %s351 = smul.addr %s350, 2
        %s352 = smul.addr %s348, 32
        %s353 = sadd.s32 %s351, %s352
        %s354 = smul.addr %s353, 4
        %s355 = scalar_lea.vmem %s0, %s354
        %s356 = smul.u32 16, %s24
      $region48: #{wffn_forward.1} parent=43 // pred_fallthru
        _
      // Predicated region
      $region49: #{wffn_forward.1} parent=43 // pred_check
        %p357 = pneg %p86
      $region50: #{wffn_forward.1} parent=43 // pred_check_branch
        %359 = sbr.rel (%p357) target = $region52
      $region51: #{wffn_forward.1} parent=43 // pred_region
        %s360 = smul.u32 %s24, 8
        %s361 = ssub.s32 %s360, 1
        %p362 = scmp.gt.s32.totalorder %s361, 0
        %s363 = scalar_select %p362, %s361, 0
        %s364 = smul.u32 2, %s363
        %p365 = scmp.lt.s32.totalorder %s23, 1
        %s366 = scalar_select %p365, %s23, 1
        %p367 = scmp.lt.s32.totalorder %s364, 15
        %s368 = scalar_select %p367, %s364, 15
        %s369 = smul.addr %s368, 2
        %s370 = smul.addr %s366, 32
        %s371 = sadd.s32 %s369, %s370
        %s372 = smul.addr %s371, 4
        %s373 = scalar_lea.vmem %s1, %s372
        %s374 = smul.u32 %s24, 8
        %s375 = ssub.s32 %s374, 1
        %p376 = scmp.gt.s32.totalorder %s375, 0
        %s377 = scalar_select %p376, %s375, 0
        %s378 = smul.u32 2, %s377
      $region52: #{wffn_forward.1} parent=43 // pred_fallthru
        _
      // Predicated region
      $region53: #{wffn_forward.1} parent=43 // pred_check
        %p379 = pneg %p122
      $region54: #{wffn_forward.1} parent=43 // pred_check_branch
        %381 = sbr.rel (%p379) target = $region56
      $region55: #{wffn_forward.1} parent=43 // pred_region
        %s382 = sadd.s32 %s24, 1
        %s383 = smul.u32 %s382, 8
        %p384 = scmp.lt.s32.totalorder %s383, 7
        %s385 = scalar_select %p384, %s383, 7
        %s386 = smul.u32 2, %s385
        %p387 = scmp.lt.s32.totalorder %s23, 1
        %s388 = scalar_select %p387, %s23, 1
        %p389 = scmp.lt.s32.totalorder %s386, 15
        %s390 = scalar_select %p389, %s386, 15
        %s391 = smul.addr %s390, 2
        %s392 = smul.addr %s388, 32
        %s393 = sadd.s32 %s391, %s392
        %s394 = smul.addr %s393, 4
        %s395 = scalar_lea.vmem %s2, %s394
        %s396 = sadd.s32 %s24, 1
        %s397 = smul.u32 %s396, 8
        %p398 = scmp.lt.s32.totalorder %s397, 7
        %s399 = scalar_select %p398, %s397, 7
        %s400 = smul.u32 2, %s399
      $region56: #{wffn_forward.1} parent=43 // pred_fallthru
        _
    $region44: #{wffn_forward.1} parent=5 // pred_fallthru
      _
    %p401 = scmp.le.s32.totalorder 1, %s16
    %p402 = scmp.lt.s32.totalorder %s16, 3
    %p403 = pnand %p401, %p402
    %p404 = pneg %p403
    // Predicated region
    $region57: #{wffn_forward.1} parent=5 // pred_check
      _
    $region58: #{wffn_forward.1} parent=5 // pred_check_branch
      %406 = sbr.rel (%p403) target = $region60
    $region59: #{wffn_forward.1} parent=5 // pred_region
      %s407 = ssub.s32 %s16, 1
      %s408 = smul.u32 16, %s26
      %p409 = scmp.lt.s32.totalorder %s25, 1
      %s410 = scalar_select %p409, %s25, 1
      %p411 = scmp.lt.s32.totalorder %s408, 15
      %s412 = scalar_select %p411, %s408, 15
      %s413 = smul.addr %s412, 2
      %s414 = smul.addr %s410, 32
      %s415 = sadd.s32 %s413, %s414
      %s416 = smul.addr %s415, 4
      %s417 = scalar_lea.vmem %s0, %s416
      %p418 = pneg %p56
      %p419 = pneg %p53
      %s420 = smul.u32 %s26, 8
      %s421 = ssub.s32 %s420, 1
      %p422 = scmp.gt.s32.totalorder %s421, 0
      %s423 = scalar_select %p422, %s421, 0
      %s424 = smul.u32 2, %s423
      %p425 = scmp.lt.s32.totalorder %s25, 1
      %s426 = scalar_select %p425, %s25, 1
      %p427 = scmp.lt.s32.totalorder %s424, 15
      %s428 = scalar_select %p427, %s424, 15
      %s429 = smul.addr %s428, 2
      %s430 = smul.addr %s426, 32
      %s431 = sadd.s32 %s429, %s430
      %s432 = smul.addr %s431, 4
      %s433 = scalar_lea.vmem %s1, %s432
      %p434 = pneg %p92
      %p435 = pneg %p89
      %s436 = sadd.s32 %s26, 1
      %s437 = smul.u32 %s436, 8
      %p438 = scmp.lt.s32.totalorder %s437, 7
      %s439 = scalar_select %p438, %s437, 7
      %s440 = smul.u32 2, %s439
      %p441 = scmp.lt.s32.totalorder %s25, 1
      %s442 = scalar_select %p441, %s25, 1
      %p443 = scmp.lt.s32.totalorder %s440, 15
      %s444 = scalar_select %p443, %s440, 15
      %s445 = smul.addr %s444, 2
      %s446 = smul.addr %s442, 32
      %s447 = sadd.s32 %s445, %s446
      %s448 = smul.addr %s447, 4
      %s449 = scalar_lea.vmem %s2, %s448
      %p450 = pneg %p128
      %p451 = pneg %p125
      %p452 = pneg %p149
      %p453 = pneg %p146
      %p454 = pneg %p170
      %p455 = pneg %p167
      %p456 = pneg %p191
      %p457 = pneg %p188
      %p458 = pneg %p212
      %p459 = pneg %p209
      %p460 = pneg %p233
      %p461 = pneg %p230
      %p462 = pneg %p254
      %p463 = pneg %p251
      %p464 = pneg %p275
      %p465 = pneg %p272
      %p466 = pneg %p303
      %p467 = pneg %p300
      %s468 = smul.u32 16, %s26
      %p469 = scmp.lt.s32.totalorder %s25, 1
      %s470 = scalar_select %p469, %s25, 1
      %p471 = scmp.lt.s32.totalorder %s468, 15
      %s472 = scalar_select %p471, %s468, 15
      %s473 = smul.addr %s472, 2
      %s474 = smul.addr %s470, 32
      %s475 = sadd.s32 %s473, %s474
      %s476 = smul.addr %s475, 8
      %s477 = scalar_lea.vmem %s10, %s476
      %s478 = smul.u32 16, %s26
      %p479 = scmp.lt.s32.totalorder %s25, 1
      %s480 = scalar_select %p479, %s25, 1
      %p481 = scmp.lt.s32.totalorder %s478, 15
      %s482 = scalar_select %p481, %s478, 15
      %s483 = smul.addr %s482, 2
      %s484 = smul.addr %s480, 32
      %s485 = sadd.s32 %s483, %s484
      %s486 = smul.addr %s485, 4
      %s487 = scalar_lea.vmem %s0, %s486
      %s488 = smul.u32 16, %s26
      %s489 = smul.u32 %s26, 8
      %s490 = ssub.s32 %s489, 1
      %p491 = scmp.gt.s32.totalorder %s490, 0
      %s492 = scalar_select %p491, %s490, 0
      %s493 = smul.u32 2, %s492
      %p494 = scmp.lt.s32.totalorder %s25, 1
      %s495 = scalar_select %p494, %s25, 1
      %p496 = scmp.lt.s32.totalorder %s493, 15
      %s497 = scalar_select %p496, %s493, 15
      %s498 = smul.addr %s497, 2
      %s499 = smul.addr %s495, 32
      %s500 = sadd.s32 %s498, %s499
      %s501 = smul.addr %s500, 4
      %s502 = scalar_lea.vmem %s1, %s501
      %s503 = smul.u32 %s26, 8
      %s504 = ssub.s32 %s503, 1
      %p505 = scmp.gt.s32.totalorder %s504, 0
      %s506 = scalar_select %p505, %s504, 0
      %s507 = smul.u32 2, %s506
      %s508 = sadd.s32 %s26, 1
      %s509 = smul.u32 %s508, 8
      %p510 = scmp.lt.s32.totalorder %s509, 7
      %s511 = scalar_select %p510, %s509, 7
      %s512 = smul.u32 2, %s511
      %p513 = scmp.lt.s32.totalorder %s25, 1
      %s514 = scalar_select %p513, %s25, 1
      %p515 = scmp.lt.s32.totalorder %s512, 15
      %s516 = scalar_select %p515, %s512, 15
      %s517 = smul.addr %s516, 2
      %s518 = smul.addr %s514, 32
      %s519 = sadd.s32 %s517, %s518
      %s520 = smul.addr %s519, 4
      %s521 = scalar_lea.vmem %s2, %s520
      %s522 = sadd.s32 %s26, 1
      %s523 = smul.u32 %s522, 8
      %p524 = scmp.lt.s32.totalorder %s523, 7
      %s525 = scalar_select %p524, %s523, 7
      %s526 = smul.u32 2, %s525
      %s527 = smul.u32 16, %s26
      %p528 = scmp.lt.s32.totalorder %s25, 1
      %s529 = scalar_select %p528, %s25, 1
      %p530 = scmp.lt.s32.totalorder %s527, 15
      %s531 = scalar_select %p530, %s527, 15
      %s532 = smul.addr %s531, 2
      %s533 = smul.addr %s529, 32
      %s534 = sadd.s32 %s532, %s533
      %s535 = smul.addr %s534, 8
      %s536 = scalar_lea.vmem %s10, %s535
      %s537 = smul.u32 16, %s26
      %v539 = vld [vmem:[%s502] sm:$0xf]
      %v540 = vld [vmem:[%s502 + $0x4] sm:$0xf]
      %v541 = vld [vmem:[%s502 + $0x8] sm:$0xf]
      %v542 = vld [vmem:[%s502 + $0xc] sm:$0xf]
      %v543 = vld [vmem:[%s487] sm:$0xf]
      %v544 = vld [vmem:[%s487 + $0x4] sm:$0xf]
      %v545 = vld [vmem:[%s487 + $0x8] sm:$0xf]
      %v546 = vld [vmem:[%s487 + $0xc] sm:$0xf]
      %v547 = vld [vmem:[%s487 + $0x10] sm:$0xf]
      %v548 = vld [vmem:[%s487 + $0x14] sm:$0xf]
      %v549 = vld [vmem:[%s487 + $0x18] sm:$0xf]
      %v550 = vld [vmem:[%s487 + $0x1c] sm:$0xf]
      %v551 = vld [vmem:[%s487 + $0x20] sm:$0xf]
      %v552 = vld [vmem:[%s487 + $0x24] sm:$0xf]
      %v553 = vld [vmem:[%s487 + $0x28] sm:$0xf]
      %v554 = vld [vmem:[%s487 + $0x2c] sm:$0xf]
      %v555 = vld [vmem:[%s487 + $0x30] sm:$0xf]
      %v556 = vld [vmem:[%s487 + $0x34] sm:$0xf]
      %v557 = vld [vmem:[%s487 + $0x38] sm:$0xf]
      %v558 = vld [vmem:[%s487 + $0x3c] sm:$0xf]
      %v559 = vld [vmem:[%s487 + $0x40] sm:$0xf]
      %v560 = vld [vmem:[%s487 + $0x44] sm:$0xf]
      %v561 = vld [vmem:[%s487 + $0x48] sm:$0xf]
      %v562 = vld [vmem:[%s487 + $0x4c] sm:$0xf]
      %v563 = vld [vmem:[%s487 + $0x50] sm:$0xf]
      %v564 = vld [vmem:[%s487 + $0x54] sm:$0xf]
      %v565 = vld [vmem:[%s487 + $0x58] sm:$0xf]
      %v566 = vld [vmem:[%s487 + $0x5c] sm:$0xf]
      %v567 = vld [vmem:[%s487 + $0x60] sm:$0xf]
      %v568 = vld [vmem:[%s487 + $0x64] sm:$0xf]
      %v569 = vld [vmem:[%s487 + $0x68] sm:$0xf]
      %v570 = vld [vmem:[%s487 + $0x6c] sm:$0xf]
      %v571 = vld [vmem:[%s487 + $0x70] sm:$0xf]
      %v572 = vld [vmem:[%s487 + $0x74] sm:$0xf]
      %v573 = vld [vmem:[%s487 + $0x78] sm:$0xf]
      %v574 = vld [vmem:[%s487 + $0x7c] sm:$0xf]
      %v575 = vld [vmem:[%s521] sm:$0xf]
      %v576 = vld [vmem:[%s521 + $0x4] sm:$0xf]
      %v577 = vld [vmem:[%s521 + $0x8] sm:$0xf]
      %v578 = vld [vmem:[%s521 + $0xc] sm:$0xf]
      %v579 = vld [vmem:[%s3] sm:$0x3]
      %v580 = vld [vmem:[%s4] sm:$0x1]
      %v582 = vlaneseq
      %v583 = vshrl.u32 %v582, 7
      %v584 = vsub.s32 0, %v583
      %v585 = vrot.slane %v580, %v584
      %v627 = vunpack.c.l.b16 %v539
      %v628 = vunpack.c.l.b16 %v540
      %v629 = vunpack.c.l.b16 %v541
      %v630 = vunpack.c.l.b16 %v542
      %v631 = vunpack.c.l.b16 %v543
      %v632 = vunpack.c.l.b16 %v544
      %v633 = vunpack.c.l.b16 %v545
      %v634 = vunpack.c.l.b16 %v546
      %v635 = vunpack.c.l.b16 %v547
      %v636 = vunpack.c.l.b16 %v548
      %v637 = vunpack.c.l.b16 %v549
      %v638 = vunpack.c.l.b16 %v550
      %v639 = vunpack.c.l.b16 %v551
      %v640 = vunpack.c.l.b16 %v552
      %v641 = vunpack.c.l.b16 %v553
      %v642 = vunpack.c.l.b16 %v554
      %v643 = vunpack.c.l.b16 %v555
      %v644 = vunpack.c.l.b16 %v556
      %v645 = vunpack.c.l.b16 %v557
      %v646 = vunpack.c.l.b16 %v558
      %v647 = vunpack.c.l.b16 %v559
      %v648 = vunpack.c.l.b16 %v560
      %v649 = vunpack.c.l.b16 %v561
      %v650 = vunpack.c.l.b16 %v562
      %v651 = vunpack.c.l.b16 %v563
      %v652 = vunpack.c.l.b16 %v564
      %v653 = vunpack.c.l.b16 %v565
      %v654 = vunpack.c.l.b16 %v566
      %v655 = vunpack.c.l.b16 %v567
      %v656 = vunpack.c.l.b16 %v568
      %v657 = vunpack.c.l.b16 %v569
      %v658 = vunpack.c.l.b16 %v570
      %v659 = vunpack.c.l.b16 %v571
      %v660 = vunpack.c.l.b16 %v572
      %v661 = vunpack.c.l.b16 %v573
      %v662 = vunpack.c.l.b16 %v574
      %v663 = vunpack.c.l.b16 %v575
      %v664 = vunpack.c.l.b16 %v576
      %v665 = vunpack.c.l.b16 %v577
      %v666 = vunpack.c.l.b16 %v578
      %v667 = vpack.c.b16 %v628, %v627
      %v668 = vpack.c.b16 %v630, %v629
      %v669 = vpack.c.b16 %v632, %v631
      %v670 = vpack.c.b16 %v634, %v633
      %v671 = vpack.c.b16 %v636, %v635
      %v672 = vpack.c.b16 %v638, %v637
      %v673 = vpack.c.b16 %v640, %v639
      %v674 = vpack.c.b16 %v642, %v641
      %v675 = vpack.c.b16 %v644, %v643
      %v676 = vpack.c.b16 %v646, %v645
      %v677 = vpack.c.b16 %v648, %v647
      %v678 = vpack.c.b16 %v650, %v649
      %v679 = vpack.c.b16 %v652, %v651
      %v680 = vpack.c.b16 %v654, %v653
      %v681 = vpack.c.b16 %v656, %v655
      %v682 = vpack.c.b16 %v658, %v657
      %v683 = vpack.c.b16 %v660, %v659
      %v684 = vpack.c.b16 %v662, %v661
      %v685 = vpack.c.b16 %v664, %v663
      %v686 = vpack.c.b16 %v666, %v665
      %vm687 = vcmask 31744
      %v689 = vsel %vm687, %v667, 0
      %v692 = vsel %vm687, %v668, 0
      %v695 = vsel %vm687, %v669, 0
      %v698 = vsel %vm687, %v670, 0
      %v701 = vsel %vm687, %v671, 0
      %v704 = vsel %vm687, %v672, 0
      %v707 = vsel %vm687, %v673, 0
      %v710 = vsel %vm687, %v674, 0
      %v713 = vsel %vm687, %v675, 0
      %v716 = vsel %vm687, %v676, 0
      %v719 = vsel %vm687, %v677, 0
      %v722 = vsel %vm687, %v678, 0
      %v725 = vsel %vm687, %v679, 0
      %v728 = vsel %vm687, %v680, 0
      %v731 = vsel %vm687, %v681, 0
      %v734 = vsel %vm687, %v682, 0
      %v737 = vsel %vm687, %v683, 0
      %v740 = vsel %vm687, %v684, 0
      %v743 = vsel %vm687, %v685, 0
      %v746 = vsel %vm687, %v686, 0
      %vm748 = vcmask 1041408
      %v750 = vsel %vm748, %v579, 0
      %752 = vmatprep.subr.bf16.mxu0 0
      %753 = vmatpush1.bf16.msra.mxu0 0
      %754 = vmatprep.subr.bf16.mxu0 0
      %755 = vmatpush1.bf16.msra.mxu0 0
      %756 = vmatprep.subr.bf16.mxu0 0
      %757 = vmatpush1.bf16.msra.mxu0 0
      %758 = vmatprep.subr.bf16.mxu0 0
      %759 = vmatpush1.bf16.msra.mxu0 0
      %760 = vmatprep.subr.bf16.mxu0 0
      %761 = vmatpush1.bf16.msra.mxu0 0
      %762 = vmatprep.subr.bf16.mxu0 0
      %763 = vmatpush1.bf16.msra.mxu0 0
      %764 = vmatprep.subr.bf16.mxu0 0
      %765 = vmatpush1.bf16.msra.mxu0 0
      %766 = vmatprep.subr.bf16.mxu0 0
      %767 = vmatpush1.bf16.msra.mxu0 %v750
      %768 = vmatprep.subr.bf16.mxu0 0
      %769 = vmatpush2.bf16.msra.mxu0 0
      %770 = vmatprep.subr.bf16.mxu0 0
      %771 = vmatpush2.bf16.msra.mxu0 0
      %772 = vmatprep.subr.bf16.mxu0 0
      %773 = vmatpush2.bf16.msra.mxu0 0
      %774 = vmatprep.subr.bf16.mxu0 0
      %775 = vmatpush2.bf16.msra.mxu0 0
      %776 = vmatprep.subr.bf16.mxu0 0
      %777 = vmatpush2.bf16.msra.mxu0 0
      %778 = vmatprep.subr.bf16.mxu0 0
      %779 = vmatpush2.bf16.msra.mxu0 0
      %780 = vmatprep.subr.bf16.mxu0 0
      %781 = vmatpush2.bf16.msra.mxu0 0
      %782 = vmatprep.subr.bf16.mxu0 0
      %783 = vmatpush2.bf16.msra.mxu0 0
      %784 = vmatprep.mubr.bf16.mxu0 0
      %785 = vmatmul.mubr.bf16.gmra.mxu0 %v689
      %v786 = vpop.f32.mrf.mxu0
      %v787 = vadd.f32 %v585, %v786
      %v788 = vpop.f32.mrf.mxu0
      %v789 = vpop.f32.mrf.mxu0
      %v790 = vadd.f32 %v585, %v789
      %v791 = vpop.f32.mrf.mxu0
      %792 = vmatprep.mubr.bf16.mxu0 0
      %793 = vmatmul.mubr.bf16.gmra.mxu0 %v692
      %v794 = vpop.f32.mrf.mxu0
      %v795 = vadd.f32 %v585, %v794
      %v796 = vpop.f32.mrf.mxu0
      %v797 = vpop.f32.mrf.mxu0
      %v798 = vadd.f32 %v585, %v797
      %v799 = vpop.f32.mrf.mxu0
      %800 = vmatprep.mubr.bf16.mxu0 0
      %801 = vmatmul.mubr.bf16.gmra.mxu0 %v695
      %v802 = vpop.f32.mrf.mxu0
      %v803 = vadd.f32 %v585, %v802
      %v804 = vpop.f32.mrf.mxu0
      %v805 = vpop.f32.mrf.mxu0
      %v806 = vadd.f32 %v585, %v805
      %v807 = vpop.f32.mrf.mxu0
      %808 = vmatprep.mubr.bf16.mxu0 0
      %809 = vmatmul.mubr.bf16.gmra.mxu0 %v698
      %v810 = vpop.f32.mrf.mxu0
      %v811 = vadd.f32 %v585, %v810
      %v812 = vpop.f32.mrf.mxu0
      %v813 = vpop.f32.mrf.mxu0
      %v814 = vadd.f32 %v585, %v813
      %v815 = vpop.f32.mrf.mxu0
      %816 = vmatprep.mubr.bf16.mxu0 0
      %817 = vmatmul.mubr.bf16.gmra.mxu0 %v701
      %v818 = vpop.f32.mrf.mxu0
      %v819 = vadd.f32 %v585, %v818
      %v820 = vpop.f32.mrf.mxu0
      %v821 = vpop.f32.mrf.mxu0
      %v822 = vadd.f32 %v585, %v821
      %v823 = vpop.f32.mrf.mxu0
      %824 = vmatprep.mubr.bf16.mxu0 0
      %825 = vmatmul.mubr.bf16.gmra.mxu0 %v704
      %v826 = vpop.f32.mrf.mxu0
      %v827 = vadd.f32 %v585, %v826
      %v828 = vpop.f32.mrf.mxu0
      %v829 = vpop.f32.mrf.mxu0
      %v830 = vadd.f32 %v585, %v829
      %v831 = vpop.f32.mrf.mxu0
      %832 = vmatprep.mubr.bf16.mxu0 0
      %833 = vmatmul.mubr.bf16.gmra.mxu0 %v707
      %v834 = vpop.f32.mrf.mxu0
      %v835 = vadd.f32 %v585, %v834
      %v836 = vpop.f32.mrf.mxu0
      %v837 = vpop.f32.mrf.mxu0
      %v838 = vadd.f32 %v585, %v837
      %v839 = vpop.f32.mrf.mxu0
      %840 = vmatprep.mubr.bf16.mxu0 0
      %841 = vmatmul.mubr.bf16.gmra.mxu0 %v710
      %v842 = vpop.f32.mrf.mxu0
      %v843 = vadd.f32 %v585, %v842
      %v844 = vpop.f32.mrf.mxu0
      %v845 = vpop.f32.mrf.mxu0
      %v846 = vadd.f32 %v585, %v845
      %v847 = vpop.f32.mrf.mxu0
      %848 = vmatprep.mubr.bf16.mxu0 0
      %849 = vmatmul.mubr.bf16.gmra.mxu0 %v713
      %v850 = vpop.f32.mrf.mxu0
      %v851 = vadd.f32 %v585, %v850
      %v852 = vpop.f32.mrf.mxu0
      %v853 = vpop.f32.mrf.mxu0
      %v854 = vadd.f32 %v585, %v853
      %v855 = vpop.f32.mrf.mxu0
      %856 = vmatprep.mubr.bf16.mxu0 0
      %857 = vmatmul.mubr.bf16.gmra.mxu0 %v716
      %v858 = vpop.f32.mrf.mxu0
      %v859 = vadd.f32 %v585, %v858
      %v860 = vpop.f32.mrf.mxu0
      %v861 = vpop.f32.mrf.mxu0
      %v862 = vadd.f32 %v585, %v861
      %v863 = vpop.f32.mrf.mxu0
      %864 = vmatprep.mubr.bf16.mxu0 0
      %865 = vmatmul.mubr.bf16.gmra.mxu0 %v719
      %v866 = vpop.f32.mrf.mxu0
      %v867 = vadd.f32 %v585, %v866
      %v868 = vpop.f32.mrf.mxu0
      %v869 = vpop.f32.mrf.mxu0
      %v870 = vadd.f32 %v585, %v869
      %v871 = vpop.f32.mrf.mxu0
      %872 = vmatprep.mubr.bf16.mxu0 0
      %873 = vmatmul.mubr.bf16.gmra.mxu0 %v722
      %v874 = vpop.f32.mrf.mxu0
      %v875 = vadd.f32 %v585, %v874
      %v876 = vpop.f32.mrf.mxu0
      %v877 = vpop.f32.mrf.mxu0
      %v878 = vadd.f32 %v585, %v877
      %v879 = vpop.f32.mrf.mxu0
      %880 = vmatprep.mubr.bf16.mxu0 0
      %881 = vmatmul.mubr.bf16.gmra.mxu0 %v725
      %v882 = vpop.f32.mrf.mxu0
      %v883 = vadd.f32 %v585, %v882
      %v884 = vpop.f32.mrf.mxu0
      %v885 = vpop.f32.mrf.mxu0
      %v886 = vadd.f32 %v585, %v885
      %v887 = vpop.f32.mrf.mxu0
      %888 = vmatprep.mubr.bf16.mxu0 0
      %889 = vmatmul.mubr.bf16.gmra.mxu0 %v728
      %v890 = vpop.f32.mrf.mxu0
      %v891 = vadd.f32 %v585, %v890
      %v892 = vpop.f32.mrf.mxu0
      %v893 = vpop.f32.mrf.mxu0
      %v894 = vadd.f32 %v585, %v893
      %v895 = vpop.f32.mrf.mxu0
      %896 = vmatprep.mubr.bf16.mxu0 0
      %897 = vmatmul.mubr.bf16.gmra.mxu0 %v731
      %v898 = vpop.f32.mrf.mxu0
      %v899 = vadd.f32 %v585, %v898
      %v900 = vpop.f32.mrf.mxu0
      %v901 = vpop.f32.mrf.mxu0
      %v902 = vadd.f32 %v585, %v901
      %v903 = vpop.f32.mrf.mxu0
      %904 = vmatprep.mubr.bf16.mxu0 0
      %905 = vmatmul.mubr.bf16.gmra.mxu0 %v734
      %v906 = vpop.f32.mrf.mxu0
      %v907 = vadd.f32 %v585, %v906
      %v908 = vpop.f32.mrf.mxu0
      %v909 = vpop.f32.mrf.mxu0
      %v910 = vadd.f32 %v585, %v909
      %v911 = vpop.f32.mrf.mxu0
      %912 = vmatprep.mubr.bf16.mxu0 0
      %913 = vmatmul.mubr.bf16.gmra.mxu0 %v737
      %v914 = vpop.f32.mrf.mxu0
      %v915 = vadd.f32 %v585, %v914
      %v916 = vpop.f32.mrf.mxu0
      %v917 = vpop.f32.mrf.mxu0
      %v918 = vadd.f32 %v585, %v917
      %v919 = vpop.f32.mrf.mxu0
      %920 = vmatprep.mubr.bf16.mxu0 0
      %921 = vmatmul.mubr.bf16.gmra.mxu0 %v740
      %v922 = vpop.f32.mrf.mxu0
      %v923 = vadd.f32 %v585, %v922
      %v924 = vpop.f32.mrf.mxu0
      %v925 = vpop.f32.mrf.mxu0
      %v926 = vadd.f32 %v585, %v925
      %v927 = vpop.f32.mrf.mxu0
      %928 = vmatprep.mubr.bf16.mxu0 0
      %929 = vmatmul.mubr.bf16.gmra.mxu0 %v743
      %v930 = vpop.f32.mrf.mxu0
      %v931 = vadd.f32 %v585, %v930
      %v932 = vpop.f32.mrf.mxu0
      %v933 = vpop.f32.mrf.mxu0
      %v934 = vadd.f32 %v585, %v933
      %v935 = vpop.f32.mrf.mxu0
      %936 = vmatprep.mubr.bf16.mxu0 0
      %937 = vmatmul.mubr.bf16.gmra.mxu0 %v746
      %v938 = vpop.f32.mrf.mxu0
      %v939 = vadd.f32 %v585, %v938
      %v940 = vpop.f32.mrf.mxu0
      %v941 = vpop.f32.mrf.mxu0
      %v942 = vadd.f32 %v585, %v941
      %v943 = vpop.f32.mrf.mxu0
      %944 = vdwg.mxu0
      %v945 = vadd.f32 %v787, %v795
      %v946 = vadd.f32 %v790, %v798
      %v947 = vadd.f32 %v803, %v811
      %v948 = vadd.f32 %v806, %v814
      %v949 = vadd.f32 %v819, %v827
      %v950 = vadd.f32 %v822, %v830
      %v951 = vadd.f32 %v835, %v843
      %v952 = vadd.f32 %v838, %v846
      %v953 = vadd.f32 %v851, %v859
      %v954 = vadd.f32 %v854, %v862
      %v955 = vadd.f32 %v867, %v875
      %v956 = vadd.f32 %v870, %v878
      %v957 = vadd.f32 %v883, %v891
      %v958 = vadd.f32 %v886, %v894
      %v959 = vadd.f32 %v899, %v907
      %v960 = vadd.f32 %v902, %v910
      %v961 = vadd.f32 %v915, %v923
      %v962 = vadd.f32 %v918, %v926
      %v963 = vadd.f32 %v931, %v939
      %v964 = vadd.f32 %v934, %v942
      %v965 = vsub.f32 %v787, %v795
      %v966 = vsub.f32 %v790, %v798
      %v967 = vsub.f32 %v803, %v811
      %v968 = vsub.f32 %v806, %v814
      %v969 = vsub.f32 %v819, %v827
      %v970 = vsub.f32 %v822, %v830
      %v971 = vsub.f32 %v835, %v843
      %v972 = vsub.f32 %v838, %v846
      %v973 = vsub.f32 %v851, %v859
      %v974 = vsub.f32 %v854, %v862
      %v975 = vsub.f32 %v867, %v875
      %v976 = vsub.f32 %v870, %v878
      %v977 = vsub.f32 %v883, %v891
      %v978 = vsub.f32 %v886, %v894
      %v979 = vsub.f32 %v899, %v907
      %v980 = vsub.f32 %v902, %v910
      %v981 = vsub.f32 %v915, %v923
      %v982 = vsub.f32 %v918, %v926
      %v983 = vsub.f32 %v931, %v939
      %v984 = vsub.f32 %v934, %v942
      %v985 = vlaneseq
      %v986 = vshrl.u32 %v985, 7
      %v987 = vadd.s32 %v986, 8
      %vm988 = vcmp.lt.s32.totalorder %v986, 0
      %v989 = vsub.s32 0, %v986
      %v990 = vsel %vm988, %v989, %v986
      %v991 = vshrl.u32 %v990, 1
      %v992 = vand.u32 %v990, 1
      %v993 = vsub.s32 0, %v992
      %v994 = vsel %vm988, %v993, %v992
      %vm995 = vcmp.lt.s32.totalorder %v987, 0
      %v996 = vsub.s32 0, %v987
      %v997 = vsel %vm995, %v996, %v987
      %v998 = vshrl.u32 %v997, 1
      %v999 = vand.u32 %v997, 1
      %v1000 = vsub.s32 0, %v999
      %v1001 = vsel %vm995, %v1000, %v999
      %vm1002 = vcmp.ne.s32.totalorder %v994, 0
      %vm1003 = vcmp.ne.s32.totalorder %v1001, 0
      %vm1004 = vcmp.lt.s32.totalorder %v994, 0
      %vm1005 = vcmp.lt.s32.totalorder %v1001, 0
      %vm1006 = vmand %vm1004, %vm1002
      %vm1007 = vmand %vm1005, %vm1003
      %v1008 = vadd.s32 %v994, 2
      %v1009 = vadd.s32 %v1001, 2
      %v1010 = vsel %vm1006, %v1008, %v994
      %v1011 = vsel %vm1007, %v1009, %v1001
      %vm1012 = vcmp.eq.s32.totalorder %v1010, 0
      %vm1013 = vcmp.eq.s32.totalorder %v1011, 0
      %vm1034 = vcmask 1046528
      %v1035 = vrot.slane %v945, 1
      %v1036 = vrot.slane %v946, 1
      %v1037 = vsel %vm1034, %v1035, %v1036
      %v1038 = vrot.slane %v947, 1
      %v1039 = vsel %vm1034, %v1036, %v1038
      %v1040 = vrot.slane %v948, 1
      %v1041 = vsel %vm1034, %v1038, %v1040
      %v1042 = vrot.slane %v949, 1
      %v1043 = vsel %vm1034, %v1040, %v1042
      %v1044 = vrot.slane %v950, 1
      %v1045 = vsel %vm1034, %v1042, %v1044
      %v1046 = vrot.slane %v951, 1
      %v1047 = vsel %vm1034, %v1044, %v1046
      %v1048 = vrot.slane %v952, 1
      %v1049 = vsel %vm1034, %v1046, %v1048
      %v1050 = vrot.slane %v953, 1
      %v1051 = vsel %vm1034, %v1048, %v1050
      %v1052 = vrot.slane %v954, 1
      %v1053 = vsel %vm1034, %v1050, %v1052
      %v1054 = vrot.slane %v955, 1
      %v1055 = vsel %vm1034, %v1052, %v1054
      %v1056 = vrot.slane %v956, 1
      %v1057 = vsel %vm1034, %v1054, %v1056
      %v1058 = vrot.slane %v957, 1
      %v1059 = vsel %vm1034, %v1056, %v1058
      %v1060 = vrot.slane %v958, 1
      %v1061 = vsel %vm1034, %v1058, %v1060
      %v1062 = vrot.slane %v959, 1
      %v1063 = vsel %vm1034, %v1060, %v1062
      %v1064 = vrot.slane %v960, 1
      %v1065 = vsel %vm1034, %v1062, %v1064
      %v1066 = vrot.slane %v961, 1
      %v1067 = vsel %vm1034, %v1064, %v1066
      %v1068 = vrot.slane %v962, 1
      %v1069 = vsel %vm1034, %v1066, %v1068
      %v1070 = vrot.slane %v963, 1
      %v1071 = vsel %vm1034, %v1068, %v1070
      %v1072 = vrot.slane %v964, 1
      %v1073 = vsel %vm1034, %v1070, %v1072
      %v1095 = vsel %vm1034, %v1072, %v1035
      %v1096 = vrot.slane %v964, 7
      %vm1098 = vcmask 1040384
      %v1099 = vrot.slane %v945, 7
      %v1100 = vrot.slane %v946, 7
      %v1101 = vsel %vm1098, %v1099, %v1100
      %v1102 = vrot.slane %v947, 7
      %v1103 = vsel %vm1098, %v1100, %v1102
      %v1104 = vrot.slane %v948, 7
      %v1105 = vsel %vm1098, %v1102, %v1104
      %v1106 = vrot.slane %v949, 7
      %v1107 = vsel %vm1098, %v1104, %v1106
      %v1108 = vrot.slane %v950, 7
      %v1109 = vsel %vm1098, %v1106, %v1108
      %v1110 = vrot.slane %v951, 7
      %v1111 = vsel %vm1098, %v1108, %v1110
      %v1112 = vrot.slane %v952, 7
      %v1113 = vsel %vm1098, %v1110, %v1112
      %v1114 = vrot.slane %v953, 7
      %v1115 = vsel %vm1098, %v1112, %v1114
      %v1116 = vrot.slane %v954, 7
      %v1117 = vsel %vm1098, %v1114, %v1116
      %v1118 = vrot.slane %v955, 7
      %v1119 = vsel %vm1098, %v1116, %v1118
      %v1120 = vrot.slane %v956, 7
      %v1121 = vsel %vm1098, %v1118, %v1120
      %v1122 = vrot.slane %v957, 7
      %v1123 = vsel %vm1098, %v1120, %v1122
      %v1124 = vrot.slane %v958, 7
      %v1125 = vsel %vm1098, %v1122, %v1124
      %v1126 = vrot.slane %v959, 7
      %v1127 = vsel %vm1098, %v1124, %v1126
      %v1128 = vrot.slane %v960, 7
      %v1129 = vsel %vm1098, %v1126, %v1128
      %v1130 = vrot.slane %v961, 7
      %v1131 = vsel %vm1098, %v1128, %v1130
      %v1132 = vrot.slane %v962, 7
      %v1133 = vsel %vm1098, %v1130, %v1132
      %v1134 = vrot.slane %v963, 7
      %v1135 = vsel %vm1098, %v1132, %v1134
      %v1136 = vsel %vm1098, %v1134, %v1096
      %v1157 = vsel %vm1098, %v1096, %v1099
      %v1158 = vsel %vm1012, 1, 0
      %v1159 = vsel %vm1013, 1, 0
      %vm1160 = vcmp.eq.s32.totalorder %v1158, 1
      %vm1161 = vcmp.eq.s32.totalorder %v1159, 1
      %v1162 = vsel %vm1160, %v1037, %v1157
      %v1163 = vsel %vm1161, %v1039, %v1101
      %v1164 = vsel %vm1160, %v1041, %v1103
      %v1165 = vsel %vm1161, %v1043, %v1105
      %v1166 = vsel %vm1160, %v1045, %v1107
      %v1167 = vsel %vm1161, %v1047, %v1109
      %v1168 = vsel %vm1160, %v1049, %v1111
      %v1169 = vsel %vm1161, %v1051, %v1113
      %v1170 = vsel %vm1160, %v1053, %v1115
      %v1171 = vsel %vm1161, %v1055, %v1117
      %v1172 = vsel %vm1160, %v1057, %v1119
      %v1173 = vsel %vm1161, %v1059, %v1121
      %v1174 = vsel %vm1160, %v1061, %v1123
      %v1175 = vsel %vm1161, %v1063, %v1125
      %v1176 = vsel %vm1160, %v1065, %v1127
      %v1177 = vsel %vm1161, %v1067, %v1129
      %v1178 = vsel %vm1160, %v1069, %v1131
      %v1179 = vsel %vm1161, %v1071, %v1133
      %v1180 = vsel %vm1160, %v1073, %v1135
      %v1181 = vsel %vm1161, %v1095, %v1136
      %v1202 = vrot.slane %v965, 1
      %v1203 = vrot.slane %v966, 1
      %v1204 = vsel %vm1034, %v1202, %v1203
      %v1205 = vrot.slane %v967, 1
      %v1206 = vsel %vm1034, %v1203, %v1205
      %v1207 = vrot.slane %v968, 1
      %v1208 = vsel %vm1034, %v1205, %v1207
      %v1209 = vrot.slane %v969, 1
      %v1210 = vsel %vm1034, %v1207, %v1209
      %v1211 = vrot.slane %v970, 1
      %v1212 = vsel %vm1034, %v1209, %v1211
      %v1213 = vrot.slane %v971, 1
      %v1214 = vsel %vm1034, %v1211, %v1213
      %v1215 = vrot.slane %v972, 1
      %v1216 = vsel %vm1034, %v1213, %v1215
      %v1217 = vrot.slane %v973, 1
      %v1218 = vsel %vm1034, %v1215, %v1217
      %v1219 = vrot.slane %v974, 1
      %v1220 = vsel %vm1034, %v1217, %v1219
      %v1221 = vrot.slane %v975, 1
      %v1222 = vsel %vm1034, %v1219, %v1221
      %v1223 = vrot.slane %v976, 1
      %v1224 = vsel %vm1034, %v1221, %v1223
      %v1225 = vrot.slane %v977, 1
      %v1226 = vsel %vm1034, %v1223, %v1225
      %v1227 = vrot.slane %v978, 1
      %v1228 = vsel %vm1034, %v1225, %v1227
      %v1229 = vrot.slane %v979, 1
      %v1230 = vsel %vm1034, %v1227, %v1229
      %v1231 = vrot.slane %v980, 1
      %v1232 = vsel %vm1034, %v1229, %v1231
      %v1233 = vrot.slane %v981, 1
      %v1234 = vsel %vm1034, %v1231, %v1233
      %v1235 = vrot.slane %v982, 1
      %v1236 = vsel %vm1034, %v1233, %v1235
      %v1237 = vrot.slane %v983, 1
      %v1238 = vsel %vm1034, %v1235, %v1237
      %v1239 = vrot.slane %v984, 1
      %v1240 = vsel %vm1034, %v1237, %v1239
      %v1262 = vsel %vm1034, %v1239, %v1202
      %v1263 = vrot.slane %v984, 7
      %v1265 = vrot.slane %v965, 7
      %v1266 = vrot.slane %v966, 7
      %v1267 = vsel %vm1098, %v1265, %v1266
      %v1268 = vrot.slane %v967, 7
      %v1269 = vsel %vm1098, %v1266, %v1268
      %v1270 = vrot.slane %v968, 7
      %v1271 = vsel %vm1098, %v1268, %v1270
      %v1272 = vrot.slane %v969, 7
      %v1273 = vsel %vm1098, %v1270, %v1272
      %v1274 = vrot.slane %v970, 7
      %v1275 = vsel %vm1098, %v1272, %v1274
      %v1276 = vrot.slane %v971, 7
      %v1277 = vsel %vm1098, %v1274, %v1276
      %v1278 = vrot.slane %v972, 7
      %v1279 = vsel %vm1098, %v1276, %v1278
      %v1280 = vrot.slane %v973, 7
      %v1281 = vsel %vm1098, %v1278, %v1280
      %v1282 = vrot.slane %v974, 7
      %v1283 = vsel %vm1098, %v1280, %v1282
      %v1284 = vrot.slane %v975, 7
      %v1285 = vsel %vm1098, %v1282, %v1284
      %v1286 = vrot.slane %v976, 7
      %v1287 = vsel %vm1098, %v1284, %v1286
      %v1288 = vrot.slane %v977, 7
      %v1289 = vsel %vm1098, %v1286, %v1288
      %v1290 = vrot.slane %v978, 7
      %v1291 = vsel %vm1098, %v1288, %v1290
      %v1292 = vrot.slane %v979, 7
      %v1293 = vsel %vm1098, %v1290, %v1292
      %v1294 = vrot.slane %v980, 7
      %v1295 = vsel %vm1098, %v1292, %v1294
      %v1296 = vrot.slane %v981, 7
      %v1297 = vsel %vm1098, %v1294, %v1296
      %v1298 = vrot.slane %v982, 7
      %v1299 = vsel %vm1098, %v1296, %v1298
      %v1300 = vrot.slane %v983, 7
      %v1301 = vsel %vm1098, %v1298, %v1300
      %v1302 = vsel %vm1098, %v1300, %v1263
      %v1323 = vsel %vm1098, %v1263, %v1265
      %v1324 = vsel %vm1160, %v1204, %v1323
      %v1325 = vsel %vm1161, %v1206, %v1267
      %v1326 = vsel %vm1160, %v1208, %v1269
      %v1327 = vsel %vm1161, %v1210, %v1271
      %v1328 = vsel %vm1160, %v1212, %v1273
      %v1329 = vsel %vm1161, %v1214, %v1275
      %v1330 = vsel %vm1160, %v1216, %v1277
      %v1331 = vsel %vm1161, %v1218, %v1279
      %v1332 = vsel %vm1160, %v1220, %v1281
      %v1333 = vsel %vm1161, %v1222, %v1283
      %v1334 = vsel %vm1160, %v1224, %v1285
      %v1335 = vsel %vm1161, %v1226, %v1287
      %v1336 = vsel %vm1160, %v1228, %v1289
      %v1337 = vsel %vm1161, %v1230, %v1291
      %v1338 = vsel %vm1160, %v1232, %v1293
      %v1339 = vsel %vm1161, %v1234, %v1295
      %v1340 = vsel %vm1160, %v1236, %v1297
      %v1341 = vsel %vm1161, %v1238, %v1299
      %v1342 = vsel %vm1160, %v1240, %v1301
      %v1343 = vsel %vm1161, %v1262, %v1302
      %v1344 = vadd.f32 %v945, %v1162
      %v1345 = vadd.f32 %v946, %v1163
      %v1346 = vadd.f32 %v947, %v1164
      %v1347 = vadd.f32 %v948, %v1165
      %v1348 = vadd.f32 %v949, %v1166
      %v1349 = vadd.f32 %v950, %v1167
      %v1350 = vadd.f32 %v951, %v1168
      %v1351 = vadd.f32 %v952, %v1169
      %v1352 = vadd.f32 %v953, %v1170
      %v1353 = vadd.f32 %v954, %v1171
      %v1354 = vadd.f32 %v955, %v1172
      %v1355 = vadd.f32 %v956, %v1173
      %v1356 = vadd.f32 %v957, %v1174
      %v1357 = vadd.f32 %v958, %v1175
      %v1358 = vadd.f32 %v959, %v1176
      %v1359 = vadd.f32 %v960, %v1177
      %v1360 = vadd.f32 %v961, %v1178
      %v1361 = vadd.f32 %v962, %v1179
      %v1362 = vadd.f32 %v963, %v1180
      %v1363 = vadd.f32 %v964, %v1181
      %v1364 = vsub.f32 %v1162, %v945
      %v1365 = vsub.f32 %v1163, %v946
      %v1366 = vsub.f32 %v1164, %v947
      %v1367 = vsub.f32 %v1165, %v948
      %v1368 = vsub.f32 %v1166, %v949
      %v1369 = vsub.f32 %v1167, %v950
      %v1370 = vsub.f32 %v1168, %v951
      %v1371 = vsub.f32 %v1169, %v952
      %v1372 = vsub.f32 %v1170, %v953
      %v1373 = vsub.f32 %v1171, %v954
      %v1374 = vsub.f32 %v1172, %v955
      %v1375 = vsub.f32 %v1173, %v956
      %v1376 = vsub.f32 %v1174, %v957
      %v1377 = vsub.f32 %v1175, %v958
      %v1378 = vsub.f32 %v1176, %v959
      %v1379 = vsub.f32 %v1177, %v960
      %v1380 = vsub.f32 %v1178, %v961
      %v1381 = vsub.f32 %v1179, %v962
      %v1382 = vsub.f32 %v1180, %v963
      %v1383 = vsub.f32 %v1181, %v964
      %v1384 = vadd.f32 %v965, %v1324
      %v1385 = vadd.f32 %v966, %v1325
      %v1386 = vadd.f32 %v967, %v1326
      %v1387 = vadd.f32 %v968, %v1327
      %v1388 = vadd.f32 %v969, %v1328
      %v1389 = vadd.f32 %v970, %v1329
      %v1390 = vadd.f32 %v971, %v1330
      %v1391 = vadd.f32 %v972, %v1331
      %v1392 = vadd.f32 %v973, %v1332
      %v1393 = vadd.f32 %v974, %v1333
      %v1394 = vadd.f32 %v975, %v1334
      %v1395 = vadd.f32 %v976, %v1335
      %v1396 = vadd.f32 %v977, %v1336
      %v1397 = vadd.f32 %v978, %v1337
      %v1398 = vadd.f32 %v979, %v1338
      %v1399 = vadd.f32 %v980, %v1339
      %v1400 = vadd.f32 %v981, %v1340
      %v1401 = vadd.f32 %v982, %v1341
      %v1402 = vadd.f32 %v983, %v1342
      %v1403 = vadd.f32 %v984, %v1343
      %v1404 = vsub.f32 %v1324, %v965
      %v1405 = vsub.f32 %v1325, %v966
      %v1406 = vsub.f32 %v1326, %v967
      %v1407 = vsub.f32 %v1327, %v968
      %v1408 = vsub.f32 %v1328, %v969
      %v1409 = vsub.f32 %v1329, %v970
      %v1410 = vsub.f32 %v1330, %v971
      %v1411 = vsub.f32 %v1331, %v972
      %v1412 = vsub.f32 %v1332, %v973
      %v1413 = vsub.f32 %v1333, %v974
      %v1414 = vsub.f32 %v1334, %v975
      %v1415 = vsub.f32 %v1335, %v976
      %v1416 = vsub.f32 %v1336, %v977
      %v1417 = vsub.f32 %v1337, %v978
      %v1418 = vsub.f32 %v1338, %v979
      %v1419 = vsub.f32 %v1339, %v980
      %v1420 = vsub.f32 %v1340, %v981
      %v1421 = vsub.f32 %v1341, %v982
      %v1422 = vsub.f32 %v1342, %v983
      %v1423 = vsub.f32 %v1343, %v984
      %v1424 = vld [vmem:[%s5] sm:$0xf]
      %v1425 = vlaneseq
      %v1426 = vshrl.u32 %v1425, 7
      %v1427 = vsub.s32 0, %v1426
      %v1428 = vrot.slane %v1424, %v1427
      %v1429 = vmul.f32 %v1344, %v1428
      %v1430 = vmul.f32 %v1345, %v1428
      %v1431 = vmul.f32 %v1346, %v1428
      %v1432 = vmul.f32 %v1347, %v1428
      %v1433 = vmul.f32 %v1348, %v1428
      %v1434 = vmul.f32 %v1349, %v1428
      %v1435 = vmul.f32 %v1350, %v1428
      %v1436 = vmul.f32 %v1351, %v1428
      %v1437 = vmul.f32 %v1352, %v1428
      %v1438 = vmul.f32 %v1353, %v1428
      %v1439 = vmul.f32 %v1354, %v1428
      %v1440 = vmul.f32 %v1355, %v1428
      %v1441 = vmul.f32 %v1356, %v1428
      %v1442 = vmul.f32 %v1357, %v1428
      %v1443 = vmul.f32 %v1358, %v1428
      %v1444 = vmul.f32 %v1359, %v1428
      %v1445 = vmul.f32 %v1360, %v1428
      %v1446 = vmul.f32 %v1361, %v1428
      %v1447 = vmul.f32 %v1362, %v1428
      %v1448 = vmul.f32 %v1363, %v1428
      %v1449 = vlaneseq
      %v1450 = vshrl.u32 %v1449, 7
      %v1451 = vsub.s32 1, %v1450
      %v1452 = vrot.slane %v1424, %v1451
      %v1453 = vmul.f32 %v1364, %v1452
      %v1454 = vmul.f32 %v1365, %v1452
      %v1455 = vmul.f32 %v1366, %v1452
      %v1456 = vmul.f32 %v1367, %v1452
      %v1457 = vmul.f32 %v1368, %v1452
      %v1458 = vmul.f32 %v1369, %v1452
      %v1459 = vmul.f32 %v1370, %v1452
      %v1460 = vmul.f32 %v1371, %v1452
      %v1461 = vmul.f32 %v1372, %v1452
      %v1462 = vmul.f32 %v1373, %v1452
      %v1463 = vmul.f32 %v1374, %v1452
      %v1464 = vmul.f32 %v1375, %v1452
      %v1465 = vmul.f32 %v1376, %v1452
      %v1466 = vmul.f32 %v1377, %v1452
      %v1467 = vmul.f32 %v1378, %v1452
      %v1468 = vmul.f32 %v1379, %v1452
      %v1469 = vmul.f32 %v1380, %v1452
      %v1470 = vmul.f32 %v1381, %v1452
      %v1471 = vmul.f32 %v1382, %v1452
      %v1472 = vmul.f32 %v1383, %v1452
      %v1473 = vsub.f32 %v1429, %v1453
      %v1474 = vsub.f32 %v1430, %v1454
      %v1475 = vsub.f32 %v1431, %v1455
      %v1476 = vsub.f32 %v1432, %v1456
      %v1477 = vsub.f32 %v1433, %v1457
      %v1478 = vsub.f32 %v1434, %v1458
      %v1479 = vsub.f32 %v1435, %v1459
      %v1480 = vsub.f32 %v1436, %v1460
      %v1481 = vsub.f32 %v1437, %v1461
      %v1482 = vsub.f32 %v1438, %v1462
      %v1483 = vsub.f32 %v1439, %v1463
      %v1484 = vsub.f32 %v1440, %v1464
      %v1485 = vsub.f32 %v1441, %v1465
      %v1486 = vsub.f32 %v1442, %v1466
      %v1487 = vsub.f32 %v1443, %v1467
      %v1488 = vsub.f32 %v1444, %v1468
      %v1489 = vsub.f32 %v1445, %v1469
      %v1490 = vsub.f32 %v1446, %v1470
      %v1491 = vsub.f32 %v1447, %v1471
      %v1492 = vsub.f32 %v1448, %v1472
      %v1493 = vlaneseq
      %v1494 = vshrl.u32 %v1493, 7
      %v1495 = vsub.s32 2, %v1494
      %v1496 = vrot.slane %v1424, %v1495
      %v1497 = vmul.f32 %v1384, %v1496
      %v1498 = vmul.f32 %v1385, %v1496
      %v1499 = vmul.f32 %v1386, %v1496
      %v1500 = vmul.f32 %v1387, %v1496
      %v1501 = vmul.f32 %v1388, %v1496
      %v1502 = vmul.f32 %v1389, %v1496
      %v1503 = vmul.f32 %v1390, %v1496
      %v1504 = vmul.f32 %v1391, %v1496
      %v1505 = vmul.f32 %v1392, %v1496
      %v1506 = vmul.f32 %v1393, %v1496
      %v1507 = vmul.f32 %v1394, %v1496
      %v1508 = vmul.f32 %v1395, %v1496
      %v1509 = vmul.f32 %v1396, %v1496
      %v1510 = vmul.f32 %v1397, %v1496
      %v1511 = vmul.f32 %v1398, %v1496
      %v1512 = vmul.f32 %v1399, %v1496
      %v1513 = vmul.f32 %v1400, %v1496
      %v1514 = vmul.f32 %v1401, %v1496
      %v1515 = vmul.f32 %v1402, %v1496
      %v1516 = vmul.f32 %v1403, %v1496
      %v1517 = vlaneseq
      %v1518 = vshrl.u32 %v1517, 7
      %v1519 = vsub.s32 3, %v1518
      %v1520 = vrot.slane %v1424, %v1519
      %v1521 = vmul.f32 %v1404, %v1520
      %v1522 = vmul.f32 %v1405, %v1520
      %v1523 = vmul.f32 %v1406, %v1520
      %v1524 = vmul.f32 %v1407, %v1520
      %v1525 = vmul.f32 %v1408, %v1520
      %v1526 = vmul.f32 %v1409, %v1520
      %v1527 = vmul.f32 %v1410, %v1520
      %v1528 = vmul.f32 %v1411, %v1520
      %v1529 = vmul.f32 %v1412, %v1520
      %v1530 = vmul.f32 %v1413, %v1520
      %v1531 = vmul.f32 %v1414, %v1520
      %v1532 = vmul.f32 %v1415, %v1520
      %v1533 = vmul.f32 %v1416, %v1520
      %v1534 = vmul.f32 %v1417, %v1520
      %v1535 = vmul.f32 %v1418, %v1520
      %v1536 = vmul.f32 %v1419, %v1520
      %v1537 = vmul.f32 %v1420, %v1520
      %v1538 = vmul.f32 %v1421, %v1520
      %v1539 = vmul.f32 %v1422, %v1520
      %v1540 = vmul.f32 %v1423, %v1520
      %v1541 = vsub.f32 %v1497, %v1521
      %v1542 = vsub.f32 %v1498, %v1522
      %v1543 = vsub.f32 %v1499, %v1523
      %v1544 = vsub.f32 %v1500, %v1524
      %v1545 = vsub.f32 %v1501, %v1525
      %v1546 = vsub.f32 %v1502, %v1526
      %v1547 = vsub.f32 %v1503, %v1527
      %v1548 = vsub.f32 %v1504, %v1528
      %v1549 = vsub.f32 %v1505, %v1529
      %v1550 = vsub.f32 %v1506, %v1530
      %v1551 = vsub.f32 %v1507, %v1531
      %v1552 = vsub.f32 %v1508, %v1532
      %v1553 = vsub.f32 %v1509, %v1533
      %v1554 = vsub.f32 %v1510, %v1534
      %v1555 = vsub.f32 %v1511, %v1535
      %v1556 = vsub.f32 %v1512, %v1536
      %v1557 = vsub.f32 %v1513, %v1537
      %v1558 = vsub.f32 %v1514, %v1538
      %v1559 = vsub.f32 %v1515, %v1539
      %v1560 = vsub.f32 %v1516, %v1540
      %v1561 = vadd.f32 %v1475, %v1543
      %v1562 = vadd.f32 %v1476, %v1544
      %v1563 = vadd.f32 %v1477, %v1545
      %v1564 = vadd.f32 %v1478, %v1546
      %v1565 = vadd.f32 %v1479, %v1547
      %v1566 = vadd.f32 %v1480, %v1548
      %v1567 = vadd.f32 %v1481, %v1549
      %v1568 = vadd.f32 %v1482, %v1550
      %v1569 = vadd.f32 %v1483, %v1551
      %v1570 = vadd.f32 %v1484, %v1552
      %v1571 = vadd.f32 %v1485, %v1553
      %v1572 = vadd.f32 %v1486, %v1554
      %v1573 = vadd.f32 %v1487, %v1555
      %v1574 = vadd.f32 %v1488, %v1556
      %v1575 = vadd.f32 %v1489, %v1557
      %v1576 = vadd.f32 %v1490, %v1558
      %v1577 = vadd.f32 %v1491, %v1559
      %v1578 = vadd.f32 %v1492, %v1560
      %v1579 = vsub.f32 %v1473, %v1541
      %v1580 = vsub.f32 %v1474, %v1542
      %v1581 = vsub.f32 %v1475, %v1543
      %v1582 = vsub.f32 %v1476, %v1544
      %v1583 = vsub.f32 %v1477, %v1545
      %v1584 = vsub.f32 %v1478, %v1546
      %v1585 = vsub.f32 %v1479, %v1547
      %v1586 = vsub.f32 %v1480, %v1548
      %v1587 = vsub.f32 %v1481, %v1549
      %v1588 = vsub.f32 %v1482, %v1550
      %v1589 = vsub.f32 %v1483, %v1551
      %v1590 = vsub.f32 %v1484, %v1552
      %v1591 = vsub.f32 %v1485, %v1553
      %v1592 = vsub.f32 %v1486, %v1554
      %v1593 = vsub.f32 %v1487, %v1555
      %v1594 = vsub.f32 %v1488, %v1556
      %v1595 = vsub.f32 %v1489, %v1557
      %v1596 = vsub.f32 %v1490, %v1558
      %p1597 = scmp.gt.s32.totalorder %s26, 0
      %s1598 = scalar_select %p1597, 1, 0
      %v1599 = vstv %s1598
      %vm1600 = vcmp.eq.s32.totalorder %v1599, 1
      %v1601 = vsel %vm1600, %v1579, 0.0
      %v1602 = vsel %vm1600, %v1580, 0.0
      %p1603 = scmp.lt.s32.totalorder %s26, 0
      %s1604 = scalar_select %p1603, 1, 0
      %v1605 = vstv %s1604
      %vm1606 = vcmp.eq.s32.totalorder %v1605, 1
      %v1607 = vsel %vm1606, %v1577, 0.0
      %v1608 = vsel %vm1606, %v1578, 0.0
      %vm1609 = vcmp.gt.s32.totalorder %v986, 0
      %vm1610 = vcmp.gt.s32.totalorder %v987, 0
      %v1612 = vrot.slane %v1608, 7
      %v1649 = vrot.slane %v1601, 7
      %v1650 = vrot.slane %v1602, 7
      %v1651 = vsel %vm1098, %v1649, %v1650
      %v1652 = vrot.slane %v1561, 7
      %v1653 = vsel %vm1098, %v1650, %v1652
      %v1654 = vrot.slane %v1562, 7
      %v1655 = vsel %vm1098, %v1652, %v1654
      %v1656 = vrot.slane %v1581, 7
      %v1657 = vsel %vm1098, %v1654, %v1656
      %v1658 = vrot.slane %v1582, 7
      %v1659 = vsel %vm1098, %v1656, %v1658
      %v1660 = vrot.slane %v1563, 7
      %v1661 = vsel %vm1098, %v1658, %v1660
      %v1662 = vrot.slane %v1564, 7
      %v1663 = vsel %vm1098, %v1660, %v1662
      %v1664 = vrot.slane %v1583, 7
      %v1665 = vsel %vm1098, %v1662, %v1664
      %v1666 = vrot.slane %v1584, 7
      %v1667 = vsel %vm1098, %v1664, %v1666
      %v1668 = vrot.slane %v1565, 7
      %v1669 = vsel %vm1098, %v1666, %v1668
      %v1670 = vrot.slane %v1566, 7
      %v1671 = vsel %vm1098, %v1668, %v1670
      %v1672 = vrot.slane %v1585, 7
      %v1673 = vsel %vm1098, %v1670, %v1672
      %v1674 = vrot.slane %v1586, 7
      %v1675 = vsel %vm1098, %v1672, %v1674
      %v1676 = vrot.slane %v1567, 7
      %v1677 = vsel %vm1098, %v1674, %v1676
      %v1678 = vrot.slane %v1568, 7
      %v1679 = vsel %vm1098, %v1676, %v1678
      %v1680 = vrot.slane %v1587, 7
      %v1681 = vsel %vm1098, %v1678, %v1680
      %v1682 = vrot.slane %v1588, 7
      %v1683 = vsel %vm1098, %v1680, %v1682
      %v1684 = vrot.slane %v1569, 7
      %v1685 = vsel %vm1098, %v1682, %v1684
      %v1686 = vrot.slane %v1570, 7
      %v1687 = vsel %vm1098, %v1684, %v1686
      %v1688 = vrot.slane %v1589, 7
      %v1689 = vsel %vm1098, %v1686, %v1688
      %v1690 = vrot.slane %v1590, 7
      %v1691 = vsel %vm1098, %v1688, %v1690
      %v1692 = vrot.slane %v1571, 7
      %v1693 = vsel %vm1098, %v1690, %v1692
      %v1694 = vrot.slane %v1572, 7
      %v1695 = vsel %vm1098, %v1692, %v1694
      %v1696 = vrot.slane %v1591, 7
      %v1697 = vsel %vm1098, %v1694, %v1696
      %v1698 = vrot.slane %v1592, 7
      %v1699 = vsel %vm1098, %v1696, %v1698
      %v1700 = vrot.slane %v1573, 7
      %v1701 = vsel %vm1098, %v1698, %v1700
      %v1702 = vrot.slane %v1574, 7
      %v1703 = vsel %vm1098, %v1700, %v1702
      %v1704 = vrot.slane %v1593, 7
      %v1705 = vsel %vm1098, %v1702, %v1704
      %v1706 = vrot.slane %v1594, 7
      %v1707 = vsel %vm1098, %v1704, %v1706
      %v1708 = vrot.slane %v1575, 7
      %v1709 = vsel %vm1098, %v1706, %v1708
      %v1710 = vrot.slane %v1576, 7
      %v1711 = vsel %vm1098, %v1708, %v1710
      %v1712 = vrot.slane %v1595, 7
      %v1713 = vsel %vm1098, %v1710, %v1712
      %v1714 = vrot.slane %v1596, 7
      %v1715 = vsel %vm1098, %v1712, %v1714
      %v1716 = vrot.slane %v1607, 7
      %v1717 = vsel %vm1098, %v1714, %v1716
      %v1718 = vsel %vm1098, %v1716, %v1612
      %v1755 = vsel %vm1098, %v1612, %v1649
      %v1756 = vsel %vm1609, 1, 0
      %v1757 = vsel %vm1610, 1, 0
      %vm1758 = vcmp.eq.s32.totalorder %v1756, 1
      %vm1759 = vcmp.eq.s32.totalorder %v1757, 1
      %v1760 = vsel %vm1758, %v1755, 0.0
      %v1761 = vsel %vm1759, %v1651, 0.0
      %v1762 = vsel %vm1758, %v1653, 0.0
      %v1763 = vsel %vm1759, %v1655, 0.0
      %v1764 = vsel %vm1758, %v1657, 0.0
      %v1765 = vsel %vm1759, %v1659, 0.0
      %v1766 = vsel %vm1758, %v1661, 0.0
      %v1767 = vsel %vm1759, %v1663, 0.0
      %v1768 = vsel %vm1758, %v1665, 0.0
      %v1769 = vsel %vm1759, %v1667, 0.0
      %v1770 = vsel %vm1758, %v1669, 0.0
      %v1771 = vsel %vm1759, %v1671, 0.0
      %v1772 = vsel %vm1758, %v1673, 0.0
      %v1773 = vsel %vm1759, %v1675, 0.0
      %v1774 = vsel %vm1758, %v1677, 0.0
      %v1775 = vsel %vm1759, %v1679, 0.0
      %v1776 = vsel %vm1758, %v1681, 0.0
      %v1777 = vsel %vm1759, %v1683, 0.0
      %v1778 = vsel %vm1758, %v1685, 0.0
      %v1779 = vsel %vm1759, %v1687, 0.0
      %v1780 = vsel %vm1758, %v1689, 0.0
      %v1781 = vsel %vm1759, %v1691, 0.0
      %v1782 = vsel %vm1758, %v1693, 0.0
      %v1783 = vsel %vm1759, %v1695, 0.0
      %v1784 = vsel %vm1758, %v1697, 0.0
      %v1785 = vsel %vm1759, %v1699, 0.0
      %v1786 = vsel %vm1758, %v1701, 0.0
      %v1787 = vsel %vm1759, %v1703, 0.0
      %v1788 = vsel %vm1758, %v1705, 0.0
      %v1789 = vsel %vm1759, %v1707, 0.0
      %v1790 = vsel %vm1758, %v1709, 0.0
      %v1791 = vsel %vm1759, %v1711, 0.0
      %v1792 = vsel %vm1758, %v1713, 0.0
      %v1793 = vsel %vm1759, %v1715, 0.0
      %v1794 = vsel %vm1758, %v1717, 0.0
      %v1795 = vsel %vm1759, %v1718, 0.0
      %vm1796 = vcmp.lt.s32.totalorder %v986, 15
      %vm1797 = vcmp.lt.s32.totalorder %v987, 15
      %v1798 = vrot.slane %v1601, 1
      %v1799 = vrot.slane %v1602, 1
      %v1800 = vsel %vm1034, %v1798, %v1799
      %v1801 = vrot.slane %v1561, 1
      %v1802 = vsel %vm1034, %v1799, %v1801
      %v1803 = vrot.slane %v1562, 1
      %v1804 = vsel %vm1034, %v1801, %v1803
      %v1805 = vrot.slane %v1581, 1
      %v1806 = vsel %vm1034, %v1803, %v1805
      %v1807 = vrot.slane %v1582, 1
      %v1808 = vsel %vm1034, %v1805, %v1807
      %v1809 = vrot.slane %v1563, 1
      %v1810 = vsel %vm1034, %v1807, %v1809
      %v1811 = vrot.slane %v1564, 1
      %v1812 = vsel %vm1034, %v1809, %v1811
      %v1813 = vrot.slane %v1583, 1
      %v1814 = vsel %vm1034, %v1811, %v1813
      %v1815 = vrot.slane %v1584, 1
      %v1816 = vsel %vm1034, %v1813, %v1815
      %v1817 = vrot.slane %v1565, 1
      %v1818 = vsel %vm1034, %v1815, %v1817
      %v1819 = vrot.slane %v1566, 1
      %v1820 = vsel %vm1034, %v1817, %v1819
      %v1821 = vrot.slane %v1585, 1
      %v1822 = vsel %vm1034, %v1819, %v1821
      %v1823 = vrot.slane %v1586, 1
      %v1824 = vsel %vm1034, %v1821, %v1823
      %v1825 = vrot.slane %v1567, 1
      %v1826 = vsel %vm1034, %v1823, %v1825
      %v1827 = vrot.slane %v1568, 1
      %v1828 = vsel %vm1034, %v1825, %v1827
      %v1829 = vrot.slane %v1587, 1
      %v1830 = vsel %vm1034, %v1827, %v1829
      %v1831 = vrot.slane %v1588, 1
      %v1832 = vsel %vm1034, %v1829, %v1831
      %v1833 = vrot.slane %v1569, 1
      %v1834 = vsel %vm1034, %v1831, %v1833
      %v1835 = vrot.slane %v1570, 1
      %v1836 = vsel %vm1034, %v1833, %v1835
      %v1837 = vrot.slane %v1589, 1
      %v1838 = vsel %vm1034, %v1835, %v1837
      %v1839 = vrot.slane %v1590, 1
      %v1840 = vsel %vm1034, %v1837, %v1839
      %v1841 = vrot.slane %v1571, 1
      %v1842 = vsel %vm1034, %v1839, %v1841
      %v1843 = vrot.slane %v1572, 1
      %v1844 = vsel %vm1034, %v1841, %v1843
      %v1845 = vrot.slane %v1591, 1
      %v1846 = vsel %vm1034, %v1843, %v1845
      %v1847 = vrot.slane %v1592, 1
      %v1848 = vsel %vm1034, %v1845, %v1847
      %v1849 = vrot.slane %v1573, 1
      %v1850 = vsel %vm1034, %v1847, %v1849
      %v1851 = vrot.slane %v1574, 1
      %v1852 = vsel %vm1034, %v1849, %v1851
      %v1853 = vrot.slane %v1593, 1
      %v1854 = vsel %vm1034, %v1851, %v1853
      %v1855 = vrot.slane %v1594, 1
      %v1856 = vsel %vm1034, %v1853, %v1855
      %v1857 = vrot.slane %v1575, 1
      %v1858 = vsel %vm1034, %v1855, %v1857
      %v1859 = vrot.slane %v1576, 1
      %v1860 = vsel %vm1034, %v1857, %v1859
      %v1861 = vrot.slane %v1595, 1
      %v1862 = vsel %vm1034, %v1859, %v1861
      %v1863 = vrot.slane %v1596, 1
      %v1864 = vsel %vm1034, %v1861, %v1863
      %v1865 = vrot.slane %v1607, 1
      %v1866 = vsel %vm1034, %v1863, %v1865
      %v1867 = vrot.slane %v1608, 1
      %v1868 = vsel %vm1034, %v1865, %v1867
      %v1906 = vsel %vm1034, %v1867, %v1798
      %v1907 = vsel %vm1796, 1, 0
      %v1908 = vsel %vm1797, 1, 0
      %vm1909 = vcmp.eq.s32.totalorder %v1907, 1
      %vm1910 = vcmp.eq.s32.totalorder %v1908, 1
      %v1911 = vsel %vm1909, %v1800, 0.0
      %v1912 = vsel %vm1910, %v1802, 0.0
      %v1913 = vsel %vm1909, %v1804, 0.0
      %v1914 = vsel %vm1910, %v1806, 0.0
      %v1915 = vsel %vm1909, %v1808, 0.0
      %v1916 = vsel %vm1910, %v1810, 0.0
      %v1917 = vsel %vm1909, %v1812, 0.0
      %v1918 = vsel %vm1910, %v1814, 0.0
      %v1919 = vsel %vm1909, %v1816, 0.0
      %v1920 = vsel %vm1910, %v1818, 0.0
      %v1921 = vsel %vm1909, %v1820, 0.0
      %v1922 = vsel %vm1910, %v1822, 0.0
      %v1923 = vsel %vm1909, %v1824, 0.0
      %v1924 = vsel %vm1910, %v1826, 0.0
      %v1925 = vsel %vm1909, %v1828, 0.0
      %v1926 = vsel %vm1910, %v1830, 0.0
      %v1927 = vsel %vm1909, %v1832, 0.0
      %v1928 = vsel %vm1910, %v1834, 0.0
      %v1929 = vsel %vm1909, %v1836, 0.0
      %v1930 = vsel %vm1910, %v1838, 0.0
      %v1931 = vsel %vm1909, %v1840, 0.0
      %v1932 = vsel %vm1910, %v1842, 0.0
      %v1933 = vsel %vm1909, %v1844, 0.0
      %v1934 = vsel %vm1910, %v1846, 0.0
      %v1935 = vsel %vm1909, %v1848, 0.0
      %v1936 = vsel %vm1910, %v1850, 0.0
      %v1937 = vsel %vm1909, %v1852, 0.0
      %v1938 = vsel %vm1910, %v1854, 0.0
      %v1939 = vsel %vm1909, %v1856, 0.0
      %v1940 = vsel %vm1910, %v1858, 0.0
      %v1941 = vsel %vm1909, %v1860, 0.0
      %v1942 = vsel %vm1910, %v1862, 0.0
      %v1943 = vsel %vm1909, %v1864, 0.0
      %v1944 = vsel %vm1910, %v1866, 0.0
      %v1945 = vsel %vm1909, %v1868, 0.0
      %v1946 = vsel %vm1910, %v1906, 0.0
      %v1947 = vld [vmem:[%s6] sm:$0x7]
      %v1948 = vld [vmem:[%s6 + $0x4] sm:$0x7]
      %v1949 = vld [vmem:[%s6 + $0x8] sm:$0x7]
      %v1950 = vlaneseq
      %v1951 = vshrl.u32 %v1950, 7
      %v1952 = vsub.s32 0, %v1951
      %v1953 = vrot.slane %v1947, %v1952
      %v1954 = vmul.f32 %v1760, %v1953
      %v1955 = vmul.f32 %v1761, %v1953
      %v1956 = vmul.f32 %v1762, %v1953
      %v1957 = vmul.f32 %v1763, %v1953
      %v1958 = vmul.f32 %v1764, %v1953
      %v1959 = vmul.f32 %v1765, %v1953
      %v1960 = vmul.f32 %v1766, %v1953
      %v1961 = vmul.f32 %v1767, %v1953
      %v1962 = vmul.f32 %v1768, %v1953
      %v1963 = vmul.f32 %v1769, %v1953
      %v1964 = vmul.f32 %v1770, %v1953
      %v1965 = vmul.f32 %v1771, %v1953
      %v1966 = vmul.f32 %v1772, %v1953
      %v1967 = vmul.f32 %v1773, %v1953
      %v1968 = vmul.f32 %v1774, %v1953
      %v1969 = vmul.f32 %v1775, %v1953
      %v1970 = vmul.f32 %v1776, %v1953
      %v1971 = vmul.f32 %v1777, %v1953
      %v1972 = vmul.f32 %v1778, %v1953
      %v1973 = vmul.f32 %v1779, %v1953
      %v1974 = vmul.f32 %v1780, %v1953
      %v1975 = vmul.f32 %v1781, %v1953
      %v1976 = vmul.f32 %v1782, %v1953
      %v1977 = vmul.f32 %v1783, %v1953
      %v1978 = vmul.f32 %v1784, %v1953
      %v1979 = vmul.f32 %v1785, %v1953
      %v1980 = vmul.f32 %v1786, %v1953
      %v1981 = vmul.f32 %v1787, %v1953
      %v1982 = vmul.f32 %v1788, %v1953
      %v1983 = vmul.f32 %v1789, %v1953
      %v1984 = vmul.f32 %v1790, %v1953
      %v1985 = vmul.f32 %v1791, %v1953
      %v1986 = vlaneseq
      %v1987 = vshrl.u32 %v1986, 7
      %v1988 = vsub.s32 0, %v1987
      %v1989 = vrot.slane %v1948, %v1988
      %v1990 = vmul.f32 %v1762, %v1989
      %v1991 = vmul.f32 %v1763, %v1989
      %v1992 = vmul.f32 %v1764, %v1989
      %v1993 = vmul.f32 %v1765, %v1989
      %v1994 = vmul.f32 %v1766, %v1989
      %v1995 = vmul.f32 %v1767, %v1989
      %v1996 = vmul.f32 %v1768, %v1989
      %v1997 = vmul.f32 %v1769, %v1989
      %v1998 = vmul.f32 %v1770, %v1989
      %v1999 = vmul.f32 %v1771, %v1989
      %v2000 = vmul.f32 %v1772, %v1989
      %v2001 = vmul.f32 %v1773, %v1989
      %v2002 = vmul.f32 %v1774, %v1989
      %v2003 = vmul.f32 %v1775, %v1989
      %v2004 = vmul.f32 %v1776, %v1989
      %v2005 = vmul.f32 %v1777, %v1989
      %v2006 = vmul.f32 %v1778, %v1989
      %v2007 = vmul.f32 %v1779, %v1989
      %v2008 = vmul.f32 %v1780, %v1989
      %v2009 = vmul.f32 %v1781, %v1989
      %v2010 = vmul.f32 %v1782, %v1989
      %v2011 = vmul.f32 %v1783, %v1989
      %v2012 = vmul.f32 %v1784, %v1989
      %v2013 = vmul.f32 %v1785, %v1989
      %v2014 = vmul.f32 %v1786, %v1989
      %v2015 = vmul.f32 %v1787, %v1989
      %v2016 = vmul.f32 %v1788, %v1989
      %v2017 = vmul.f32 %v1789, %v1989
      %v2018 = vmul.f32 %v1790, %v1989
      %v2019 = vmul.f32 %v1791, %v1989
      %v2020 = vmul.f32 %v1792, %v1989
      %v2021 = vmul.f32 %v1793, %v1989
      %v2022 = vlaneseq
      %v2023 = vshrl.u32 %v2022, 7
      %v2024 = vsub.s32 0, %v2023
      %v2025 = vrot.slane %v1949, %v2024
      %v2026 = vmul.f32 %v1764, %v2025
      %v2027 = vmul.f32 %v1765, %v2025
      %v2028 = vmul.f32 %v1766, %v2025
      %v2029 = vmul.f32 %v1767, %v2025
      %v2030 = vmul.f32 %v1768, %v2025
      %v2031 = vmul.f32 %v1769, %v2025
      %v2032 = vmul.f32 %v1770, %v2025
      %v2033 = vmul.f32 %v1771, %v2025
      %v2034 = vmul.f32 %v1772, %v2025
      %v2035 = vmul.f32 %v1773, %v2025
      %v2036 = vmul.f32 %v1774, %v2025
      %v2037 = vmul.f32 %v1775, %v2025
      %v2038 = vmul.f32 %v1776, %v2025
      %v2039 = vmul.f32 %v1777, %v2025
      %v2040 = vmul.f32 %v1778, %v2025
      %v2041 = vmul.f32 %v1779, %v2025
      %v2042 = vmul.f32 %v1780, %v2025
      %v2043 = vmul.f32 %v1781, %v2025
      %v2044 = vmul.f32 %v1782, %v2025
      %v2045 = vmul.f32 %v1783, %v2025
      %v2046 = vmul.f32 %v1784, %v2025
      %v2047 = vmul.f32 %v1785, %v2025
      %v2048 = vmul.f32 %v1786, %v2025
      %v2049 = vmul.f32 %v1787, %v2025
      %v2050 = vmul.f32 %v1788, %v2025
      %v2051 = vmul.f32 %v1789, %v2025
      %v2052 = vmul.f32 %v1790, %v2025
      %v2053 = vmul.f32 %v1791, %v2025
      %v2054 = vmul.f32 %v1792, %v2025
      %v2055 = vmul.f32 %v1793, %v2025
      %v2056 = vmul.f32 %v1794, %v2025
      %v2057 = vmul.f32 %v1795, %v2025
      %v2058 = vadd.f32 %v1954, %v1990
      %v2059 = vadd.f32 %v1955, %v1991
      %v2060 = vadd.f32 %v1956, %v1992
      %v2061 = vadd.f32 %v1957, %v1993
      %v2062 = vadd.f32 %v1958, %v1994
      %v2063 = vadd.f32 %v1959, %v1995
      %v2064 = vadd.f32 %v1960, %v1996
      %v2065 = vadd.f32 %v1961, %v1997
      %v2066 = vadd.f32 %v1962, %v1998
      %v2067 = vadd.f32 %v1963, %v1999
      %v2068 = vadd.f32 %v1964, %v2000
      %v2069 = vadd.f32 %v1965, %v2001
      %v2070 = vadd.f32 %v1966, %v2002
      %v2071 = vadd.f32 %v1967, %v2003
      %v2072 = vadd.f32 %v1968, %v2004
      %v2073 = vadd.f32 %v1969, %v2005
      %v2074 = vadd.f32 %v1970, %v2006
      %v2075 = vadd.f32 %v1971, %v2007
      %v2076 = vadd.f32 %v1972, %v2008
      %v2077 = vadd.f32 %v1973, %v2009
      %v2078 = vadd.f32 %v1974, %v2010
      %v2079 = vadd.f32 %v1975, %v2011
      %v2080 = vadd.f32 %v1976, %v2012
      %v2081 = vadd.f32 %v1977, %v2013
      %v2082 = vadd.f32 %v1978, %v2014
      %v2083 = vadd.f32 %v1979, %v2015
      %v2084 = vadd.f32 %v1980, %v2016
      %v2085 = vadd.f32 %v1981, %v2017
      %v2086 = vadd.f32 %v1982, %v2018
      %v2087 = vadd.f32 %v1983, %v2019
      %v2088 = vadd.f32 %v1984, %v2020
      %v2089 = vadd.f32 %v1985, %v2021
      %v2090 = vadd.f32 %v2058, %v2026
      %v2091 = vadd.f32 %v2059, %v2027
      %v2092 = vadd.f32 %v2060, %v2028
      %v2093 = vadd.f32 %v2061, %v2029
      %v2094 = vadd.f32 %v2062, %v2030
      %v2095 = vadd.f32 %v2063, %v2031
      %v2096 = vadd.f32 %v2064, %v2032
      %v2097 = vadd.f32 %v2065, %v2033
      %v2098 = vadd.f32 %v2066, %v2034
      %v2099 = vadd.f32 %v2067, %v2035
      %v2100 = vadd.f32 %v2068, %v2036
      %v2101 = vadd.f32 %v2069, %v2037
      %v2102 = vadd.f32 %v2070, %v2038
      %v2103 = vadd.f32 %v2071, %v2039
      %v2104 = vadd.f32 %v2072, %v2040
      %v2105 = vadd.f32 %v2073, %v2041
      %v2106 = vadd.f32 %v2074, %v2042
      %v2107 = vadd.f32 %v2075, %v2043
      %v2108 = vadd.f32 %v2076, %v2044
      %v2109 = vadd.f32 %v2077, %v2045
      %v2110 = vadd.f32 %v2078, %v2046
      %v2111 = vadd.f32 %v2079, %v2047
      %v2112 = vadd.f32 %v2080, %v2048
      %v2113 = vadd.f32 %v2081, %v2049
      %v2114 = vadd.f32 %v2082, %v2050
      %v2115 = vadd.f32 %v2083, %v2051
      %v2116 = vadd.f32 %v2084, %v2052
      %v2117 = vadd.f32 %v2085, %v2053
      %v2118 = vadd.f32 %v2086, %v2054
      %v2119 = vadd.f32 %v2087, %v2055
      %v2120 = vadd.f32 %v2088, %v2056
      %v2121 = vadd.f32 %v2089, %v2057
      %v2122 = vlaneseq
      %v2123 = vshrl.u32 %v2122, 7
      %v2124 = vsub.s32 1, %v2123
      %v2125 = vrot.slane %v1947, %v2124
      %v2126 = vmul.f32 %v1601, %v2125
      %v2127 = vmul.f32 %v1602, %v2125
      %v2128 = vmul.f32 %v1561, %v2125
      %v2129 = vmul.f32 %v1562, %v2125
      %v2130 = vmul.f32 %v1581, %v2125
      %v2131 = vmul.f32 %v1582, %v2125
      %v2132 = vmul.f32 %v1563, %v2125
      %v2133 = vmul.f32 %v1564, %v2125
      %v2134 = vmul.f32 %v1583, %v2125
      %v2135 = vmul.f32 %v1584, %v2125
      %v2136 = vmul.f32 %v1565, %v2125
      %v2137 = vmul.f32 %v1566, %v2125
      %v2138 = vmul.f32 %v1585, %v2125
      %v2139 = vmul.f32 %v1586, %v2125
      %v2140 = vmul.f32 %v1567, %v2125
      %v2141 = vmul.f32 %v1568, %v2125
      %v2142 = vmul.f32 %v1587, %v2125
      %v2143 = vmul.f32 %v1588, %v2125
      %v2144 = vmul.f32 %v1569, %v2125
      %v2145 = vmul.f32 %v1570, %v2125
      %v2146 = vmul.f32 %v1589, %v2125
      %v2147 = vmul.f32 %v1590, %v2125
      %v2148 = vmul.f32 %v1571, %v2125
      %v2149 = vmul.f32 %v1572, %v2125
      %v2150 = vmul.f32 %v1591, %v2125
      %v2151 = vmul.f32 %v1592, %v2125
      %v2152 = vmul.f32 %v1573, %v2125
      %v2153 = vmul.f32 %v1574, %v2125
      %v2154 = vmul.f32 %v1593, %v2125
      %v2155 = vmul.f32 %v1594, %v2125
      %v2156 = vmul.f32 %v1575, %v2125
      %v2157 = vmul.f32 %v1576, %v2125
      %v2158 = vlaneseq
      %v2159 = vshrl.u32 %v2158, 7
      %v2160 = vsub.s32 1, %v2159
      %v2161 = vrot.slane %v1948, %v2160
      %v2162 = vmul.f32 %v1561, %v2161
      %v2163 = vmul.f32 %v1562, %v2161
      %v2164 = vmul.f32 %v1581, %v2161
      %v2165 = vmul.f32 %v1582, %v2161
      %v2166 = vmul.f32 %v1563, %v2161
      %v2167 = vmul.f32 %v1564, %v2161
      %v2168 = vmul.f32 %v1583, %v2161
      %v2169 = vmul.f32 %v1584, %v2161
      %v2170 = vmul.f32 %v1565, %v2161
      %v2171 = vmul.f32 %v1566, %v2161
      %v2172 = vmul.f32 %v1585, %v2161
      %v2173 = vmul.f32 %v1586, %v2161
      %v2174 = vmul.f32 %v1567, %v2161
      %v2175 = vmul.f32 %v1568, %v2161
      %v2176 = vmul.f32 %v1587, %v2161
      %v2177 = vmul.f32 %v1588, %v2161
      %v2178 = vmul.f32 %v1569, %v2161
      %v2179 = vmul.f32 %v1570, %v2161
      %v2180 = vmul.f32 %v1589, %v2161
      %v2181 = vmul.f32 %v1590, %v2161
      %v2182 = vmul.f32 %v1571, %v2161
      %v2183 = vmul.f32 %v1572, %v2161
      %v2184 = vmul.f32 %v1591, %v2161
      %v2185 = vmul.f32 %v1592, %v2161
      %v2186 = vmul.f32 %v1573, %v2161
      %v2187 = vmul.f32 %v1574, %v2161
      %v2188 = vmul.f32 %v1593, %v2161
      %v2189 = vmul.f32 %v1594, %v2161
      %v2190 = vmul.f32 %v1575, %v2161
      %v2191 = vmul.f32 %v1576, %v2161
      %v2192 = vmul.f32 %v1595, %v2161
      %v2193 = vmul.f32 %v1596, %v2161
      %v2194 = vlaneseq
      %v2195 = vshrl.u32 %v2194, 7
      %v2196 = vsub.s32 1, %v2195
      %v2197 = vrot.slane %v1949, %v2196
      %v2198 = vmul.f32 %v1581, %v2197
      %v2199 = vmul.f32 %v1582, %v2197
      %v2200 = vmul.f32 %v1563, %v2197
      %v2201 = vmul.f32 %v1564, %v2197
      %v2202 = vmul.f32 %v1583, %v2197
      %v2203 = vmul.f32 %v1584, %v2197
      %v2204 = vmul.f32 %v1565, %v2197
      %v2205 = vmul.f32 %v1566, %v2197
      %v2206 = vmul.f32 %v1585, %v2197
      %v2207 = vmul.f32 %v1586, %v2197
      %v2208 = vmul.f32 %v1567, %v2197
      %v2209 = vmul.f32 %v1568, %v2197
      %v2210 = vmul.f32 %v1587, %v2197
      %v2211 = vmul.f32 %v1588, %v2197
      %v2212 = vmul.f32 %v1569, %v2197
      %v2213 = vmul.f32 %v1570, %v2197
      %v2214 = vmul.f32 %v1589, %v2197
      %v2215 = vmul.f32 %v1590, %v2197
      %v2216 = vmul.f32 %v1571, %v2197
      %v2217 = vmul.f32 %v1572, %v2197
      %v2218 = vmul.f32 %v1591, %v2197
      %v2219 = vmul.f32 %v1592, %v2197
      %v2220 = vmul.f32 %v1573, %v2197
      %v2221 = vmul.f32 %v1574, %v2197
      %v2222 = vmul.f32 %v1593, %v2197
      %v2223 = vmul.f32 %v1594, %v2197
      %v2224 = vmul.f32 %v1575, %v2197
      %v2225 = vmul.f32 %v1576, %v2197
      %v2226 = vmul.f32 %v1595, %v2197
      %v2227 = vmul.f32 %v1596, %v2197
      %v2228 = vmul.f32 %v1607, %v2197
      %v2229 = vmul.f32 %v1608, %v2197
      %v2230 = vadd.f32 %v2126, %v2162
      %v2231 = vadd.f32 %v2127, %v2163
      %v2232 = vadd.f32 %v2128, %v2164
      %v2233 = vadd.f32 %v2129, %v2165
      %v2234 = vadd.f32 %v2130, %v2166
      %v2235 = vadd.f32 %v2131, %v2167
      %v2236 = vadd.f32 %v2132, %v2168
      %v2237 = vadd.f32 %v2133, %v2169
      %v2238 = vadd.f32 %v2134, %v2170
      %v2239 = vadd.f32 %v2135, %v2171
      %v2240 = vadd.f32 %v2136, %v2172
      %v2241 = vadd.f32 %v2137, %v2173
      %v2242 = vadd.f32 %v2138, %v2174
      %v2243 = vadd.f32 %v2139, %v2175
      %v2244 = vadd.f32 %v2140, %v2176
      %v2245 = vadd.f32 %v2141, %v2177
      %v2246 = vadd.f32 %v2142, %v2178
      %v2247 = vadd.f32 %v2143, %v2179
      %v2248 = vadd.f32 %v2144, %v2180
      %v2249 = vadd.f32 %v2145, %v2181
      %v2250 = vadd.f32 %v2146, %v2182
      %v2251 = vadd.f32 %v2147, %v2183
      %v2252 = vadd.f32 %v2148, %v2184
      %v2253 = vadd.f32 %v2149, %v2185
      %v2254 = vadd.f32 %v2150, %v2186
      %v2255 = vadd.f32 %v2151, %v2187
      %v2256 = vadd.f32 %v2152, %v2188
      %v2257 = vadd.f32 %v2153, %v2189
      %v2258 = vadd.f32 %v2154, %v2190
      %v2259 = vadd.f32 %v2155, %v2191
      %v2260 = vadd.f32 %v2156, %v2192
      %v2261 = vadd.f32 %v2157, %v2193
      %v2262 = vadd.f32 %v2230, %v2198
      %v2263 = vadd.f32 %v2231, %v2199
      %v2264 = vadd.f32 %v2232, %v2200
      %v2265 = vadd.f32 %v2233, %v2201
      %v2266 = vadd.f32 %v2234, %v2202
      %v2267 = vadd.f32 %v2235, %v2203
      %v2268 = vadd.f32 %v2236, %v2204
      %v2269 = vadd.f32 %v2237, %v2205
      %v2270 = vadd.f32 %v2238, %v2206
      %v2271 = vadd.f32 %v2239, %v2207
      %v2272 = vadd.f32 %v2240, %v2208
      %v2273 = vadd.f32 %v2241, %v2209
      %v2274 = vadd.f32 %v2242, %v2210
      %v2275 = vadd.f32 %v2243, %v2211
      %v2276 = vadd.f32 %v2244, %v2212
      %v2277 = vadd.f32 %v2245, %v2213
      %v2278 = vadd.f32 %v2246, %v2214
      %v2279 = vadd.f32 %v2247, %v2215
      %v2280 = vadd.f32 %v2248, %v2216
      %v2281 = vadd.f32 %v2249, %v2217
      %v2282 = vadd.f32 %v2250, %v2218
      %v2283 = vadd.f32 %v2251, %v2219
      %v2284 = vadd.f32 %v2252, %v2220
      %v2285 = vadd.f32 %v2253, %v2221
      %v2286 = vadd.f32 %v2254, %v2222
      %v2287 = vadd.f32 %v2255, %v2223
      %v2288 = vadd.f32 %v2256, %v2224
      %v2289 = vadd.f32 %v2257, %v2225
      %v2290 = vadd.f32 %v2258, %v2226
      %v2291 = vadd.f32 %v2259, %v2227
      %v2292 = vadd.f32 %v2260, %v2228
      %v2293 = vadd.f32 %v2261, %v2229
      %v2294 = vadd.f32 %v2090, %v2262
      %v2295 = vadd.f32 %v2091, %v2263
      %v2296 = vadd.f32 %v2092, %v2264
      %v2297 = vadd.f32 %v2093, %v2265
      %v2298 = vadd.f32 %v2094, %v2266
      %v2299 = vadd.f32 %v2095, %v2267
      %v2300 = vadd.f32 %v2096, %v2268
      %v2301 = vadd.f32 %v2097, %v2269
      %v2302 = vadd.f32 %v2098, %v2270
      %v2303 = vadd.f32 %v2099, %v2271
      %v2304 = vadd.f32 %v2100, %v2272
      %v2305 = vadd.f32 %v2101, %v2273
      %v2306 = vadd.f32 %v2102, %v2274
      %v2307 = vadd.f32 %v2103, %v2275
      %v2308 = vadd.f32 %v2104, %v2276
      %v2309 = vadd.f32 %v2105, %v2277
      %v2310 = vadd.f32 %v2106, %v2278
      %v2311 = vadd.f32 %v2107, %v2279
      %v2312 = vadd.f32 %v2108, %v2280
      %v2313 = vadd.f32 %v2109, %v2281
      %v2314 = vadd.f32 %v2110, %v2282
      %v2315 = vadd.f32 %v2111, %v2283
      %v2316 = vadd.f32 %v2112, %v2284
      %v2317 = vadd.f32 %v2113, %v2285
      %v2318 = vadd.f32 %v2114, %v2286
      %v2319 = vadd.f32 %v2115, %v2287
      %v2320 = vadd.f32 %v2116, %v2288
      %v2321 = vadd.f32 %v2117, %v2289
      %v2322 = vadd.f32 %v2118, %v2290
      %v2323 = vadd.f32 %v2119, %v2291
      %v2324 = vadd.f32 %v2120, %v2292
      %v2325 = vadd.f32 %v2121, %v2293
      %v2326 = vlaneseq
      %v2327 = vshrl.u32 %v2326, 7
      %v2328 = vsub.s32 2, %v2327
      %v2329 = vrot.slane %v1947, %v2328
      %v2330 = vmul.f32 %v1911, %v2329
      %v2331 = vmul.f32 %v1912, %v2329
      %v2332 = vmul.f32 %v1913, %v2329
      %v2333 = vmul.f32 %v1914, %v2329
      %v2334 = vmul.f32 %v1915, %v2329
      %v2335 = vmul.f32 %v1916, %v2329
      %v2336 = vmul.f32 %v1917, %v2329
      %v2337 = vmul.f32 %v1918, %v2329
      %v2338 = vmul.f32 %v1919, %v2329
      %v2339 = vmul.f32 %v1920, %v2329
      %v2340 = vmul.f32 %v1921, %v2329
      %v2341 = vmul.f32 %v1922, %v2329
      %v2342 = vmul.f32 %v1923, %v2329
      %v2343 = vmul.f32 %v1924, %v2329
      %v2344 = vmul.f32 %v1925, %v2329
      %v2345 = vmul.f32 %v1926, %v2329
      %v2346 = vmul.f32 %v1927, %v2329
      %v2347 = vmul.f32 %v1928, %v2329
      %v2348 = vmul.f32 %v1929, %v2329
      %v2349 = vmul.f32 %v1930, %v2329
      %v2350 = vmul.f32 %v1931, %v2329
      %v2351 = vmul.f32 %v1932, %v2329
      %v2352 = vmul.f32 %v1933, %v2329
      %v2353 = vmul.f32 %v1934, %v2329
      %v2354 = vmul.f32 %v1935, %v2329
      %v2355 = vmul.f32 %v1936, %v2329
      %v2356 = vmul.f32 %v1937, %v2329
      %v2357 = vmul.f32 %v1938, %v2329
      %v2358 = vmul.f32 %v1939, %v2329
      %v2359 = vmul.f32 %v1940, %v2329
      %v2360 = vmul.f32 %v1941, %v2329
      %v2361 = vmul.f32 %v1942, %v2329
      %v2362 = vlaneseq
      %v2363 = vshrl.u32 %v2362, 7
      %v2364 = vsub.s32 2, %v2363
      %v2365 = vrot.slane %v1948, %v2364
      %v2366 = vmul.f32 %v1913, %v2365
      %v2367 = vmul.f32 %v1914, %v2365
      %v2368 = vmul.f32 %v1915, %v2365
      %v2369 = vmul.f32 %v1916, %v2365
      %v2370 = vmul.f32 %v1917, %v2365
      %v2371 = vmul.f32 %v1918, %v2365
      %v2372 = vmul.f32 %v1919, %v2365
      %v2373 = vmul.f32 %v1920, %v2365
      %v2374 = vmul.f32 %v1921, %v2365
      %v2375 = vmul.f32 %v1922, %v2365
      %v2376 = vmul.f32 %v1923, %v2365
      %v2377 = vmul.f32 %v1924, %v2365
      %v2378 = vmul.f32 %v1925, %v2365
      %v2379 = vmul.f32 %v1926, %v2365
      %v2380 = vmul.f32 %v1927, %v2365
      %v2381 = vmul.f32 %v1928, %v2365
      %v2382 = vmul.f32 %v1929, %v2365
      %v2383 = vmul.f32 %v1930, %v2365
      %v2384 = vmul.f32 %v1931, %v2365
      %v2385 = vmul.f32 %v1932, %v2365
      %v2386 = vmul.f32 %v1933, %v2365
      %v2387 = vmul.f32 %v1934, %v2365
      %v2388 = vmul.f32 %v1935, %v2365
      %v2389 = vmul.f32 %v1936, %v2365
      %v2390 = vmul.f32 %v1937, %v2365
      %v2391 = vmul.f32 %v1938, %v2365
      %v2392 = vmul.f32 %v1939, %v2365
      %v2393 = vmul.f32 %v1940, %v2365
      %v2394 = vmul.f32 %v1941, %v2365
      %v2395 = vmul.f32 %v1942, %v2365
      %v2396 = vmul.f32 %v1943, %v2365
      %v2397 = vmul.f32 %v1944, %v2365
      %v2398 = vlaneseq
      %v2399 = vshrl.u32 %v2398, 7
      %v2400 = vsub.s32 2, %v2399
      %v2401 = vrot.slane %v1949, %v2400
      %v2402 = vmul.f32 %v1915, %v2401
      %v2403 = vmul.f32 %v1916, %v2401
      %v2404 = vmul.f32 %v1917, %v2401
      %v2405 = vmul.f32 %v1918, %v2401
      %v2406 = vmul.f32 %v1919, %v2401
      %v2407 = vmul.f32 %v1920, %v2401
      %v2408 = vmul.f32 %v1921, %v2401
      %v2409 = vmul.f32 %v1922, %v2401
      %v2410 = vmul.f32 %v1923, %v2401
      %v2411 = vmul.f32 %v1924, %v2401
      %v2412 = vmul.f32 %v1925, %v2401
      %v2413 = vmul.f32 %v1926, %v2401
      %v2414 = vmul.f32 %v1927, %v2401
      %v2415 = vmul.f32 %v1928, %v2401
      %v2416 = vmul.f32 %v1929, %v2401
      %v2417 = vmul.f32 %v1930, %v2401
      %v2418 = vmul.f32 %v1931, %v2401
      %v2419 = vmul.f32 %v1932, %v2401
      %v2420 = vmul.f32 %v1933, %v2401
      %v2421 = vmul.f32 %v1934, %v2401
      %v2422 = vmul.f32 %v1935, %v2401
      %v2423 = vmul.f32 %v1936, %v2401
      %v2424 = vmul.f32 %v1937, %v2401
      %v2425 = vmul.f32 %v1938, %v2401
      %v2426 = vmul.f32 %v1939, %v2401
      %v2427 = vmul.f32 %v1940, %v2401
      %v2428 = vmul.f32 %v1941, %v2401
      %v2429 = vmul.f32 %v1942, %v2401
      %v2430 = vmul.f32 %v1943, %v2401
      %v2431 = vmul.f32 %v1944, %v2401
      %v2432 = vmul.f32 %v1945, %v2401
      %v2433 = vmul.f32 %v1946, %v2401
      %v2434 = vadd.f32 %v2330, %v2366
      %v2435 = vadd.f32 %v2331, %v2367
      %v2436 = vadd.f32 %v2332, %v2368
      %v2437 = vadd.f32 %v2333, %v2369
      %v2438 = vadd.f32 %v2334, %v2370
      %v2439 = vadd.f32 %v2335, %v2371
      %v2440 = vadd.f32 %v2336, %v2372
      %v2441 = vadd.f32 %v2337, %v2373
      %v2442 = vadd.f32 %v2338, %v2374
      %v2443 = vadd.f32 %v2339, %v2375
      %v2444 = vadd.f32 %v2340, %v2376
      %v2445 = vadd.f32 %v2341, %v2377
      %v2446 = vadd.f32 %v2342, %v2378
      %v2447 = vadd.f32 %v2343, %v2379
      %v2448 = vadd.f32 %v2344, %v2380
      %v2449 = vadd.f32 %v2345, %v2381
      %v2450 = vadd.f32 %v2346, %v2382
      %v2451 = vadd.f32 %v2347, %v2383
      %v2452 = vadd.f32 %v2348, %v2384
      %v2453 = vadd.f32 %v2349, %v2385
      %v2454 = vadd.f32 %v2350, %v2386
      %v2455 = vadd.f32 %v2351, %v2387
      %v2456 = vadd.f32 %v2352, %v2388
      %v2457 = vadd.f32 %v2353, %v2389
      %v2458 = vadd.f32 %v2354, %v2390
      %v2459 = vadd.f32 %v2355, %v2391
      %v2460 = vadd.f32 %v2356, %v2392
      %v2461 = vadd.f32 %v2357, %v2393
      %v2462 = vadd.f32 %v2358, %v2394
      %v2463 = vadd.f32 %v2359, %v2395
      %v2464 = vadd.f32 %v2360, %v2396
      %v2465 = vadd.f32 %v2361, %v2397
      %v2466 = vadd.f32 %v2434, %v2402
      %v2467 = vadd.f32 %v2435, %v2403
      %v2468 = vadd.f32 %v2436, %v2404
      %v2469 = vadd.f32 %v2437, %v2405
      %v2470 = vadd.f32 %v2438, %v2406
      %v2471 = vadd.f32 %v2439, %v2407
      %v2472 = vadd.f32 %v2440, %v2408
      %v2473 = vadd.f32 %v2441, %v2409
      %v2474 = vadd.f32 %v2442, %v2410
      %v2475 = vadd.f32 %v2443, %v2411
      %v2476 = vadd.f32 %v2444, %v2412
      %v2477 = vadd.f32 %v2445, %v2413
      %v2478 = vadd.f32 %v2446, %v2414
      %v2479 = vadd.f32 %v2447, %v2415
      %v2480 = vadd.f32 %v2448, %v2416
      %v2481 = vadd.f32 %v2449, %v2417
      %v2482 = vadd.f32 %v2450, %v2418
      %v2483 = vadd.f32 %v2451, %v2419
      %v2484 = vadd.f32 %v2452, %v2420
      %v2485 = vadd.f32 %v2453, %v2421
      %v2486 = vadd.f32 %v2454, %v2422
      %v2487 = vadd.f32 %v2455, %v2423
      %v2488 = vadd.f32 %v2456, %v2424
      %v2489 = vadd.f32 %v2457, %v2425
      %v2490 = vadd.f32 %v2458, %v2426
      %v2491 = vadd.f32 %v2459, %v2427
      %v2492 = vadd.f32 %v2460, %v2428
      %v2493 = vadd.f32 %v2461, %v2429
      %v2494 = vadd.f32 %v2462, %v2430
      %v2495 = vadd.f32 %v2463, %v2431
      %v2496 = vadd.f32 %v2464, %v2432
      %v2497 = vadd.f32 %v2465, %v2433
      %v2498 = vld [vmem:[%s7] sm:$0x1]
      %v2500 = vlaneseq
      %v2501 = vshrl.u32 %v2500, 7
      %v2502 = vsub.s32 0, %v2501
      %v2503 = vrot.slane %v2498, %v2502
      %v2505 = vadd.f32 %v2466, %v2503
      %v2506 = vadd.f32 %v2467, %v2503
      %v2507 = vadd.f32 %v2468, %v2503
      %v2508 = vadd.f32 %v2469, %v2503
      %v2509 = vadd.f32 %v2470, %v2503
      %v2510 = vadd.f32 %v2471, %v2503
      %v2511 = vadd.f32 %v2472, %v2503
      %v2512 = vadd.f32 %v2473, %v2503
      %v2513 = vadd.f32 %v2474, %v2503
      %v2514 = vadd.f32 %v2475, %v2503
      %v2515 = vadd.f32 %v2476, %v2503
      %v2516 = vadd.f32 %v2477, %v2503
      %v2517 = vadd.f32 %v2478, %v2503
      %v2518 = vadd.f32 %v2479, %v2503
      %v2519 = vadd.f32 %v2480, %v2503
      %v2520 = vadd.f32 %v2481, %v2503
      %v2521 = vadd.f32 %v2482, %v2503
      %v2522 = vadd.f32 %v2483, %v2503
      %v2523 = vadd.f32 %v2484, %v2503
      %v2524 = vadd.f32 %v2485, %v2503
      %v2525 = vadd.f32 %v2486, %v2503
      %v2526 = vadd.f32 %v2487, %v2503
      %v2527 = vadd.f32 %v2488, %v2503
      %v2528 = vadd.f32 %v2489, %v2503
      %v2529 = vadd.f32 %v2490, %v2503
      %v2530 = vadd.f32 %v2491, %v2503
      %v2531 = vadd.f32 %v2492, %v2503
      %v2532 = vadd.f32 %v2493, %v2503
      %v2533 = vadd.f32 %v2494, %v2503
      %v2534 = vadd.f32 %v2495, %v2503
      %v2535 = vadd.f32 %v2496, %v2503
      %v2536 = vadd.f32 %v2497, %v2503
      %v2537 = vadd.f32 %v2294, %v2505
      %v2538 = vadd.f32 %v2295, %v2506
      %v2539 = vadd.f32 %v2296, %v2507
      %v2540 = vadd.f32 %v2297, %v2508
      %v2541 = vadd.f32 %v2298, %v2509
      %v2542 = vadd.f32 %v2299, %v2510
      %v2543 = vadd.f32 %v2300, %v2511
      %v2544 = vadd.f32 %v2301, %v2512
      %v2545 = vadd.f32 %v2302, %v2513
      %v2546 = vadd.f32 %v2303, %v2514
      %v2547 = vadd.f32 %v2304, %v2515
      %v2548 = vadd.f32 %v2305, %v2516
      %v2549 = vadd.f32 %v2306, %v2517
      %v2550 = vadd.f32 %v2307, %v2518
      %v2551 = vadd.f32 %v2308, %v2519
      %v2552 = vadd.f32 %v2309, %v2520
      %v2553 = vadd.f32 %v2310, %v2521
      %v2554 = vadd.f32 %v2311, %v2522
      %v2555 = vadd.f32 %v2312, %v2523
      %v2556 = vadd.f32 %v2313, %v2524
      %v2557 = vadd.f32 %v2314, %v2525
      %v2558 = vadd.f32 %v2315, %v2526
      %v2559 = vadd.f32 %v2316, %v2527
      %v2560 = vadd.f32 %v2317, %v2528
      %v2561 = vadd.f32 %v2318, %v2529
      %v2562 = vadd.f32 %v2319, %v2530
      %v2563 = vadd.f32 %v2320, %v2531
      %v2564 = vadd.f32 %v2321, %v2532
      %v2565 = vadd.f32 %v2322, %v2533
      %v2566 = vadd.f32 %v2323, %v2534
      %v2567 = vadd.f32 %v2324, %v2535
      %v2568 = vadd.f32 %v2325, %v2536
      %v2569 = vmul.f32 %v2537, %v2537
      %v2570 = vmul.f32 %v2538, %v2538
      %v2571 = vmul.f32 %v2539, %v2539
      %v2572 = vmul.f32 %v2540, %v2540
      %v2573 = vmul.f32 %v2541, %v2541
      %v2574 = vmul.f32 %v2542, %v2542
      %v2575 = vmul.f32 %v2543, %v2543
      %v2576 = vmul.f32 %v2544, %v2544
      %v2577 = vmul.f32 %v2545, %v2545
      %v2578 = vmul.f32 %v2546, %v2546
      %v2579 = vmul.f32 %v2547, %v2547
      %v2580 = vmul.f32 %v2548, %v2548
      %v2581 = vmul.f32 %v2549, %v2549
      %v2582 = vmul.f32 %v2550, %v2550
      %v2583 = vmul.f32 %v2551, %v2551
      %v2584 = vmul.f32 %v2552, %v2552
      %v2585 = vmul.f32 %v2553, %v2553
      %v2586 = vmul.f32 %v2554, %v2554
      %v2587 = vmul.f32 %v2555, %v2555
      %v2588 = vmul.f32 %v2556, %v2556
      %v2589 = vmul.f32 %v2557, %v2557
      %v2590 = vmul.f32 %v2558, %v2558
      %v2591 = vmul.f32 %v2559, %v2559
      %v2592 = vmul.f32 %v2560, %v2560
      %v2593 = vmul.f32 %v2561, %v2561
      %v2594 = vmul.f32 %v2562, %v2562
      %v2595 = vmul.f32 %v2563, %v2563
      %v2596 = vmul.f32 %v2564, %v2564
      %v2597 = vmul.f32 %v2565, %v2565
      %v2598 = vmul.f32 %v2566, %v2566
      %v2599 = vmul.f32 %v2567, %v2567
      %v2600 = vmul.f32 %v2568, %v2568
      %v2601 = vmul.f32 %v2537, %v2569
      %v2602 = vmul.f32 %v2538, %v2570
      %v2603 = vmul.f32 %v2539, %v2571
      %v2604 = vmul.f32 %v2540, %v2572
      %v2605 = vmul.f32 %v2541, %v2573
      %v2606 = vmul.f32 %v2542, %v2574
      %v2607 = vmul.f32 %v2543, %v2575
      %v2608 = vmul.f32 %v2544, %v2576
      %v2609 = vmul.f32 %v2545, %v2577
      %v2610 = vmul.f32 %v2546, %v2578
      %v2611 = vmul.f32 %v2547, %v2579
      %v2612 = vmul.f32 %v2548, %v2580
      %v2613 = vmul.f32 %v2549, %v2581
      %v2614 = vmul.f32 %v2550, %v2582
      %v2615 = vmul.f32 %v2551, %v2583
      %v2616 = vmul.f32 %v2552, %v2584
      %v2617 = vmul.f32 %v2553, %v2585
      %v2618 = vmul.f32 %v2554, %v2586
      %v2619 = vmul.f32 %v2555, %v2587
      %v2620 = vmul.f32 %v2556, %v2588
      %v2621 = vmul.f32 %v2557, %v2589
      %v2622 = vmul.f32 %v2558, %v2590
      %v2623 = vmul.f32 %v2559, %v2591
      %v2624 = vmul.f32 %v2560, %v2592
      %v2625 = vmul.f32 %v2561, %v2593
      %v2626 = vmul.f32 %v2562, %v2594
      %v2627 = vmul.f32 %v2563, %v2595
      %v2628 = vmul.f32 %v2564, %v2596
      %v2629 = vmul.f32 %v2565, %v2597
      %v2630 = vmul.f32 %v2566, %v2598
      %v2631 = vmul.f32 %v2567, %v2599
      %v2632 = vmul.f32 %v2568, %v2600
      %v2633 = vmul.f32 %v2601, 0.044715
      %v2634 = vmul.f32 %v2602, 0.044715
      %v2635 = vmul.f32 %v2603, 0.044715
      %v2636 = vmul.f32 %v2604, 0.044715
      %v2637 = vmul.f32 %v2605, 0.044715
      %v2638 = vmul.f32 %v2606, 0.044715
      %v2639 = vmul.f32 %v2607, 0.044715
      %v2640 = vmul.f32 %v2608, 0.044715
      %v2641 = vmul.f32 %v2609, 0.044715
      %v2642 = vmul.f32 %v2610, 0.044715
      %v2643 = vmul.f32 %v2611, 0.044715
      %v2644 = vmul.f32 %v2612, 0.044715
      %v2645 = vmul.f32 %v2613, 0.044715
      %v2646 = vmul.f32 %v2614, 0.044715
      %v2647 = vmul.f32 %v2615, 0.044715
      %v2648 = vmul.f32 %v2616, 0.044715
      %v2649 = vmul.f32 %v2617, 0.044715
      %v2650 = vmul.f32 %v2618, 0.044715
      %v2651 = vmul.f32 %v2619, 0.044715
      %v2652 = vmul.f32 %v2620, 0.044715
      %v2653 = vmul.f32 %v2621, 0.044715
      %v2654 = vmul.f32 %v2622, 0.044715
      %v2655 = vmul.f32 %v2623, 0.044715
      %v2656 = vmul.f32 %v2624, 0.044715
      %v2657 = vmul.f32 %v2625, 0.044715
      %v2658 = vmul.f32 %v2626, 0.044715
      %v2659 = vmul.f32 %v2627, 0.044715
      %v2660 = vmul.f32 %v2628, 0.044715
      %v2661 = vmul.f32 %v2629, 0.044715
      %v2662 = vmul.f32 %v2630, 0.044715
      %v2663 = vmul.f32 %v2631, 0.044715
      %v2664 = vmul.f32 %v2632, 0.044715
      %v2665 = vadd.f32 %v2537, %v2633
      %v2666 = vadd.f32 %v2538, %v2634
      %v2667 = vadd.f32 %v2539, %v2635
      %v2668 = vadd.f32 %v2540, %v2636
      %v2669 = vadd.f32 %v2541, %v2637
      %v2670 = vadd.f32 %v2542, %v2638
      %v2671 = vadd.f32 %v2543, %v2639
      %v2672 = vadd.f32 %v2544, %v2640
      %v2673 = vadd.f32 %v2545, %v2641
      %v2674 = vadd.f32 %v2546, %v2642
      %v2675 = vadd.f32 %v2547, %v2643
      %v2676 = vadd.f32 %v2548, %v2644
      %v2677 = vadd.f32 %v2549, %v2645
      %v2678 = vadd.f32 %v2550, %v2646
      %v2679 = vadd.f32 %v2551, %v2647
      %v2680 = vadd.f32 %v2552, %v2648
      %v2681 = vadd.f32 %v2553, %v2649
      %v2682 = vadd.f32 %v2554, %v2650
      %v2683 = vadd.f32 %v2555, %v2651
      %v2684 = vadd.f32 %v2556, %v2652
      %v2685 = vadd.f32 %v2557, %v2653
      %v2686 = vadd.f32 %v2558, %v2654
      %v2687 = vadd.f32 %v2559, %v2655
      %v2688 = vadd.f32 %v2560, %v2656
      %v2689 = vadd.f32 %v2561, %v2657
      %v2690 = vadd.f32 %v2562, %v2658
      %v2691 = vadd.f32 %v2563, %v2659
      %v2692 = vadd.f32 %v2564, %v2660
      %v2693 = vadd.f32 %v2565, %v2661
      %v2694 = vadd.f32 %v2566, %v2662
      %v2695 = vadd.f32 %v2567, %v2663
      %v2696 = vadd.f32 %v2568, %v2664
      %v2697 = vmul.f32 %v2665, 0.7978846
      %v2698 = vmul.f32 %v2666, 0.7978846
      %v2699 = vmul.f32 %v2667, 0.7978846
      %v2700 = vmul.f32 %v2668, 0.7978846
      %v2701 = vmul.f32 %v2669, 0.7978846
      %v2702 = vmul.f32 %v2670, 0.7978846
      %v2703 = vmul.f32 %v2671, 0.7978846
      %v2704 = vmul.f32 %v2672, 0.7978846
      %v2705 = vmul.f32 %v2673, 0.7978846
      %v2706 = vmul.f32 %v2674, 0.7978846
      %v2707 = vmul.f32 %v2675, 0.7978846
      %v2708 = vmul.f32 %v2676, 0.7978846
      %v2709 = vmul.f32 %v2677, 0.7978846
      %v2710 = vmul.f32 %v2678, 0.7978846
      %v2711 = vmul.f32 %v2679, 0.7978846
      %v2712 = vmul.f32 %v2680, 0.7978846
      %v2713 = vmul.f32 %v2681, 0.7978846
      %v2714 = vmul.f32 %v2682, 0.7978846
      %v2715 = vmul.f32 %v2683, 0.7978846
      %v2716 = vmul.f32 %v2684, 0.7978846
      %v2717 = vmul.f32 %v2685, 0.7978846
      %v2718 = vmul.f32 %v2686, 0.7978846
      %v2719 = vmul.f32 %v2687, 0.7978846
      %v2720 = vmul.f32 %v2688, 0.7978846
      %v2721 = vmul.f32 %v2689, 0.7978846
      %v2722 = vmul.f32 %v2690, 0.7978846
      %v2723 = vmul.f32 %v2691, 0.7978846
      %v2724 = vmul.f32 %v2692, 0.7978846
      %v2725 = vmul.f32 %v2693, 0.7978846
      %v2726 = vmul.f32 %v2694, 0.7978846
      %v2727 = vmul.f32 %v2695, 0.7978846
      %v2728 = vmul.f32 %v2696, 0.7978846
      %v2729 = vtanh.pop %v2697
      %v2730 = vtanh.pop %v2698
      %v2731 = vtanh.pop %v2699
      %v2732 = vtanh.pop %v2700
      %v2733 = vtanh.pop %v2701
      %v2734 = vtanh.pop %v2702
      %v2735 = vtanh.pop %v2703
      %v2736 = vtanh.pop %v2704
      %v2737 = vtanh.pop %v2705
      %v2738 = vtanh.pop %v2706
      %v2739 = vtanh.pop %v2707
      %v2740 = vtanh.pop %v2708
      %v2741 = vtanh.pop %v2709
      %v2742 = vtanh.pop %v2710
      %v2743 = vtanh.pop %v2711
      %v2744 = vtanh.pop %v2712
      %v2745 = vtanh.pop %v2713
      %v2746 = vtanh.pop %v2714
      %v2747 = vtanh.pop %v2715
      %v2748 = vtanh.pop %v2716
      %v2749 = vtanh.pop %v2717
      %v2750 = vtanh.pop %v2718
      %v2751 = vtanh.pop %v2719
      %v2752 = vtanh.pop %v2720
      %v2753 = vtanh.pop %v2721
      %v2754 = vtanh.pop %v2722
      %v2755 = vtanh.pop %v2723
      %v2756 = vtanh.pop %v2724
      %v2757 = vtanh.pop %v2725
      %v2758 = vtanh.pop %v2726
      %v2759 = vtanh.pop %v2727
      %v2760 = vtanh.pop %v2728
      %v2761 = vadd.f32 %v2729, 1.0
      %v2762 = vadd.f32 %v2730, 1.0
      %v2763 = vadd.f32 %v2731, 1.0
      %v2764 = vadd.f32 %v2732, 1.0
      %v2765 = vadd.f32 %v2733, 1.0
      %v2766 = vadd.f32 %v2734, 1.0
      %v2767 = vadd.f32 %v2735, 1.0
      %v2768 = vadd.f32 %v2736, 1.0
      %v2769 = vadd.f32 %v2737, 1.0
      %v2770 = vadd.f32 %v2738, 1.0
      %v2771 = vadd.f32 %v2739, 1.0
      %v2772 = vadd.f32 %v2740, 1.0
      %v2773 = vadd.f32 %v2741, 1.0
      %v2774 = vadd.f32 %v2742, 1.0
      %v2775 = vadd.f32 %v2743, 1.0
      %v2776 = vadd.f32 %v2744, 1.0
      %v2777 = vadd.f32 %v2745, 1.0
      %v2778 = vadd.f32 %v2746, 1.0
      %v2779 = vadd.f32 %v2747, 1.0
      %v2780 = vadd.f32 %v2748, 1.0
      %v2781 = vadd.f32 %v2749, 1.0
      %v2782 = vadd.f32 %v2750, 1.0
      %v2783 = vadd.f32 %v2751, 1.0
      %v2784 = vadd.f32 %v2752, 1.0
      %v2785 = vadd.f32 %v2753, 1.0
      %v2786 = vadd.f32 %v2754, 1.0
      %v2787 = vadd.f32 %v2755, 1.0
      %v2788 = vadd.f32 %v2756, 1.0
      %v2789 = vadd.f32 %v2757, 1.0
      %v2790 = vadd.f32 %v2758, 1.0
      %v2791 = vadd.f32 %v2759, 1.0
      %v2792 = vadd.f32 %v2760, 1.0
      %v2793 = vmul.f32 %v2761, 0.5
      %v2794 = vmul.f32 %v2762, 0.5
      %v2795 = vmul.f32 %v2763, 0.5
      %v2796 = vmul.f32 %v2764, 0.5
      %v2797 = vmul.f32 %v2765, 0.5
      %v2798 = vmul.f32 %v2766, 0.5
      %v2799 = vmul.f32 %v2767, 0.5
      %v2800 = vmul.f32 %v2768, 0.5
      %v2801 = vmul.f32 %v2769, 0.5
      %v2802 = vmul.f32 %v2770, 0.5
      %v2803 = vmul.f32 %v2771, 0.5
      %v2804 = vmul.f32 %v2772, 0.5
      %v2805 = vmul.f32 %v2773, 0.5
      %v2806 = vmul.f32 %v2774, 0.5
      %v2807 = vmul.f32 %v2775, 0.5
      %v2808 = vmul.f32 %v2776, 0.5
      %v2809 = vmul.f32 %v2777, 0.5
      %v2810 = vmul.f32 %v2778, 0.5
      %v2811 = vmul.f32 %v2779, 0.5
      %v2812 = vmul.f32 %v2780, 0.5
      %v2813 = vmul.f32 %v2781, 0.5
      %v2814 = vmul.f32 %v2782, 0.5
      %v2815 = vmul.f32 %v2783, 0.5
      %v2816 = vmul.f32 %v2784, 0.5
      %v2817 = vmul.f32 %v2785, 0.5
      %v2818 = vmul.f32 %v2786, 0.5
      %v2819 = vmul.f32 %v2787, 0.5
      %v2820 = vmul.f32 %v2788, 0.5
      %v2821 = vmul.f32 %v2789, 0.5
      %v2822 = vmul.f32 %v2790, 0.5
      %v2823 = vmul.f32 %v2791, 0.5
      %v2824 = vmul.f32 %v2792, 0.5
      %v2825 = vmul.f32 %v2537, %v2793
      %v2826 = vmul.f32 %v2538, %v2794
      %v2827 = vmul.f32 %v2539, %v2795
      %v2828 = vmul.f32 %v2540, %v2796
      %v2829 = vmul.f32 %v2541, %v2797
      %v2830 = vmul.f32 %v2542, %v2798
      %v2831 = vmul.f32 %v2543, %v2799
      %v2832 = vmul.f32 %v2544, %v2800
      %v2833 = vmul.f32 %v2545, %v2801
      %v2834 = vmul.f32 %v2546, %v2802
      %v2835 = vmul.f32 %v2547, %v2803
      %v2836 = vmul.f32 %v2548, %v2804
      %v2837 = vmul.f32 %v2549, %v2805
      %v2838 = vmul.f32 %v2550, %v2806
      %v2839 = vmul.f32 %v2551, %v2807
      %v2840 = vmul.f32 %v2552, %v2808
      %v2841 = vmul.f32 %v2553, %v2809
      %v2842 = vmul.f32 %v2554, %v2810
      %v2843 = vmul.f32 %v2555, %v2811
      %v2844 = vmul.f32 %v2556, %v2812
      %v2845 = vmul.f32 %v2557, %v2813
      %v2846 = vmul.f32 %v2558, %v2814
      %v2847 = vmul.f32 %v2559, %v2815
      %v2848 = vmul.f32 %v2560, %v2816
      %v2849 = vmul.f32 %v2561, %v2817
      %v2850 = vmul.f32 %v2562, %v2818
      %v2851 = vmul.f32 %v2563, %v2819
      %v2852 = vmul.f32 %v2564, %v2820
      %v2853 = vmul.f32 %v2565, %v2821
      %v2854 = vmul.f32 %v2566, %v2822
      %v2855 = vmul.f32 %v2567, %v2823
      %v2856 = vmul.f32 %v2568, %v2824
      %2889 = vrot.lane.b32.xlu0 %v2537, 120
      %v2890 = vpop.permute.xlu0 %2889
      %2891 = vrot.lane.b32.xlu0 %v2538, 120
      %v2892 = vpop.permute.xlu0 %2891
      %2893 = vrot.lane.b32.xlu0 %v2539, 120
      %v2894 = vpop.permute.xlu0 %2893
      %2895 = vrot.lane.b32.xlu0 %v2540, 120
      %v2896 = vpop.permute.xlu0 %2895
      %2897 = vrot.lane.b32.xlu0 %v2541, 120
      %v2898 = vpop.permute.xlu0 %2897
      %2899 = vrot.lane.b32.xlu0 %v2542, 120
      %v2900 = vpop.permute.xlu0 %2899
      %2901 = vrot.lane.b32.xlu0 %v2543, 120
      %v2902 = vpop.permute.xlu0 %2901
      %2903 = vrot.lane.b32.xlu0 %v2544, 120
      %v2904 = vpop.permute.xlu0 %2903
      %2905 = vrot.lane.b32.xlu0 %v2545, 120
      %v2906 = vpop.permute.xlu0 %2905
      %2907 = vrot.lane.b32.xlu0 %v2546, 120
      %v2908 = vpop.permute.xlu0 %2907
      %2909 = vrot.lane.b32.xlu0 %v2547, 120
      %v2910 = vpop.permute.xlu0 %2909
      %2911 = vrot.lane.b32.xlu0 %v2548, 120
      %v2912 = vpop.permute.xlu0 %2911
      %2913 = vrot.lane.b32.xlu0 %v2549, 120
      %v2914 = vpop.permute.xlu0 %2913
      %2915 = vrot.lane.b32.xlu0 %v2550, 120
      %v2916 = vpop.permute.xlu0 %2915
      %2917 = vrot.lane.b32.xlu0 %v2551, 120
      %v2918 = vpop.permute.xlu0 %2917
      %2919 = vrot.lane.b32.xlu0 %v2552, 120
      %v2920 = vpop.permute.xlu0 %2919
      %2921 = vrot.lane.b32.xlu0 %v2553, 120
      %v2922 = vpop.permute.xlu0 %2921
      %2923 = vrot.lane.b32.xlu0 %v2554, 120
      %v2924 = vpop.permute.xlu0 %2923
      %2925 = vrot.lane.b32.xlu0 %v2555, 120
      %v2926 = vpop.permute.xlu0 %2925
      %2927 = vrot.lane.b32.xlu0 %v2556, 120
      %v2928 = vpop.permute.xlu0 %2927
      %2929 = vrot.lane.b32.xlu0 %v2557, 120
      %v2930 = vpop.permute.xlu0 %2929
      %2931 = vrot.lane.b32.xlu0 %v2558, 120
      %v2932 = vpop.permute.xlu0 %2931
      %2933 = vrot.lane.b32.xlu0 %v2559, 120
      %v2934 = vpop.permute.xlu0 %2933
      %2935 = vrot.lane.b32.xlu0 %v2560, 120
      %v2936 = vpop.permute.xlu0 %2935
      %2937 = vrot.lane.b32.xlu0 %v2561, 120
      %v2938 = vpop.permute.xlu0 %2937
      %2939 = vrot.lane.b32.xlu0 %v2562, 120
      %v2940 = vpop.permute.xlu0 %2939
      %2941 = vrot.lane.b32.xlu0 %v2563, 120
      %v2942 = vpop.permute.xlu0 %2941
      %2943 = vrot.lane.b32.xlu0 %v2564, 120
      %v2944 = vpop.permute.xlu0 %2943
      %2945 = vrot.lane.b32.xlu0 %v2565, 120
      %v2946 = vpop.permute.xlu0 %2945
      %2947 = vrot.lane.b32.xlu0 %v2566, 120
      %v2948 = vpop.permute.xlu0 %2947
      %2949 = vrot.lane.b32.xlu0 %v2567, 120
      %v2950 = vpop.permute.xlu0 %2949
      %2951 = vrot.lane.b32.xlu0 %v2568, 120
      %v2952 = vpop.permute.xlu0 %2951
      %v2985 = vmul.f32 %v2825, %v2890
      %v2986 = vmul.f32 %v2826, %v2892
      %v2987 = vmul.f32 %v2827, %v2894
      %v2988 = vmul.f32 %v2828, %v2896
      %v2989 = vmul.f32 %v2829, %v2898
      %v2990 = vmul.f32 %v2830, %v2900
      %v2991 = vmul.f32 %v2831, %v2902
      %v2992 = vmul.f32 %v2832, %v2904
      %v2993 = vmul.f32 %v2833, %v2906
      %v2994 = vmul.f32 %v2834, %v2908
      %v2995 = vmul.f32 %v2835, %v2910
      %v2996 = vmul.f32 %v2836, %v2912
      %v2997 = vmul.f32 %v2837, %v2914
      %v2998 = vmul.f32 %v2838, %v2916
      %v2999 = vmul.f32 %v2839, %v2918
      %v3000 = vmul.f32 %v2840, %v2920
      %v3001 = vmul.f32 %v2841, %v2922
      %v3002 = vmul.f32 %v2842, %v2924
      %v3003 = vmul.f32 %v2843, %v2926
      %v3004 = vmul.f32 %v2844, %v2928
      %v3005 = vmul.f32 %v2845, %v2930
      %v3006 = vmul.f32 %v2846, %v2932
      %v3007 = vmul.f32 %v2847, %v2934
      %v3008 = vmul.f32 %v2848, %v2936
      %v3009 = vmul.f32 %v2849, %v2938
      %v3010 = vmul.f32 %v2850, %v2940
      %v3011 = vmul.f32 %v2851, %v2942
      %v3012 = vmul.f32 %v2852, %v2944
      %v3013 = vmul.f32 %v2853, %v2946
      %v3014 = vmul.f32 %v2854, %v2948
      %v3015 = vmul.f32 %v2855, %v2950
      %v3016 = vmul.f32 %v2856, %v2952
      %v3017 = vpack.c.bf16 %v2986, %v2985
      %v3018 = vpack.c.bf16 %v2988, %v2987
      %v3019 = vpack.c.bf16 %v2990, %v2989
      %v3020 = vpack.c.bf16 %v2992, %v2991
      %v3021 = vpack.c.bf16 %v2994, %v2993
      %v3022 = vpack.c.bf16 %v2996, %v2995
      %v3023 = vpack.c.bf16 %v2998, %v2997
      %v3024 = vpack.c.bf16 %v3000, %v2999
      %v3025 = vpack.c.bf16 %v3002, %v3001
      %v3026 = vpack.c.bf16 %v3004, %v3003
      %v3027 = vpack.c.bf16 %v3006, %v3005
      %v3028 = vpack.c.bf16 %v3008, %v3007
      %v3029 = vpack.c.bf16 %v3010, %v3009
      %v3030 = vpack.c.bf16 %v3012, %v3011
      %v3031 = vpack.c.bf16 %v3014, %v3013
      %v3032 = vpack.c.bf16 %v3016, %v3015
      %v3033 = vld [vmem:[%s8] sm:$0xf]
      %v3034 = vld [vmem:[%s9] sm:$0x1]
      %v3036 = vlaneseq
      %v3037 = vshrl.u32 %v3036, 7
      %v3038 = vsub.s32 0, %v3037
      %v3039 = vrot.slane %v3034, %v3038
      %vm3041 = vcmask 64512
      %v3043 = vsel %vm3041, %v3017, 0
      %v3046 = vsel %vm3041, %v3018, 0
      %v3049 = vsel %vm3041, %v3019, 0
      %v3052 = vsel %vm3041, %v3020, 0
      %v3055 = vsel %vm3041, %v3021, 0
      %v3058 = vsel %vm3041, %v3022, 0
      %v3061 = vsel %vm3041, %v3023, 0
      %v3064 = vsel %vm3041, %v3024, 0
      %v3067 = vsel %vm3041, %v3025, 0
      %v3070 = vsel %vm3041, %v3026, 0
      %v3073 = vsel %vm3041, %v3027, 0
      %v3076 = vsel %vm3041, %v3028, 0
      %v3079 = vsel %vm3041, %v3029, 0
      %v3082 = vsel %vm3041, %v3030, 0
      %v3085 = vsel %vm3041, %v3031, 0
      %v3088 = vsel %vm3041, %v3032, 0
      %vm3090 = vcmask 1043456
      %v3092 = vsel %vm3090, %v3033, 0
      %3094 = vmatprep.subr.bf16.mxu0 0
      %3095 = vmatpush1.bf16.msra.mxu0 0
      %3096 = vmatprep.subr.bf16.mxu0 0
      %3097 = vmatpush1.bf16.msra.mxu0 0
      %3098 = vmatprep.subr.bf16.mxu0 0
      %3099 = vmatpush1.bf16.msra.mxu0 0
      %3100 = vmatprep.subr.bf16.mxu0 0
      %3101 = vmatpush1.bf16.msra.mxu0 0
      %3102 = vmatprep.subr.bf16.mxu0 0
      %3103 = vmatpush1.bf16.msra.mxu0 0
      %3104 = vmatprep.subr.bf16.mxu0 0
      %3105 = vmatpush1.bf16.msra.mxu0 0
      %3106 = vmatprep.subr.bf16.mxu0 0
      %3107 = vmatpush1.bf16.msra.mxu0 0
      %3108 = vmatprep.subr.bf16.mxu0 0
      %3109 = vmatpush1.bf16.msra.mxu0 %v3092
      %3110 = vmatprep.subr.bf16.mxu0 0
      %3111 = vmatpush2.bf16.msra.mxu0 0
      %3112 = vmatprep.subr.bf16.mxu0 0
      %3113 = vmatpush2.bf16.msra.mxu0 0
      %3114 = vmatprep.subr.bf16.mxu0 0
      %3115 = vmatpush2.bf16.msra.mxu0 0
      %3116 = vmatprep.subr.bf16.mxu0 0
      %3117 = vmatpush2.bf16.msra.mxu0 0
      %3118 = vmatprep.subr.bf16.mxu0 0
      %3119 = vmatpush2.bf16.msra.mxu0 0
      %3120 = vmatprep.subr.bf16.mxu0 0
      %3121 = vmatpush2.bf16.msra.mxu0 0
      %3122 = vmatprep.subr.bf16.mxu0 0
      %3123 = vmatpush2.bf16.msra.mxu0 0
      %3124 = vmatprep.subr.bf16.mxu0 0
      %3125 = vmatpush2.bf16.msra.mxu0 0
      %3126 = vmatprep.mubr.bf16.mxu0 0
      %3127 = vmatmul.mubr.bf16.gmra.mxu0 %v3043
      %v3128 = vpop.f32.mrf.mxu0
      %v3129 = vadd.f32 %v3039, %v3128
      %v3130 = vpop.f32.mrf.mxu0
      %v3131 = vpop.f32.mrf.mxu0
      %v3132 = vadd.f32 %v3039, %v3131
      %v3133 = vpop.f32.mrf.mxu0
      %3134 = vmatprep.mubr.bf16.mxu0 0
      %3135 = vmatmul.mubr.bf16.gmra.mxu0 %v3046
      %v3136 = vpop.f32.mrf.mxu0
      %v3137 = vadd.f32 %v3039, %v3136
      %v3138 = vpop.f32.mrf.mxu0
      %v3139 = vpop.f32.mrf.mxu0
      %v3140 = vadd.f32 %v3039, %v3139
      %v3141 = vpop.f32.mrf.mxu0
      %3142 = vmatprep.mubr.bf16.mxu0 0
      %3143 = vmatmul.mubr.bf16.gmra.mxu0 %v3049
      %v3144 = vpop.f32.mrf.mxu0
      %v3145 = vadd.f32 %v3039, %v3144
      %v3146 = vpop.f32.mrf.mxu0
      %v3147 = vpop.f32.mrf.mxu0
      %v3148 = vadd.f32 %v3039, %v3147
      %v3149 = vpop.f32.mrf.mxu0
      %3150 = vmatprep.mubr.bf16.mxu0 0
      %3151 = vmatmul.mubr.bf16.gmra.mxu0 %v3052
      %v3152 = vpop.f32.mrf.mxu0
      %v3153 = vadd.f32 %v3039, %v3152
      %v3154 = vpop.f32.mrf.mxu0
      %v3155 = vpop.f32.mrf.mxu0
      %v3156 = vadd.f32 %v3039, %v3155
      %v3157 = vpop.f32.mrf.mxu0
      %3158 = vmatprep.mubr.bf16.mxu0 0
      %3159 = vmatmul.mubr.bf16.gmra.mxu0 %v3055
      %v3160 = vpop.f32.mrf.mxu0
      %v3161 = vadd.f32 %v3039, %v3160
      %v3162 = vpop.f32.mrf.mxu0
      %v3163 = vpop.f32.mrf.mxu0
      %v3164 = vadd.f32 %v3039, %v3163
      %v3165 = vpop.f32.mrf.mxu0
      %3166 = vmatprep.mubr.bf16.mxu0 0
      %3167 = vmatmul.mubr.bf16.gmra.mxu0 %v3058
      %v3168 = vpop.f32.mrf.mxu0
      %v3169 = vadd.f32 %v3039, %v3168
      %v3170 = vpop.f32.mrf.mxu0
      %v3171 = vpop.f32.mrf.mxu0
      %v3172 = vadd.f32 %v3039, %v3171
      %v3173 = vpop.f32.mrf.mxu0
      %3174 = vmatprep.mubr.bf16.mxu0 0
      %3175 = vmatmul.mubr.bf16.gmra.mxu0 %v3061
      %v3176 = vpop.f32.mrf.mxu0
      %v3177 = vadd.f32 %v3039, %v3176
      %v3178 = vpop.f32.mrf.mxu0
      %v3179 = vpop.f32.mrf.mxu0
      %v3180 = vadd.f32 %v3039, %v3179
      %v3181 = vpop.f32.mrf.mxu0
      %3182 = vmatprep.mubr.bf16.mxu0 0
      %3183 = vmatmul.mubr.bf16.gmra.mxu0 %v3064
      %v3184 = vpop.f32.mrf.mxu0
      %v3185 = vadd.f32 %v3039, %v3184
      %v3186 = vpop.f32.mrf.mxu0
      %v3187 = vpop.f32.mrf.mxu0
      %v3188 = vadd.f32 %v3039, %v3187
      %v3189 = vpop.f32.mrf.mxu0
      %3190 = vmatprep.mubr.bf16.mxu0 0
      %3191 = vmatmul.mubr.bf16.gmra.mxu0 %v3067
      %v3192 = vpop.f32.mrf.mxu0
      %v3193 = vadd.f32 %v3039, %v3192
      %v3194 = vpop.f32.mrf.mxu0
      %v3195 = vpop.f32.mrf.mxu0
      %v3196 = vadd.f32 %v3039, %v3195
      %v3197 = vpop.f32.mrf.mxu0
      %3198 = vmatprep.mubr.bf16.mxu0 0
      %3199 = vmatmul.mubr.bf16.gmra.mxu0 %v3070
      %v3200 = vpop.f32.mrf.mxu0
      %v3201 = vadd.f32 %v3039, %v3200
      %v3202 = vpop.f32.mrf.mxu0
      %v3203 = vpop.f32.mrf.mxu0
      %v3204 = vadd.f32 %v3039, %v3203
      %v3205 = vpop.f32.mrf.mxu0
      %3206 = vmatprep.mubr.bf16.mxu0 0
      %3207 = vmatmul.mubr.bf16.gmra.mxu0 %v3073
      %v3208 = vpop.f32.mrf.mxu0
      %v3209 = vadd.f32 %v3039, %v3208
      %v3210 = vpop.f32.mrf.mxu0
      %v3211 = vpop.f32.mrf.mxu0
      %v3212 = vadd.f32 %v3039, %v3211
      %v3213 = vpop.f32.mrf.mxu0
      %3214 = vmatprep.mubr.bf16.mxu0 0
      %3215 = vmatmul.mubr.bf16.gmra.mxu0 %v3076
      %v3216 = vpop.f32.mrf.mxu0
      %v3217 = vadd.f32 %v3039, %v3216
      %v3218 = vpop.f32.mrf.mxu0
      %v3219 = vpop.f32.mrf.mxu0
      %v3220 = vadd.f32 %v3039, %v3219
      %v3221 = vpop.f32.mrf.mxu0
      %3222 = vmatprep.mubr.bf16.mxu0 0
      %3223 = vmatmul.mubr.bf16.gmra.mxu0 %v3079
      %v3224 = vpop.f32.mrf.mxu0
      %v3225 = vadd.f32 %v3039, %v3224
      %v3226 = vpop.f32.mrf.mxu0
      %v3227 = vpop.f32.mrf.mxu0
      %v3228 = vadd.f32 %v3039, %v3227
      %v3229 = vpop.f32.mrf.mxu0
      %3230 = vmatprep.mubr.bf16.mxu0 0
      %3231 = vmatmul.mubr.bf16.gmra.mxu0 %v3082
      %v3232 = vpop.f32.mrf.mxu0
      %v3233 = vadd.f32 %v3039, %v3232
      %v3234 = vpop.f32.mrf.mxu0
      %v3235 = vpop.f32.mrf.mxu0
      %v3236 = vadd.f32 %v3039, %v3235
      %v3237 = vpop.f32.mrf.mxu0
      %3238 = vmatprep.mubr.bf16.mxu0 0
      %3239 = vmatmul.mubr.bf16.gmra.mxu0 %v3085
      %v3240 = vpop.f32.mrf.mxu0
      %v3241 = vadd.f32 %v3039, %v3240
      %v3242 = vpop.f32.mrf.mxu0
      %v3243 = vpop.f32.mrf.mxu0
      %v3244 = vadd.f32 %v3039, %v3243
      %v3245 = vpop.f32.mrf.mxu0
      %3246 = vmatprep.mubr.bf16.mxu0 0
      %3247 = vmatmul.mubr.bf16.gmra.mxu0 %v3088
      %v3248 = vpop.f32.mrf.mxu0
      %v3249 = vadd.f32 %v3039, %v3248
      %v3250 = vpop.f32.mrf.mxu0
      %v3251 = vpop.f32.mrf.mxu0
      %v3252 = vadd.f32 %v3039, %v3251
      %v3253 = vpop.f32.mrf.mxu0
      %3254 = vdwg.mxu0
      %3255 = vst.msk [vmem:[%s536] sm:$0xff] %vm687, %v3129
      %3256 = vst.msk [vmem:[%s536 + $0x8] sm:$0xff] %vm687, %v3132
      %3257 = vst.msk [vmem:[%s536 + $0x10] sm:$0xff] %vm687, %v3137
      %3258 = vst.msk [vmem:[%s536 + $0x18] sm:$0xff] %vm687, %v3140
      %3259 = vst.msk [vmem:[%s536 + $0x20] sm:$0xff] %vm687, %v3145
      %3260 = vst.msk [vmem:[%s536 + $0x28] sm:$0xff] %vm687, %v3148
      %3261 = vst.msk [vmem:[%s536 + $0x30] sm:$0xff] %vm687, %v3153
      %3262 = vst.msk [vmem:[%s536 + $0x38] sm:$0xff] %vm687, %v3156
      %3263 = vst.msk [vmem:[%s536 + $0x40] sm:$0xff] %vm687, %v3161
      %3264 = vst.msk [vmem:[%s536 + $0x48] sm:$0xff] %vm687, %v3164
      %3265 = vst.msk [vmem:[%s536 + $0x50] sm:$0xff] %vm687, %v3169
      %3266 = vst.msk [vmem:[%s536 + $0x58] sm:$0xff] %vm687, %v3172
      %3267 = vst.msk [vmem:[%s536 + $0x60] sm:$0xff] %vm687, %v3177
      %3268 = vst.msk [vmem:[%s536 + $0x68] sm:$0xff] %vm687, %v3180
      %3269 = vst.msk [vmem:[%s536 + $0x70] sm:$0xff] %vm687, %v3185
      %3270 = vst.msk [vmem:[%s536 + $0x78] sm:$0xff] %vm687, %v3188
      %3271 = vst.msk [vmem:[%s536 + $0x80] sm:$0xff] %vm687, %v3193
      %3272 = vst.msk [vmem:[%s536 + $0x88] sm:$0xff] %vm687, %v3196
      %3273 = vst.msk [vmem:[%s536 + $0x90] sm:$0xff] %vm687, %v3201
      %3274 = vst.msk [vmem:[%s536 + $0x98] sm:$0xff] %vm687, %v3204
      %3275 = vst.msk [vmem:[%s536 + $0xa0] sm:$0xff] %vm687, %v3209
      %3276 = vst.msk [vmem:[%s536 + $0xa8] sm:$0xff] %vm687, %v3212
      %3277 = vst.msk [vmem:[%s536 + $0xb0] sm:$0xff] %vm687, %v3217
      %3278 = vst.msk [vmem:[%s536 + $0xb8] sm:$0xff] %vm687, %v3220
      %3279 = vst.msk [vmem:[%s536 + $0xc0] sm:$0xff] %vm687, %v3225
      %3280 = vst.msk [vmem:[%s536 + $0xc8] sm:$0xff] %vm687, %v3228
      %3281 = vst.msk [vmem:[%s536 + $0xd0] sm:$0xff] %vm687, %v3233
      %3282 = vst.msk [vmem:[%s536 + $0xd8] sm:$0xff] %vm687, %v3236
      %3283 = vst.msk [vmem:[%s536 + $0xe0] sm:$0xff] %vm687, %v3241
      %3284 = vst.msk [vmem:[%s536 + $0xe8] sm:$0xff] %vm687, %v3244
      %3285 = vst.msk [vmem:[%s536 + $0xf0] sm:$0xff] %vm687, %v3249
      %3286 = vst.msk [vmem:[%s536 + $0xf8] sm:$0xff] %vm687, %v3252
      %s3287 = smul.u32 16, %s26
      %p3288 = scmp.lt.s32.totalorder %s25, 1
      %s3289 = scalar_select %p3288, %s25, 1
      %p3290 = scmp.lt.s32.totalorder %s3287, 15
      %s3291 = scalar_select %p3290, %s3287, 15
      %s3292 = smul.addr %s3291, 2
      %s3293 = smul.addr %s3289, 32
      %s3294 = sadd.s32 %s3292, %s3293
      %s3295 = smul.addr %s3294, 8
      %s3296 = scalar_lea.vmem %s10, %s3295
      // Predicated region
      $region61: #{wffn_forward.1} parent=59 // pred_check
        %p3297 = pneg %p300
      $region62: #{wffn_forward.1} parent=59 // pred_check_branch
        %3299 = sbr.rel (%p3297) target = $region64
      $region63: #{wffn_forward.1} parent=59 // pred_region
        %s3300 = smul.u32 16, %s26
      $region64: #{wffn_forward.1} parent=59 // pred_fallthru
        _
    $region60: #{wffn_forward.1} parent=5 // pred_fallthru
      _
    %p3301 = scmp.le.s32.totalorder 2, %s16
    // Predicated region
    $region65: #{wffn_forward.1} parent=5 // pred_check
      %p3302 = pneg %p3301
    $region66: #{wffn_forward.1} parent=5 // pred_check_branch
      %3304 = sbr.rel (%p3302) target = $region68
    $region67: #{wffn_forward.1} parent=5 // pred_region
      %s3305 = ssub.s32 %s16, 2
      // Predicated region
      $region69: #{wffn_forward.1} parent=67 // pred_check
        %p3306 = pneg %p306
      $region70: #{wffn_forward.1} parent=67 // pred_check_branch
        %3308 = sbr.rel (%p3306) target = $region72
      $region71: #{wffn_forward.1} parent=67 // pred_region
        %s3309 = smul.u32 16, %s28
        %p3310 = scmp.lt.s32.totalorder %s27, 1
        %s3311 = scalar_select %p3310, %s27, 1
        %p3312 = scmp.lt.s32.totalorder %s3309, 15
        %s3313 = scalar_select %p3312, %s3309, 15
        %s3314 = smul.addr %s3313, 2
        %s3315 = smul.addr %s3311, 32
        %s3316 = sadd.s32 %s3314, %s3315
        %s3317 = smul.addr %s3316, 8
        %s3318 = scalar_lea.vmem %s10, %s3317
      $region72: #{wffn_forward.1} parent=67 // pred_fallthru
        _
    $region68: #{wffn_forward.1} parent=5 // pred_fallthru
      _
  $region6: #{wffn_forward.1} parent=0 // loop_footer
    %s20 = sadd.s32 1, %s16
  $region7: #{wffn_forward.1} parent=0 // loop_footer_branch
    %15 = sbr.rel target = $region3
  $region8: #{wffn_forward.1} parent=0 // loop_exit
    _

</llo_original>
